<compile_context>
chip_gen: v7x
topology: tpu7x:2x2x1
jax: 0.10.0
libtpu: 0.0.40
codegen_flags: <defaults>
</compile_context>

<pallas_src>
import math

import jax
import jax.numpy as jnp
from jax.experimental import pallas as pl
from jax.experimental.pallas import tpu as pltpu

# ------------------------- small BERT config -------------------------
B = 2              # batch
S = 16             # sequence length
H = 32             # hidden size
NUM_HEADS = 2
D_HEAD = H // NUM_HEADS
I = 64             # FFN intermediate size
L = 2              # number of encoder layers
V = 128            # vocab size (>= 104 so mask_token_id=103 is a valid id)
A = 2              # number of answer tokens
MASK_TOKEN_ID = 103
LN_EPS = 1e-12
BS = B * S


# ------------------------- in-kernel helpers -------------------------
def _gelu(x):
    # TODO(synk): HF BERT uses erf-GELU; tanh approximation used here (EUP-friendly).
    return 0.5 * x * (1.0 + jnp.tanh(0.7978845608028654 * (x + 0.044715 * x * x * x)))


def _ln(x, g, b):
    mu = jnp.mean(x, axis=-1, keepdims=True)
    var = jnp.mean((x - mu) ** 2, axis=-1, keepdims=True)
    return (x - mu) * jax.lax.rsqrt(var + LN_EPS) * g + b


# ------------------------- fused Pallas kernel -------------------------
def fused_bert_kernel(emb_ref, bias_ref, sel_ref, anssel_ref, oh_ref,
                      eg_ref, eb_ref,
                      wq_ref, bq_ref, wk_ref, bk_ref, wv_ref, bv_ref,
                      wo_ref, bo_ref, l1g_ref, l1b_ref,
                      wi_ref, bi_ref, wf_ref, bf_ref, l2g_ref, l2b_ref,
                      wt_ref, bt_ref, hg_ref, hb_ref, dec_ref, decb_ref,
                      loss_ref, probs_ref):
    # Embedding LayerNorm; hidden state stays flat (B*S, H) for all dense matmuls.
    h = _ln(emb_ref[...], eg_ref[...], eb_ref[...])                       # (BS, H)

    # Additive key-mask bias, computed once and reused across all layers (hoisted).
    bias3 = bias_ref[...][:, None, :]                                     # (B, 1, S)
    scale = 1.0 / math.sqrt(D_HEAD)

    for l in range(L):                       # static loop; weights resident in VMEM
        q = jnp.dot(h, wq_ref[l], preferred_element_type=jnp.float32) + bq_ref[l]
        k = jnp.dot(h, wk_ref[l], preferred_element_type=jnp.float32) + bk_ref[l]
        v = jnp.dot(h, wv_ref[l], preferred_element_type=jnp.float32) + bv_ref[l]
        q3 = q.reshape(B, S, H)
        k3 = k.reshape(B, S, H)
        v3 = v.reshape(B, S, H)

        # Attention: einsum batched over B; heads as a static 2-iteration loop.
        ctx_heads = []
        for hd in range(NUM_HEADS):
            lo = hd * D_HEAD
            qs = q3[:, :, lo:lo + D_HEAD]
            ks = k3[:, :, lo:lo + D_HEAD]
            vs = v3[:, :, lo:lo + D_HEAD]
            s = jnp.einsum('bqd,bkd->bqk', qs, ks,
                           preferred_element_type=jnp.float32) * scale + bias3
            s = s - jnp.max(s, axis=-1, keepdims=True)
            p = jnp.exp(s)
            p = p * pl.reciprocal(jnp.sum(p, axis=-1, keepdims=True), approx=True)
            ctx_heads.append(jnp.einsum('bqk,bkd->bqd', p, vs,
                                        preferred_element_type=jnp.float32))
        # Concatenate heads once -> single (BS,H)@(H,H) projection with wo.
        ctx = jnp.concatenate(ctx_heads, axis=-1).reshape(BS, H)
        attn_out = jnp.dot(ctx, wo_ref[l],
                           preferred_element_type=jnp.float32) + bo_ref[l]
        h = _ln(h + attn_out, l1g_ref[l], l1b_ref[l])

        inter = _gelu(jnp.dot(h, wi_ref[l],
                              preferred_element_type=jnp.float32) + bi_ref[l])
        ffn = jnp.dot(inter, wf_ref[l],
                      preferred_element_type=jnp.float32) + bf_ref[l]
        h = _ln(h + ffn, l2g_ref[l], l2b_ref[l])

    # MLM head only at the selected [MASK] rows: one-hot selector matmul.
    mh = jnp.dot(sel_ref[...], h, preferred_element_type=jnp.float32)     # (B, H)
    t = _gelu(jnp.dot(mh, wt_ref[...],
                      preferred_element_type=jnp.float32) + bt_ref[...])
    t = _ln(t, hg_ref[...], hb_ref[...])
    logits = jnp.dot(t, dec_ref[...],
                     preferred_element_type=jnp.float32) + decb_ref[...]  # (B, V)

    # Answer-token gather as a (B,V)@(V,A) one-hot matmul.
    al = jnp.dot(logits, anssel_ref[...],
                 preferred_element_type=jnp.float32)                      # (B, A)

    # Fused cross-entropy loss + softmax probs (exact divide: only 4 elements).
    m = jnp.max(al, axis=-1, keepdims=True)
    e = jnp.exp(al - m)
    ssum = jnp.sum(e, axis=-1, keepdims=True)
    probs_ref[...] = e / ssum
    logz = jnp.log(ssum) + m                                              # (B, 1)
    picked = jnp.sum(al * oh_ref[...], axis=-1, keepdims=True)            # (B, 1)
    loss_ref[...] = jnp.mean(logz - picked, axis=0, keepdims=True)        # (1, 1)


# ------------------------- parameters (deterministic synthetic init) -------------------------
def init_params(key):
    ks = iter(jax.random.split(key, 64))

    def rnd(shape, scale=0.02):
        return scale * jax.random.normal(next(ks), shape, dtype=jnp.float32)

    params = {
        "word_emb": rnd((V, H)),
        "pos_emb": rnd((S, H)),
        "type_emb": rnd((2, H)),
        "emb_ln_g": jnp.ones((1, H), jnp.float32),
        "emb_ln_b": jnp.zeros((1, H), jnp.float32),
        # Per-layer weights stacked along a leading L axis -> one resident VMEM
        # input per weight type instead of L separate tensors.
        "wq": rnd((L, H, H)), "bq": jnp.zeros((L, 1, H), jnp.float32),
        "wk": rnd((L, H, H)), "bk": jnp.zeros((L, 1, H), jnp.float32),
        "wv": rnd((L, H, H)), "bv": jnp.zeros((L, 1, H), jnp.float32),
        "wo": rnd((L, H, H)), "bo": jnp.zeros((L, 1, H), jnp.float32),
        "ln1g": jnp.ones((L, 1, H), jnp.float32),
        "ln1b": jnp.zeros((L, 1, H), jnp.float32),
        "wi": rnd((L, H, I)), "bi": jnp.zeros((L, 1, I), jnp.float32),
        "wf": rnd((L, I, H)), "bf": jnp.zeros((L, 1, H), jnp.float32),
        "ln2g": jnp.ones((L, 1, H), jnp.float32),
        "ln2b": jnp.zeros((L, 1, H), jnp.float32),
        # MLM head: transform dense + LN, decoder tied to word embeddings (+ bias).
        "wt": rnd((H, H)), "bt": jnp.zeros((1, H), jnp.float32),
        "hlng": jnp.ones((1, H), jnp.float32),
        "hlnb": jnp.zeros((1, H), jnp.float32),
        "decb": jnp.zeros((1, V), jnp.float32),
    }
    params["dec"] = params["word_emb"].T
    return params


# ------------------------- full forward (BERTPrompt4NR.forward) -------------------------
def bert_prompt4nr_forward(params, batch_enc, batch_attn, batch_labs, answer_ids):
    # TODO(synk): `myembedding=1` is a custom arg of CustomBertForMaskedLM with
    # unknown semantics; standard BERT embeddings are used here.
    we = params["word_emb"][batch_enc]                                    # (B, S, H) gather (glue)
    emb = we + params["pos_emb"][None, :, :] + params["type_emb"][0][None, None, :]
    emb_flat = emb.reshape(BS, H)

    # Additive attention mask bias, computed once in the wrapper (hoisted).
    attn_bias = (1.0 - batch_attn.astype(jnp.float32)) * (-1e9)          # (B, S)

    # Row selector for the LAST [MASK] position of each example.
    eq = (batch_enc == MASK_TOKEN_ID).astype(jnp.int32)
    idx_last = S - 1 - jnp.argmax(eq[:, ::-1], axis=1)                    # (B,)
    sel = jax.nn.one_hot(jnp.arange(B) * S + idx_last, BS,
                         dtype=jnp.float32)                               # (B, B*S)

    ans_sel = jax.nn.one_hot(answer_ids, V, dtype=jnp.float32).T          # (V, A)
    onehot = jax.nn.one_hot(batch_labs, A, dtype=jnp.float32)             # (B, A)

    inputs = (emb_flat, attn_bias, sel, ans_sel, onehot,
              params["emb_ln_g"], params["emb_ln_b"],
              params["wq"], params["bq"], params["wk"], params["bk"],
              params["wv"], params["bv"], params["wo"], params["bo"],
              params["ln1g"], params["ln1b"],
              params["wi"], params["bi"], params["wf"], params["bf"],
              params["ln2g"], params["ln2b"],
              params["wt"], params["bt"], params["hlng"], params["hlnb"],
              params["dec"], params["decb"])

    loss, probs = pl.pallas_call(
        fused_bert_kernel,
        out_shape=(jax.ShapeDtypeStruct((1, 1), jnp.float32),
                   jax.ShapeDtypeStruct((B, A), jnp.float32)),
        in_specs=[pl.BlockSpec(memory_space=pltpu.MemorySpace.VMEM)] * len(inputs),
        out_specs=(pl.BlockSpec(memory_space=pltpu.MemorySpace.VMEM),
                   pl.BlockSpec(memory_space=pltpu.MemorySpace.VMEM)),
    )(*inputs)
    return loss[0, 0], probs


# ------------------------- main -------------------------
if __name__ == "__main__":
    key = jax.random.PRNGKey(0)
    pkey, dkey = jax.random.split(key)
    params = init_params(pkey)

    # batch_enc: random token ids, with exactly two [MASK] tokens per example
    batch_enc = jax.random.randint(dkey, (B, S), 5, 100, dtype=jnp.int32)
    batch_enc = batch_enc.at[0, 6].set(MASK_TOKEN_ID).at[0, 12].set(MASK_TOKEN_ID)
    batch_enc = batch_enc.at[1, 5].set(MASK_TOKEN_ID).at[1, 10].set(MASK_TOKEN_ID)

    # attention mask: example 1 has 3 padding tokens at the end
    batch_attn = jnp.ones((B, S), jnp.int32)
    batch_attn = batch_attn.at[1, S - 3:].set(0)

    batch_labs = jnp.array([0, 1], dtype=jnp.int32)
    answer_ids = jnp.array([17, 42], dtype=jnp.int32)      # A = 2

    fwd = jax.jit(bert_prompt4nr_forward)
    loss, probs = fwd(params, batch_enc, batch_attn, batch_labs, answer_ids)
    jax.block_until_ready((loss, probs))

    assert probs.shape == (B, A)
    assert bool(jnp.isfinite(loss)) and bool(jnp.all(jnp.isfinite(probs)))
    assert bool(jnp.allclose(jnp.sum(probs, axis=1), 1.0, atol=1e-5))
    print("KERNEL_OK")
</pallas_src>

<mosaic_0001>
module attributes {stable_mosaic.version = 11 : i64} {
  func.func @fused_bert_kernel(%arg0: memref<32x32xf32, #tpu.memory_space<vmem>>, %arg1: memref<2x16xf32, #tpu.memory_space<vmem>>, %arg2: memref<2x32xf32, #tpu.memory_space<vmem>>, %arg3: memref<128x2xf32, #tpu.memory_space<vmem>>, %arg4: memref<2x2xf32, #tpu.memory_space<vmem>>, %arg5: memref<1x32xf32, #tpu.memory_space<vmem>>, %arg6: memref<1x32xf32, #tpu.memory_space<vmem>>, %arg7: memref<2x32x32xf32, #tpu.memory_space<vmem>>, %arg8: memref<2x1x32xf32, #tpu.memory_space<vmem>>, %arg9: memref<2x32x32xf32, #tpu.memory_space<vmem>>, %arg10: memref<2x1x32xf32, #tpu.memory_space<vmem>>, %arg11: memref<2x32x32xf32, #tpu.memory_space<vmem>>, %arg12: memref<2x1x32xf32, #tpu.memory_space<vmem>>, %arg13: memref<2x32x32xf32, #tpu.memory_space<vmem>>, %arg14: memref<2x1x32xf32, #tpu.memory_space<vmem>>, %arg15: memref<2x1x32xf32, #tpu.memory_space<vmem>>, %arg16: memref<2x1x32xf32, #tpu.memory_space<vmem>>, %arg17: memref<2x32x64xf32, #tpu.memory_space<vmem>>, %arg18: memref<2x1x64xf32, #tpu.memory_space<vmem>>, %arg19: memref<2x64x32xf32, #tpu.memory_space<vmem>>, %arg20: memref<2x1x32xf32, #tpu.memory_space<vmem>>, %arg21: memref<2x1x32xf32, #tpu.memory_space<vmem>>, %arg22: memref<2x1x32xf32, #tpu.memory_space<vmem>>, %arg23: memref<32x32xf32, #tpu.memory_space<vmem>>, %arg24: memref<1x32xf32, #tpu.memory_space<vmem>>, %arg25: memref<1x32xf32, #tpu.memory_space<vmem>>, %arg26: memref<1x32xf32, #tpu.memory_space<vmem>>, %arg27: memref<32x128xf32, #tpu.memory_space<vmem>>, %arg28: memref<1x128xf32, #tpu.memory_space<vmem>>, %arg29: memref<1x1xf32, #tpu.memory_space<vmem>>, %arg30: memref<2x2xf32, #tpu.memory_space<vmem>>) attributes {dimension_semantics = [], scalar_prefetch = 0 : i64, scratch_operands = 0 : i64, tpu.core_type = #tpu.core_type<tc>} {
    %c0 = arith.constant 0 : index
    %c0_0 = arith.constant 0 : index
    %0 = vector.load %arg0[%c0, %c0_0] : memref<32x32xf32, #tpu.memory_space<vmem>>, vector<32x32xf32>
    %c0_1 = arith.constant 0 : index
    %c0_2 = arith.constant 0 : index
    %1 = vector.load %arg5[%c0_1, %c0_2] : memref<1x32xf32, #tpu.memory_space<vmem>>, vector<1x32xf32>
    %c0_3 = arith.constant 0 : index
    %c0_4 = arith.constant 0 : index
    %2 = vector.load %arg6[%c0_3, %c0_4] : memref<1x32xf32, #tpu.memory_space<vmem>>, vector<1x32xf32>
    %cst = arith.constant dense<0.000000e+00> : vector<32xf32>
    %3 = vector.multi_reduction <add>, %0, %cst [1] : vector<32x32xf32> to vector<32xf32>
    %4 = vector.shape_cast %3 : vector<32xf32> to vector<32x1xf32>
    %cst_5 = arith.constant 3.200000e+01 : f32
    %5 = vector.broadcast %cst_5 : f32 to vector<32x1xf32>
    %6 = arith.divf %4, %5 : vector<32x1xf32>
    %7 = vector.broadcast %6 : vector<32x1xf32> to vector<32x32xf32>
    %8 = arith.subf %0, %7 : vector<32x32xf32>
    %9 = arith.mulf %8, %8 : vector<32x32xf32>
    %cst_6 = arith.constant dense<0.000000e+00> : vector<32xf32>
    %10 = vector.multi_reduction <add>, %9, %cst_6 [1] : vector<32x32xf32> to vector<32xf32>
    %11 = vector.shape_cast %10 : vector<32xf32> to vector<32x1xf32>
    %cst_7 = arith.constant 3.200000e+01 : f32
    %12 = vector.broadcast %cst_7 : f32 to vector<32x1xf32>
    %13 = arith.divf %11, %12 : vector<32x1xf32>
    %14 = vector.broadcast %6 : vector<32x1xf32> to vector<32x32xf32>
    %15 = arith.subf %0, %14 : vector<32x32xf32>
    %cst_8 = arith.constant 9.99999996E-13 : f32
    %16 = vector.broadcast %cst_8 : f32 to vector<32x1xf32>
    %17 = arith.addf %13, %16 : vector<32x1xf32>
    %18 = math.rsqrt %17 : vector<32x1xf32>
    %19 = vector.broadcast %18 : vector<32x1xf32> to vector<32x32xf32>
    %20 = arith.mulf %15, %19 : vector<32x32xf32>
    %21 = vector.broadcast %1 : vector<1x32xf32> to vector<32x32xf32>
    %22 = arith.mulf %20, %21 : vector<32x32xf32>
    %23 = vector.broadcast %2 : vector<1x32xf32> to vector<32x32xf32>
    %24 = arith.addf %22, %23 : vector<32x32xf32>
    %c0_9 = arith.constant 0 : index
    %c0_10 = arith.constant 0 : index
    %25 = vector.load %arg1[%c0_9, %c0_10] : memref<2x16xf32, #tpu.memory_space<vmem>>, vector<2x16xf32>
    %26 = vector.shape_cast %25 : vector<2x16xf32> to vector<2x1x16xf32>
    %c0_11 = arith.constant 0 : index
    %c0_12 = arith.constant 0 : index
    %c0_13 = arith.constant 0 : index
    %27 = vector.load %arg7[%c0_11, %c0_12, %c0_13] : memref<2x32x32xf32, #tpu.memory_space<vmem>>, vector<1x32x32xf32>
    %28 = vector.shape_cast %27 : vector<1x32x32xf32> to vector<32x32xf32>
    %cst_14 = arith.constant dense<0.000000e+00> : vector<32x32xf32>
    %29 = tpu.matmul %24, %28, %cst_14 {dimension_numbers = #tpu.dot_dimension_numbers<[1], [0], [0], [1], [0, 0, 1, 1], [], []>} : vector<32x32xf32>, vector<32x32xf32>, vector<32x32xf32> -> vector<32x32xf32>
    %c0_15 = arith.constant 0 : index
    %c0_16 = arith.constant 0 : index
    %c0_17 = arith.constant 0 : index
    %30 = vector.load %arg8[%c0_15, %c0_16, %c0_17] : memref<2x1x32xf32, #tpu.memory_space<vmem>>, vector<1x1x32xf32>
    %31 = vector.shape_cast %30 : vector<1x1x32xf32> to vector<1x32xf32>
    %32 = vector.broadcast %31 : vector<1x32xf32> to vector<32x32xf32>
    %33 = arith.addf %29, %32 : vector<32x32xf32>
    %c0_18 = arith.constant 0 : index
    %c0_19 = arith.constant 0 : index
    %c0_20 = arith.constant 0 : index
    %34 = vector.load %arg9[%c0_18, %c0_19, %c0_20] : memref<2x32x32xf32, #tpu.memory_space<vmem>>, vector<1x32x32xf32>
    %35 = vector.shape_cast %34 : vector<1x32x32xf32> to vector<32x32xf32>
    %cst_21 = arith.constant dense<0.000000e+00> : vector<32x32xf32>
    %36 = tpu.matmul %24, %35, %cst_21 {dimension_numbers = #tpu.dot_dimension_numbers<[1], [0], [0], [1], [0, 0, 1, 1], [], []>} : vector<32x32xf32>, vector<32x32xf32>, vector<32x32xf32> -> vector<32x32xf32>
    %c0_22 = arith.constant 0 : index
    %c0_23 = arith.constant 0 : index
    %c0_24 = arith.constant 0 : index
    %37 = vector.load %arg10[%c0_22, %c0_23, %c0_24] : memref<2x1x32xf32, #tpu.memory_space<vmem>>, vector<1x1x32xf32>
    %38 = vector.shape_cast %37 : vector<1x1x32xf32> to vector<1x32xf32>
    %39 = vector.broadcast %38 : vector<1x32xf32> to vector<32x32xf32>
    %40 = arith.addf %36, %39 : vector<32x32xf32>
    %c0_25 = arith.constant 0 : index
    %c0_26 = arith.constant 0 : index
    %c0_27 = arith.constant 0 : index
    %41 = vector.load %arg11[%c0_25, %c0_26, %c0_27] : memref<2x32x32xf32, #tpu.memory_space<vmem>>, vector<1x32x32xf32>
    %42 = vector.shape_cast %41 : vector<1x32x32xf32> to vector<32x32xf32>
    %cst_28 = arith.constant dense<0.000000e+00> : vector<32x32xf32>
    %43 = tpu.matmul %24, %42, %cst_28 {dimension_numbers = #tpu.dot_dimension_numbers<[1], [0], [0], [1], [0, 0, 1, 1], [], []>} : vector<32x32xf32>, vector<32x32xf32>, vector<32x32xf32> -> vector<32x32xf32>
    %c0_29 = arith.constant 0 : index
    %c0_30 = arith.constant 0 : index
    %c0_31 = arith.constant 0 : index
    %44 = vector.load %arg12[%c0_29, %c0_30, %c0_31] : memref<2x1x32xf32, #tpu.memory_space<vmem>>, vector<1x1x32xf32>
    %45 = vector.shape_cast %44 : vector<1x1x32xf32> to vector<1x32xf32>
    %46 = vector.broadcast %45 : vector<1x32xf32> to vector<32x32xf32>
    %47 = arith.addf %43, %46 : vector<32x32xf32>
    %48 = vector.shape_cast %33 : vector<32x32xf32> to vector<2x16x32xf32>
    %49 = vector.shape_cast %40 : vector<32x32xf32> to vector<2x16x32xf32>
    %50 = vector.shape_cast %47 : vector<32x32xf32> to vector<2x16x32xf32>
    %51 = vector.extract_strided_slice %48 {offsets = [0, 0, 0], sizes = [2, 16, 16], strides = [1, 1, 1]} : vector<2x16x32xf32> to vector<2x16x16xf32>
    %52 = vector.extract_strided_slice %49 {offsets = [0, 0, 0], sizes = [2, 16, 16], strides = [1, 1, 1]} : vector<2x16x32xf32> to vector<2x16x16xf32>
    %53 = vector.extract_strided_slice %50 {offsets = [0, 0, 0], sizes = [2, 16, 16], strides = [1, 1, 1]} : vector<2x16x32xf32> to vector<2x16x16xf32>
    "tpu.trace_start"() <{level = 10 : i32, message = "bqd,bkd->bqk"}> : () -> ()
    %cst_32 = arith.constant dense<0.000000e+00> : vector<2x16x16xf32>
    %54 = tpu.matmul %51, %52, %cst_32 {dimension_numbers = #tpu.dot_dimension_numbers<[2], [2], [1], [1], [0, 0, 0, 1, 1, 1], [0], [0]>} : vector<2x16x16xf32>, vector<2x16x16xf32>, vector<2x16x16xf32> -> vector<2x16x16xf32>
    "tpu.trace_stop"() : () -> ()
    %cst_33 = arith.constant 2.500000e-01 : f32
    %55 = vector.broadcast %cst_33 : f32 to vector<2x16x16xf32>
    %56 = arith.mulf %54, %55 : vector<2x16x16xf32>
    %57 = vector.broadcast %26 : vector<2x1x16xf32> to vector<2x16x16xf32>
    %58 = arith.addf %56, %57 : vector<2x16x16xf32>
    %cst_34 = arith.constant dense<0xFF800000> : vector<2x16xf32>
    %59 = vector.multi_reduction <maximumf>, %58, %cst_34 [2] : vector<2x16x16xf32> to vector<2x16xf32>
    %60 = vector.shape_cast %59 : vector<2x16xf32> to vector<2x16x1xf32>
    %61 = vector.broadcast %60 : vector<2x16x1xf32> to vector<2x16x16xf32>
    %62 = arith.subf %58, %61 : vector<2x16x16xf32>
    %63 = math.exp %62 : vector<2x16x16xf32>
    %cst_35 = arith.constant dense<0.000000e+00> : vector<2x16xf32>
    %64 = vector.multi_reduction <add>, %63, %cst_35 [2] : vector<2x16x16xf32> to vector<2x16xf32>
    %65 = vector.shape_cast %64 : vector<2x16xf32> to vector<2x16x1xf32>
    %66 = tpu.reciprocal %65 {approx = true} : vector<2x16x1xf32> -> vector<2x16x1xf32>
    %67 = vector.broadcast %66 : vector<2x16x1xf32> to vector<2x16x16xf32>
    %68 = arith.mulf %63, %67 : vector<2x16x16xf32>
    "tpu.trace_start"() <{level = 10 : i32, message = "bqk,bkd->bqd"}> : () -> ()
    %cst_36 = arith.constant dense<0.000000e+00> : vector<2x16x16xf32>
    %69 = tpu.matmul %68, %53, %cst_36 {dimension_numbers = #tpu.dot_dimension_numbers<[2], [1], [1], [2], [0, 0, 0, 1, 1, 2], [0], [0]>} : vector<2x16x16xf32>, vector<2x16x16xf32>, vector<2x16x16xf32> -> vector<2x16x16xf32>
    "tpu.trace_stop"() : () -> ()
    %70 = vector.extract_strided_slice %48 {offsets = [0, 0, 16], sizes = [2, 16, 16], strides = [1, 1, 1]} : vector<2x16x32xf32> to vector<2x16x16xf32>
    %71 = vector.extract_strided_slice %49 {offsets = [0, 0, 16], sizes = [2, 16, 16], strides = [1, 1, 1]} : vector<2x16x32xf32> to vector<2x16x16xf32>
    %72 = vector.extract_strided_slice %50 {offsets = [0, 0, 16], sizes = [2, 16, 16], strides = [1, 1, 1]} : vector<2x16x32xf32> to vector<2x16x16xf32>
    "tpu.trace_start"() <{level = 10 : i32, message = "bqd,bkd->bqk"}> : () -> ()
    %cst_37 = arith.constant dense<0.000000e+00> : vector<2x16x16xf32>
    %73 = tpu.matmul %70, %71, %cst_37 {dimension_numbers = #tpu.dot_dimension_numbers<[2], [2], [1], [1], [0, 0, 0, 1, 1, 1], [0], [0]>} : vector<2x16x16xf32>, vector<2x16x16xf32>, vector<2x16x16xf32> -> vector<2x16x16xf32>
    "tpu.trace_stop"() : () -> ()
    %cst_38 = arith.constant 2.500000e-01 : f32
    %74 = vector.broadcast %cst_38 : f32 to vector<2x16x16xf32>
    %75 = arith.mulf %73, %74 : vector<2x16x16xf32>
    %76 = vector.broadcast %26 : vector<2x1x16xf32> to vector<2x16x16xf32>
    %77 = arith.addf %75, %76 : vector<2x16x16xf32>
    %cst_39 = arith.constant dense<0xFF800000> : vector<2x16xf32>
    %78 = vector.multi_reduction <maximumf>, %77, %cst_39 [2] : vector<2x16x16xf32> to vector<2x16xf32>
    %79 = vector.shape_cast %78 : vector<2x16xf32> to vector<2x16x1xf32>
    %80 = vector.broadcast %79 : vector<2x16x1xf32> to vector<2x16x16xf32>
    %81 = arith.subf %77, %80 : vector<2x16x16xf32>
    %82 = math.exp %81 : vector<2x16x16xf32>
    %cst_40 = arith.constant dense<0.000000e+00> : vector<2x16xf32>
    %83 = vector.multi_reduction <add>, %82, %cst_40 [2] : vector<2x16x16xf32> to vector<2x16xf32>
    %84 = vector.shape_cast %83 : vector<2x16xf32> to vector<2x16x1xf32>
    %85 = tpu.reciprocal %84 {approx = true} : vector<2x16x1xf32> -> vector<2x16x1xf32>
    %86 = vector.broadcast %85 : vector<2x16x1xf32> to vector<2x16x16xf32>
    %87 = arith.mulf %82, %86 : vector<2x16x16xf32>
    "tpu.trace_start"() <{level = 10 : i32, message = "bqk,bkd->bqd"}> : () -> ()
    %cst_41 = arith.constant dense<0.000000e+00> : vector<2x16x16xf32>
    %88 = tpu.matmul %87, %72, %cst_41 {dimension_numbers = #tpu.dot_dimension_numbers<[2], [1], [1], [2], [0, 0, 0, 1, 1, 2], [0], [0]>} : vector<2x16x16xf32>, vector<2x16x16xf32>, vector<2x16x16xf32> -> vector<2x16x16xf32>
    "tpu.trace_stop"() : () -> ()
    %89 = tpu.concatenate %69, %88 in 2 : vector<2x16x16xf32>, vector<2x16x16xf32> -> vector<2x16x32xf32>
    %90 = vector.shape_cast %89 : vector<2x16x32xf32> to vector<32x32xf32>
    %c0_42 = arith.constant 0 : index
    %c0_43 = arith.constant 0 : index
    %c0_44 = arith.constant 0 : index
    %91 = vector.load %arg13[%c0_42, %c0_43, %c0_44] : memref<2x32x32xf32, #tpu.memory_space<vmem>>, vector<1x32x32xf32>
    %92 = vector.shape_cast %91 : vector<1x32x32xf32> to vector<32x32xf32>
    %cst_45 = arith.constant dense<0.000000e+00> : vector<32x32xf32>
    %93 = tpu.matmul %90, %92, %cst_45 {dimension_numbers = #tpu.dot_dimension_numbers<[1], [0], [0], [1], [0, 0, 1, 1], [], []>} : vector<32x32xf32>, vector<32x32xf32>, vector<32x32xf32> -> vector<32x32xf32>
    %c0_46 = arith.constant 0 : index
    %c0_47 = arith.constant 0 : index
    %c0_48 = arith.constant 0 : index
    %94 = vector.load %arg14[%c0_46, %c0_47, %c0_48] : memref<2x1x32xf32, #tpu.memory_space<vmem>>, vector<1x1x32xf32>
    %95 = vector.shape_cast %94 : vector<1x1x32xf32> to vector<1x32xf32>
    %96 = vector.broadcast %95 : vector<1x32xf32> to vector<32x32xf32>
    %97 = arith.addf %93, %96 : vector<32x32xf32>
    %98 = arith.addf %24, %97 : vector<32x32xf32>
    %c0_49 = arith.constant 0 : index
    %c0_50 = arith.constant 0 : index
    %c0_51 = arith.constant 0 : index
    %99 = vector.load %arg15[%c0_49, %c0_50, %c0_51] : memref<2x1x32xf32, #tpu.memory_space<vmem>>, vector<1x1x32xf32>
    %100 = vector.shape_cast %99 : vector<1x1x32xf32> to vector<1x32xf32>
    %c0_52 = arith.constant 0 : index
    %c0_53 = arith.constant 0 : index
    %c0_54 = arith.constant 0 : index
    %101 = vector.load %arg16[%c0_52, %c0_53, %c0_54] : memref<2x1x32xf32, #tpu.memory_space<vmem>>, vector<1x1x32xf32>
    %102 = vector.shape_cast %101 : vector<1x1x32xf32> to vector<1x32xf32>
    %cst_55 = arith.constant dense<0.000000e+00> : vector<32xf32>
    %103 = vector.multi_reduction <add>, %98, %cst_55 [1] : vector<32x32xf32> to vector<32xf32>
    %104 = vector.shape_cast %103 : vector<32xf32> to vector<32x1xf32>
    %cst_56 = arith.constant 3.200000e+01 : f32
    %105 = vector.broadcast %cst_56 : f32 to vector<32x1xf32>
    %106 = arith.divf %104, %105 : vector<32x1xf32>
    %107 = vector.broadcast %106 : vector<32x1xf32> to vector<32x32xf32>
    %108 = arith.subf %98, %107 : vector<32x32xf32>
    %109 = arith.mulf %108, %108 : vector<32x32xf32>
    %cst_57 = arith.constant dense<0.000000e+00> : vector<32xf32>
    %110 = vector.multi_reduction <add>, %109, %cst_57 [1] : vector<32x32xf32> to vector<32xf32>
    %111 = vector.shape_cast %110 : vector<32xf32> to vector<32x1xf32>
    %cst_58 = arith.constant 3.200000e+01 : f32
    %112 = vector.broadcast %cst_58 : f32 to vector<32x1xf32>
    %113 = arith.divf %111, %112 : vector<32x1xf32>
    %114 = vector.broadcast %106 : vector<32x1xf32> to vector<32x32xf32>
    %115 = arith.subf %98, %114 : vector<32x32xf32>
    %cst_59 = arith.constant 9.99999996E-13 : f32
    %116 = vector.broadcast %cst_59 : f32 to vector<32x1xf32>
    %117 = arith.addf %113, %116 : vector<32x1xf32>
    %118 = math.rsqrt %117 : vector<32x1xf32>
    %119 = vector.broadcast %118 : vector<32x1xf32> to vector<32x32xf32>
    %120 = arith.mulf %115, %119 : vector<32x32xf32>
    %121 = vector.broadcast %100 : vector<1x32xf32> to vector<32x32xf32>
    %122 = arith.mulf %120, %121 : vector<32x32xf32>
    %123 = vector.broadcast %102 : vector<1x32xf32> to vector<32x32xf32>
    %124 = arith.addf %122, %123 : vector<32x32xf32>
    %c0_60 = arith.constant 0 : index
    %c0_61 = arith.constant 0 : index
    %c0_62 = arith.constant 0 : index
    %125 = vector.load %arg17[%c0_60, %c0_61, %c0_62] : memref<2x32x64xf32, #tpu.memory_space<vmem>>, vector<1x32x64xf32>
    %126 = vector.shape_cast %125 : vector<1x32x64xf32> to vector<32x64xf32>
    %cst_63 = arith.constant dense<0.000000e+00> : vector<32x64xf32>
    %127 = tpu.matmul %124, %126, %cst_63 {dimension_numbers = #tpu.dot_dimension_numbers<[1], [0], [0], [1], [0, 0, 1, 1], [], []>} : vector<32x32xf32>, vector<32x64xf32>, vector<32x64xf32> -> vector<32x64xf32>
    %c0_64 = arith.constant 0 : index
    %c0_65 = arith.constant 0 : index
    %c0_66 = arith.constant 0 : index
    %128 = vector.load %arg18[%c0_64, %c0_65, %c0_66] : memref<2x1x64xf32, #tpu.memory_space<vmem>>, vector<1x1x64xf32>
    %129 = vector.shape_cast %128 : vector<1x1x64xf32> to vector<1x64xf32>
    %130 = vector.broadcast %129 : vector<1x64xf32> to vector<32x64xf32>
    %131 = arith.addf %127, %130 : vector<32x64xf32>
    %cst_67 = arith.constant 5.000000e-01 : f32
    %132 = vector.broadcast %cst_67 : f32 to vector<32x64xf32>
    %133 = arith.mulf %132, %131 : vector<32x64xf32>
    %cst_68 = arith.constant 4.471500e-02 : f32
    %134 = vector.broadcast %cst_68 : f32 to vector<32x64xf32>
    %135 = arith.mulf %134, %131 : vector<32x64xf32>
    %136 = arith.mulf %135, %131 : vector<32x64xf32>
    %137 = arith.mulf %136, %131 : vector<32x64xf32>
    %138 = arith.addf %131, %137 : vector<32x64xf32>
    %cst_69 = arith.constant 0.797884583 : f32
    %139 = vector.broadcast %cst_69 : f32 to vector<32x64xf32>
    %140 = arith.mulf %139, %138 : vector<32x64xf32>
    %141 = math.tanh %140 : vector<32x64xf32>
    %cst_70 = arith.constant 1.000000e+00 : f32
    %142 = vector.broadcast %cst_70 : f32 to vector<32x64xf32>
    %143 = arith.addf %142, %141 : vector<32x64xf32>
    %144 = arith.mulf %133, %143 : vector<32x64xf32>
    %c0_71 = arith.constant 0 : index
    %c0_72 = arith.constant 0 : index
    %c0_73 = arith.constant 0 : index
    %145 = vector.load %arg19[%c0_71, %c0_72, %c0_73] : memref<2x64x32xf32, #tpu.memory_space<vmem>>, vector<1x64x32xf32>
    %146 = vector.shape_cast %145 : vector<1x64x32xf32> to vector<64x32xf32>
    %cst_74 = arith.constant dense<0.000000e+00> : vector<32x32xf32>
    %147 = tpu.matmul %144, %146, %cst_74 {dimension_numbers = #tpu.dot_dimension_numbers<[1], [0], [0], [1], [0, 0, 1, 1], [], []>} : vector<32x64xf32>, vector<64x32xf32>, vector<32x32xf32> -> vector<32x32xf32>
    %c0_75 = arith.constant 0 : index
    %c0_76 = arith.constant 0 : index
    %c0_77 = arith.constant 0 : index
    %148 = vector.load %arg20[%c0_75, %c0_76, %c0_77] : memref<2x1x32xf32, #tpu.memory_space<vmem>>, vector<1x1x32xf32>
    %149 = vector.shape_cast %148 : vector<1x1x32xf32> to vector<1x32xf32>
    %150 = vector.broadcast %149 : vector<1x32xf32> to vector<32x32xf32>
    %151 = arith.addf %147, %150 : vector<32x32xf32>
    %152 = arith.addf %124, %151 : vector<32x32xf32>
    %c0_78 = arith.constant 0 : index
    %c0_79 = arith.constant 0 : index
    %c0_80 = arith.constant 0 : index
    %153 = vector.load %arg21[%c0_78, %c0_79, %c0_80] : memref<2x1x32xf32, #tpu.memory_space<vmem>>, vector<1x1x32xf32>
    %154 = vector.shape_cast %153 : vector<1x1x32xf32> to vector<1x32xf32>
    %c0_81 = arith.constant 0 : index
    %c0_82 = arith.constant 0 : index
    %c0_83 = arith.constant 0 : index
    %155 = vector.load %arg22[%c0_81, %c0_82, %c0_83] : memref<2x1x32xf32, #tpu.memory_space<vmem>>, vector<1x1x32xf32>
    %156 = vector.shape_cast %155 : vector<1x1x32xf32> to vector<1x32xf32>
    %cst_84 = arith.constant dense<0.000000e+00> : vector<32xf32>
    %157 = vector.multi_reduction <add>, %152, %cst_84 [1] : vector<32x32xf32> to vector<32xf32>
    %158 = vector.shape_cast %157 : vector<32xf32> to vector<32x1xf32>
    %cst_85 = arith.constant 3.200000e+01 : f32
    %159 = vector.broadcast %cst_85 : f32 to vector<32x1xf32>
    %160 = arith.divf %158, %159 : vector<32x1xf32>
    %161 = vector.broadcast %160 : vector<32x1xf32> to vector<32x32xf32>
    %162 = arith.subf %152, %161 : vector<32x32xf32>
    %163 = arith.mulf %162, %162 : vector<32x32xf32>
    %cst_86 = arith.constant dense<0.000000e+00> : vector<32xf32>
    %164 = vector.multi_reduction <add>, %163, %cst_86 [1] : vector<32x32xf32> to vector<32xf32>
    %165 = vector.shape_cast %164 : vector<32xf32> to vector<32x1xf32>
    %cst_87 = arith.constant 3.200000e+01 : f32
    %166 = vector.broadcast %cst_87 : f32 to vector<32x1xf32>
    %167 = arith.divf %165, %166 : vector<32x1xf32>
    %168 = vector.broadcast %160 : vector<32x1xf32> to vector<32x32xf32>
    %169 = arith.subf %152, %168 : vector<32x32xf32>
    %cst_88 = arith.constant 9.99999996E-13 : f32
    %170 = vector.broadcast %cst_88 : f32 to vector<32x1xf32>
    %171 = arith.addf %167, %170 : vector<32x1xf32>
    %172 = math.rsqrt %171 : vector<32x1xf32>
    %173 = vector.broadcast %172 : vector<32x1xf32> to vector<32x32xf32>
    %174 = arith.mulf %169, %173 : vector<32x32xf32>
    %175 = vector.broadcast %154 : vector<1x32xf32> to vector<32x32xf32>
    %176 = arith.mulf %174, %175 : vector<32x32xf32>
    %177 = vector.broadcast %156 : vector<1x32xf32> to vector<32x32xf32>
    %178 = arith.addf %176, %177 : vector<32x32xf32>
    %c1 = arith.constant 1 : index
    %c0_89 = arith.constant 0 : index
    %c0_90 = arith.constant 0 : index
    %179 = vector.load %arg7[%c1, %c0_89, %c0_90] : memref<2x32x32xf32, #tpu.memory_space<vmem>>, vector<1x32x32xf32>
    %180 = vector.shape_cast %179 : vector<1x32x32xf32> to vector<32x32xf32>
    %cst_91 = arith.constant dense<0.000000e+00> : vector<32x32xf32>
    %181 = tpu.matmul %178, %180, %cst_91 {dimension_numbers = #tpu.dot_dimension_numbers<[1], [0], [0], [1], [0, 0, 1, 1], [], []>} : vector<32x32xf32>, vector<32x32xf32>, vector<32x32xf32> -> vector<32x32xf32>
    %c1_92 = arith.constant 1 : index
    %c0_93 = arith.constant 0 : index
    %c0_94 = arith.constant 0 : index
    %182 = vector.load %arg8[%c1_92, %c0_93, %c0_94] : memref<2x1x32xf32, #tpu.memory_space<vmem>>, vector<1x1x32xf32>
    %183 = vector.shape_cast %182 : vector<1x1x32xf32> to vector<1x32xf32>
    %184 = vector.broadcast %183 : vector<1x32xf32> to vector<32x32xf32>
    %185 = arith.addf %181, %184 : vector<32x32xf32>
    %c1_95 = arith.constant 1 : index
    %c0_96 = arith.constant 0 : index
    %c0_97 = arith.constant 0 : index
    %186 = vector.load %arg9[%c1_95, %c0_96, %c0_97] : memref<2x32x32xf32, #tpu.memory_space<vmem>>, vector<1x32x32xf32>
    %187 = vector.shape_cast %186 : vector<1x32x32xf32> to vector<32x32xf32>
    %cst_98 = arith.constant dense<0.000000e+00> : vector<32x32xf32>
    %188 = tpu.matmul %178, %187, %cst_98 {dimension_numbers = #tpu.dot_dimension_numbers<[1], [0], [0], [1], [0, 0, 1, 1], [], []>} : vector<32x32xf32>, vector<32x32xf32>, vector<32x32xf32> -> vector<32x32xf32>
    %c1_99 = arith.constant 1 : index
    %c0_100 = arith.constant 0 : index
    %c0_101 = arith.constant 0 : index
    %189 = vector.load %arg10[%c1_99, %c0_100, %c0_101] : memref<2x1x32xf32, #tpu.memory_space<vmem>>, vector<1x1x32xf32>
    %190 = vector.shape_cast %189 : vector<1x1x32xf32> to vector<1x32xf32>
    %191 = vector.broadcast %190 : vector<1x32xf32> to vector<32x32xf32>
    %192 = arith.addf %188, %191 : vector<32x32xf32>
    %c1_102 = arith.constant 1 : index
    %c0_103 = arith.constant 0 : index
    %c0_104 = arith.constant 0 : index
    %193 = vector.load %arg11[%c1_102, %c0_103, %c0_104] : memref<2x32x32xf32, #tpu.memory_space<vmem>>, vector<1x32x32xf32>
    %194 = vector.shape_cast %193 : vector<1x32x32xf32> to vector<32x32xf32>
    %cst_105 = arith.constant dense<0.000000e+00> : vector<32x32xf32>
    %195 = tpu.matmul %178, %194, %cst_105 {dimension_numbers = #tpu.dot_dimension_numbers<[1], [0], [0], [1], [0, 0, 1, 1], [], []>} : vector<32x32xf32>, vector<32x32xf32>, vector<32x32xf32> -> vector<32x32xf32>
    %c1_106 = arith.constant 1 : index
    %c0_107 = arith.constant 0 : index
    %c0_108 = arith.constant 0 : index
    %196 = vector.load %arg12[%c1_106, %c0_107, %c0_108] : memref<2x1x32xf32, #tpu.memory_space<vmem>>, vector<1x1x32xf32>
    %197 = vector.shape_cast %196 : vector<1x1x32xf32> to vector<1x32xf32>
    %198 = vector.broadcast %197 : vector<1x32xf32> to vector<32x32xf32>
    %199 = arith.addf %195, %198 : vector<32x32xf32>
    %200 = vector.shape_cast %185 : vector<32x32xf32> to vector<2x16x32xf32>
    %201 = vector.shape_cast %192 : vector<32x32xf32> to vector<2x16x32xf32>
    %202 = vector.shape_cast %199 : vector<32x32xf32> to vector<2x16x32xf32>
    %203 = vector.extract_strided_slice %200 {offsets = [0, 0, 0], sizes = [2, 16, 16], strides = [1, 1, 1]} : vector<2x16x32xf32> to vector<2x16x16xf32>
    %204 = vector.extract_strided_slice %201 {offsets = [0, 0, 0], sizes = [2, 16, 16], strides = [1, 1, 1]} : vector<2x16x32xf32> to vector<2x16x16xf32>
    %205 = vector.extract_strided_slice %202 {offsets = [0, 0, 0], sizes = [2, 16, 16], strides = [1, 1, 1]} : vector<2x16x32xf32> to vector<2x16x16xf32>
    "tpu.trace_start"() <{level = 10 : i32, message = "bqd,bkd->bqk"}> : () -> ()
    %cst_109 = arith.constant dense<0.000000e+00> : vector<2x16x16xf32>
    %206 = tpu.matmul %203, %204, %cst_109 {dimension_numbers = #tpu.dot_dimension_numbers<[2], [2], [1], [1], [0, 0, 0, 1, 1, 1], [0], [0]>} : vector<2x16x16xf32>, vector<2x16x16xf32>, vector<2x16x16xf32> -> vector<2x16x16xf32>
    "tpu.trace_stop"() : () -> ()
    %cst_110 = arith.constant 2.500000e-01 : f32
    %207 = vector.broadcast %cst_110 : f32 to vector<2x16x16xf32>
    %208 = arith.mulf %206, %207 : vector<2x16x16xf32>
    %209 = vector.broadcast %26 : vector<2x1x16xf32> to vector<2x16x16xf32>
    %210 = arith.addf %208, %209 : vector<2x16x16xf32>
    %cst_111 = arith.constant dense<0xFF800000> : vector<2x16xf32>
    %211 = vector.multi_reduction <maximumf>, %210, %cst_111 [2] : vector<2x16x16xf32> to vector<2x16xf32>
    %212 = vector.shape_cast %211 : vector<2x16xf32> to vector<2x16x1xf32>
    %213 = vector.broadcast %212 : vector<2x16x1xf32> to vector<2x16x16xf32>
    %214 = arith.subf %210, %213 : vector<2x16x16xf32>
    %215 = math.exp %214 : vector<2x16x16xf32>
    %cst_112 = arith.constant dense<0.000000e+00> : vector<2x16xf32>
    %216 = vector.multi_reduction <add>, %215, %cst_112 [2] : vector<2x16x16xf32> to vector<2x16xf32>
    %217 = vector.shape_cast %216 : vector<2x16xf32> to vector<2x16x1xf32>
    %218 = tpu.reciprocal %217 {approx = true} : vector<2x16x1xf32> -> vector<2x16x1xf32>
    %219 = vector.broadcast %218 : vector<2x16x1xf32> to vector<2x16x16xf32>
    %220 = arith.mulf %215, %219 : vector<2x16x16xf32>
    "tpu.trace_start"() <{level = 10 : i32, message = "bqk,bkd->bqd"}> : () -> ()
    %cst_113 = arith.constant dense<0.000000e+00> : vector<2x16x16xf32>
    %221 = tpu.matmul %220, %205, %cst_113 {dimension_numbers = #tpu.dot_dimension_numbers<[2], [1], [1], [2], [0, 0, 0, 1, 1, 2], [0], [0]>} : vector<2x16x16xf32>, vector<2x16x16xf32>, vector<2x16x16xf32> -> vector<2x16x16xf32>
    "tpu.trace_stop"() : () -> ()
    %222 = vector.extract_strided_slice %200 {offsets = [0, 0, 16], sizes = [2, 16, 16], strides = [1, 1, 1]} : vector<2x16x32xf32> to vector<2x16x16xf32>
    %223 = vector.extract_strided_slice %201 {offsets = [0, 0, 16], sizes = [2, 16, 16], strides = [1, 1, 1]} : vector<2x16x32xf32> to vector<2x16x16xf32>
    %224 = vector.extract_strided_slice %202 {offsets = [0, 0, 16], sizes = [2, 16, 16], strides = [1, 1, 1]} : vector<2x16x32xf32> to vector<2x16x16xf32>
    "tpu.trace_start"() <{level = 10 : i32, message = "bqd,bkd->bqk"}> : () -> ()
    %cst_114 = arith.constant dense<0.000000e+00> : vector<2x16x16xf32>
    %225 = tpu.matmul %222, %223, %cst_114 {dimension_numbers = #tpu.dot_dimension_numbers<[2], [2], [1], [1], [0, 0, 0, 1, 1, 1], [0], [0]>} : vector<2x16x16xf32>, vector<2x16x16xf32>, vector<2x16x16xf32> -> vector<2x16x16xf32>
    "tpu.trace_stop"() : () -> ()
    %cst_115 = arith.constant 2.500000e-01 : f32
    %226 = vector.broadcast %cst_115 : f32 to vector<2x16x16xf32>
    %227 = arith.mulf %225, %226 : vector<2x16x16xf32>
    %228 = vector.broadcast %26 : vector<2x1x16xf32> to vector<2x16x16xf32>
    %229 = arith.addf %227, %228 : vector<2x16x16xf32>
    %cst_116 = arith.constant dense<0xFF800000> : vector<2x16xf32>
    %230 = vector.multi_reduction <maximumf>, %229, %cst_116 [2] : vector<2x16x16xf32> to vector<2x16xf32>
    %231 = vector.shape_cast %230 : vector<2x16xf32> to vector<2x16x1xf32>
    %232 = vector.broadcast %231 : vector<2x16x1xf32> to vector<2x16x16xf32>
    %233 = arith.subf %229, %232 : vector<2x16x16xf32>
    %234 = math.exp %233 : vector<2x16x16xf32>
    %cst_117 = arith.constant dense<0.000000e+00> : vector<2x16xf32>
    %235 = vector.multi_reduction <add>, %234, %cst_117 [2] : vector<2x16x16xf32> to vector<2x16xf32>
    %236 = vector.shape_cast %235 : vector<2x16xf32> to vector<2x16x1xf32>
    %237 = tpu.reciprocal %236 {approx = true} : vector<2x16x1xf32> -> vector<2x16x1xf32>
    %238 = vector.broadcast %237 : vector<2x16x1xf32> to vector<2x16x16xf32>
    %239 = arith.mulf %234, %238 : vector<2x16x16xf32>
    "tpu.trace_start"() <{level = 10 : i32, message = "bqk,bkd->bqd"}> : () -> ()
    %cst_118 = arith.constant dense<0.000000e+00> : vector<2x16x16xf32>
    %240 = tpu.matmul %239, %224, %cst_118 {dimension_numbers = #tpu.dot_dimension_numbers<[2], [1], [1], [2], [0, 0, 0, 1, 1, 2], [0], [0]>} : vector<2x16x16xf32>, vector<2x16x16xf32>, vector<2x16x16xf32> -> vector<2x16x16xf32>
    "tpu.trace_stop"() : () -> ()
    %241 = tpu.concatenate %221, %240 in 2 : vector<2x16x16xf32>, vector<2x16x16xf32> -> vector<2x16x32xf32>
    %242 = vector.shape_cast %241 : vector<2x16x32xf32> to vector<32x32xf32>
    %c1_119 = arith.constant 1 : index
    %c0_120 = arith.constant 0 : index
    %c0_121 = arith.constant 0 : index
    %243 = vector.load %arg13[%c1_119, %c0_120, %c0_121] : memref<2x32x32xf32, #tpu.memory_space<vmem>>, vector<1x32x32xf32>
    %244 = vector.shape_cast %243 : vector<1x32x32xf32> to vector<32x32xf32>
    %cst_122 = arith.constant dense<0.000000e+00> : vector<32x32xf32>
    %245 = tpu.matmul %242, %244, %cst_122 {dimension_numbers = #tpu.dot_dimension_numbers<[1], [0], [0], [1], [0, 0, 1, 1], [], []>} : vector<32x32xf32>, vector<32x32xf32>, vector<32x32xf32> -> vector<32x32xf32>
    %c1_123 = arith.constant 1 : index
    %c0_124 = arith.constant 0 : index
    %c0_125 = arith.constant 0 : index
    %246 = vector.load %arg14[%c1_123, %c0_124, %c0_125] : memref<2x1x32xf32, #tpu.memory_space<vmem>>, vector<1x1x32xf32>
    %247 = vector.shape_cast %246 : vector<1x1x32xf32> to vector<1x32xf32>
    %248 = vector.broadcast %247 : vector<1x32xf32> to vector<32x32xf32>
    %249 = arith.addf %245, %248 : vector<32x32xf32>
    %250 = arith.addf %178, %249 : vector<32x32xf32>
    %c1_126 = arith.constant 1 : index
    %c0_127 = arith.constant 0 : index
    %c0_128 = arith.constant 0 : index
    %251 = vector.load %arg15[%c1_126, %c0_127, %c0_128] : memref<2x1x32xf32, #tpu.memory_space<vmem>>, vector<1x1x32xf32>
    %252 = vector.shape_cast %251 : vector<1x1x32xf32> to vector<1x32xf32>
    %c1_129 = arith.constant 1 : index
    %c0_130 = arith.constant 0 : index
    %c0_131 = arith.constant 0 : index
    %253 = vector.load %arg16[%c1_129, %c0_130, %c0_131] : memref<2x1x32xf32, #tpu.memory_space<vmem>>, vector<1x1x32xf32>
    %254 = vector.shape_cast %253 : vector<1x1x32xf32> to vector<1x32xf32>
    %cst_132 = arith.constant dense<0.000000e+00> : vector<32xf32>
    %255 = vector.multi_reduction <add>, %250, %cst_132 [1] : vector<32x32xf32> to vector<32xf32>
    %256 = vector.shape_cast %255 : vector<32xf32> to vector<32x1xf32>
    %cst_133 = arith.constant 3.200000e+01 : f32
    %257 = vector.broadcast %cst_133 : f32 to vector<32x1xf32>
    %258 = arith.divf %256, %257 : vector<32x1xf32>
    %259 = vector.broadcast %258 : vector<32x1xf32> to vector<32x32xf32>
    %260 = arith.subf %250, %259 : vector<32x32xf32>
    %261 = arith.mulf %260, %260 : vector<32x32xf32>
    %cst_134 = arith.constant dense<0.000000e+00> : vector<32xf32>
    %262 = vector.multi_reduction <add>, %261, %cst_134 [1] : vector<32x32xf32> to vector<32xf32>
    %263 = vector.shape_cast %262 : vector<32xf32> to vector<32x1xf32>
    %cst_135 = arith.constant 3.200000e+01 : f32
    %264 = vector.broadcast %cst_135 : f32 to vector<32x1xf32>
    %265 = arith.divf %263, %264 : vector<32x1xf32>
    %266 = vector.broadcast %258 : vector<32x1xf32> to vector<32x32xf32>
    %267 = arith.subf %250, %266 : vector<32x32xf32>
    %cst_136 = arith.constant 9.99999996E-13 : f32
    %268 = vector.broadcast %cst_136 : f32 to vector<32x1xf32>
    %269 = arith.addf %265, %268 : vector<32x1xf32>
    %270 = math.rsqrt %269 : vector<32x1xf32>
    %271 = vector.broadcast %270 : vector<32x1xf32> to vector<32x32xf32>
    %272 = arith.mulf %267, %271 : vector<32x32xf32>
    %273 = vector.broadcast %252 : vector<1x32xf32> to vector<32x32xf32>
    %274 = arith.mulf %272, %273 : vector<32x32xf32>
    %275 = vector.broadcast %254 : vector<1x32xf32> to vector<32x32xf32>
    %276 = arith.addf %274, %275 : vector<32x32xf32>
    %c1_137 = arith.constant 1 : index
    %c0_138 = arith.constant 0 : index
    %c0_139 = arith.constant 0 : index
    %277 = vector.load %arg17[%c1_137, %c0_138, %c0_139] : memref<2x32x64xf32, #tpu.memory_space<vmem>>, vector<1x32x64xf32>
    %278 = vector.shape_cast %277 : vector<1x32x64xf32> to vector<32x64xf32>
    %cst_140 = arith.constant dense<0.000000e+00> : vector<32x64xf32>
    %279 = tpu.matmul %276, %278, %cst_140 {dimension_numbers = #tpu.dot_dimension_numbers<[1], [0], [0], [1], [0, 0, 1, 1], [], []>} : vector<32x32xf32>, vector<32x64xf32>, vector<32x64xf32> -> vector<32x64xf32>
    %c1_141 = arith.constant 1 : index
    %c0_142 = arith.constant 0 : index
    %c0_143 = arith.constant 0 : index
    %280 = vector.load %arg18[%c1_141, %c0_142, %c0_143] : memref<2x1x64xf32, #tpu.memory_space<vmem>>, vector<1x1x64xf32>
    %281 = vector.shape_cast %280 : vector<1x1x64xf32> to vector<1x64xf32>
    %282 = vector.broadcast %281 : vector<1x64xf32> to vector<32x64xf32>
    %283 = arith.addf %279, %282 : vector<32x64xf32>
    %cst_144 = arith.constant 5.000000e-01 : f32
    %284 = vector.broadcast %cst_144 : f32 to vector<32x64xf32>
    %285 = arith.mulf %284, %283 : vector<32x64xf32>
    %cst_145 = arith.constant 4.471500e-02 : f32
    %286 = vector.broadcast %cst_145 : f32 to vector<32x64xf32>
    %287 = arith.mulf %286, %283 : vector<32x64xf32>
    %288 = arith.mulf %287, %283 : vector<32x64xf32>
    %289 = arith.mulf %288, %283 : vector<32x64xf32>
    %290 = arith.addf %283, %289 : vector<32x64xf32>
    %cst_146 = arith.constant 0.797884583 : f32
    %291 = vector.broadcast %cst_146 : f32 to vector<32x64xf32>
    %292 = arith.mulf %291, %290 : vector<32x64xf32>
    %293 = math.tanh %292 : vector<32x64xf32>
    %cst_147 = arith.constant 1.000000e+00 : f32
    %294 = vector.broadcast %cst_147 : f32 to vector<32x64xf32>
    %295 = arith.addf %294, %293 : vector<32x64xf32>
    %296 = arith.mulf %285, %295 : vector<32x64xf32>
    %c1_148 = arith.constant 1 : index
    %c0_149 = arith.constant 0 : index
    %c0_150 = arith.constant 0 : index
    %297 = vector.load %arg19[%c1_148, %c0_149, %c0_150] : memref<2x64x32xf32, #tpu.memory_space<vmem>>, vector<1x64x32xf32>
    %298 = vector.shape_cast %297 : vector<1x64x32xf32> to vector<64x32xf32>
    %cst_151 = arith.constant dense<0.000000e+00> : vector<32x32xf32>
    %299 = tpu.matmul %296, %298, %cst_151 {dimension_numbers = #tpu.dot_dimension_numbers<[1], [0], [0], [1], [0, 0, 1, 1], [], []>} : vector<32x64xf32>, vector<64x32xf32>, vector<32x32xf32> -> vector<32x32xf32>
    %c1_152 = arith.constant 1 : index
    %c0_153 = arith.constant 0 : index
    %c0_154 = arith.constant 0 : index
    %300 = vector.load %arg20[%c1_152, %c0_153, %c0_154] : memref<2x1x32xf32, #tpu.memory_space<vmem>>, vector<1x1x32xf32>
    %301 = vector.shape_cast %300 : vector<1x1x32xf32> to vector<1x32xf32>
    %302 = vector.broadcast %301 : vector<1x32xf32> to vector<32x32xf32>
    %303 = arith.addf %299, %302 : vector<32x32xf32>
    %304 = arith.addf %276, %303 : vector<32x32xf32>
    %c1_155 = arith.constant 1 : index
    %c0_156 = arith.constant 0 : index
    %c0_157 = arith.constant 0 : index
    %305 = vector.load %arg21[%c1_155, %c0_156, %c0_157] : memref<2x1x32xf32, #tpu.memory_space<vmem>>, vector<1x1x32xf32>
    %306 = vector.shape_cast %305 : vector<1x1x32xf32> to vector<1x32xf32>
    %c1_158 = arith.constant 1 : index
    %c0_159 = arith.constant 0 : index
    %c0_160 = arith.constant 0 : index
    %307 = vector.load %arg22[%c1_158, %c0_159, %c0_160] : memref<2x1x32xf32, #tpu.memory_space<vmem>>, vector<1x1x32xf32>
    %308 = vector.shape_cast %307 : vector<1x1x32xf32> to vector<1x32xf32>
    %cst_161 = arith.constant dense<0.000000e+00> : vector<32xf32>
    %309 = vector.multi_reduction <add>, %304, %cst_161 [1] : vector<32x32xf32> to vector<32xf32>
    %310 = vector.shape_cast %309 : vector<32xf32> to vector<32x1xf32>
    %cst_162 = arith.constant 3.200000e+01 : f32
    %311 = vector.broadcast %cst_162 : f32 to vector<32x1xf32>
    %312 = arith.divf %310, %311 : vector<32x1xf32>
    %313 = vector.broadcast %312 : vector<32x1xf32> to vector<32x32xf32>
    %314 = arith.subf %304, %313 : vector<32x32xf32>
    %315 = arith.mulf %314, %314 : vector<32x32xf32>
    %cst_163 = arith.constant dense<0.000000e+00> : vector<32xf32>
    %316 = vector.multi_reduction <add>, %315, %cst_163 [1] : vector<32x32xf32> to vector<32xf32>
    %317 = vector.shape_cast %316 : vector<32xf32> to vector<32x1xf32>
    %cst_164 = arith.constant 3.200000e+01 : f32
    %318 = vector.broadcast %cst_164 : f32 to vector<32x1xf32>
    %319 = arith.divf %317, %318 : vector<32x1xf32>
    %320 = vector.broadcast %312 : vector<32x1xf32> to vector<32x32xf32>
    %321 = arith.subf %304, %320 : vector<32x32xf32>
    %cst_165 = arith.constant 9.99999996E-13 : f32
    %322 = vector.broadcast %cst_165 : f32 to vector<32x1xf32>
    %323 = arith.addf %319, %322 : vector<32x1xf32>
    %324 = math.rsqrt %323 : vector<32x1xf32>
    %325 = vector.broadcast %324 : vector<32x1xf32> to vector<32x32xf32>
    %326 = arith.mulf %321, %325 : vector<32x32xf32>
    %327 = vector.broadcast %306 : vector<1x32xf32> to vector<32x32xf32>
    %328 = arith.mulf %326, %327 : vector<32x32xf32>
    %329 = vector.broadcast %308 : vector<1x32xf32> to vector<32x32xf32>
    %330 = arith.addf %328, %329 : vector<32x32xf32>
    %c0_166 = arith.constant 0 : index
    %c0_167 = arith.constant 0 : index
    %331 = vector.load %arg2[%c0_166, %c0_167] : memref<2x32xf32, #tpu.memory_space<vmem>>, vector<2x32xf32>
    %cst_168 = arith.constant dense<0.000000e+00> : vector<2x32xf32>
    %332 = tpu.matmul %331, %330, %cst_168 {dimension_numbers = #tpu.dot_dimension_numbers<[1], [0], [0], [1], [0, 0, 1, 1], [], []>} : vector<2x32xf32>, vector<32x32xf32>, vector<2x32xf32> -> vector<2x32xf32>
    %c0_169 = arith.constant 0 : index
    %c0_170 = arith.constant 0 : index
    %333 = vector.load %arg23[%c0_169, %c0_170] : memref<32x32xf32, #tpu.memory_space<vmem>>, vector<32x32xf32>
    %cst_171 = arith.constant dense<0.000000e+00> : vector<2x32xf32>
    %334 = tpu.matmul %332, %333, %cst_171 {dimension_numbers = #tpu.dot_dimension_numbers<[1], [0], [0], [1], [0, 0, 1, 1], [], []>} : vector<2x32xf32>, vector<32x32xf32>, vector<2x32xf32> -> vector<2x32xf32>
    %c0_172 = arith.constant 0 : index
    %c0_173 = arith.constant 0 : index
    %335 = vector.load %arg24[%c0_172, %c0_173] : memref<1x32xf32, #tpu.memory_space<vmem>>, vector<1x32xf32>
    %336 = vector.broadcast %335 : vector<1x32xf32> to vector<2x32xf32>
    %337 = arith.addf %334, %336 : vector<2x32xf32>
    %cst_174 = arith.constant 5.000000e-01 : f32
    %338 = vector.broadcast %cst_174 : f32 to vector<2x32xf32>
    %339 = arith.mulf %338, %337 : vector<2x32xf32>
    %cst_175 = arith.constant 4.471500e-02 : f32
    %340 = vector.broadcast %cst_175 : f32 to vector<2x32xf32>
    %341 = arith.mulf %340, %337 : vector<2x32xf32>
    %342 = arith.mulf %341, %337 : vector<2x32xf32>
    %343 = arith.mulf %342, %337 : vector<2x32xf32>
    %344 = arith.addf %337, %343 : vector<2x32xf32>
    %cst_176 = arith.constant 0.797884583 : f32
    %345 = vector.broadcast %cst_176 : f32 to vector<2x32xf32>
    %346 = arith.mulf %345, %344 : vector<2x32xf32>
    %347 = math.tanh %346 : vector<2x32xf32>
    %cst_177 = arith.constant 1.000000e+00 : f32
    %348 = vector.broadcast %cst_177 : f32 to vector<2x32xf32>
    %349 = arith.addf %348, %347 : vector<2x32xf32>
    %350 = arith.mulf %339, %349 : vector<2x32xf32>
    %c0_178 = arith.constant 0 : index
    %c0_179 = arith.constant 0 : index
    %351 = vector.load %arg25[%c0_178, %c0_179] : memref<1x32xf32, #tpu.memory_space<vmem>>, vector<1x32xf32>
    %c0_180 = arith.constant 0 : index
    %c0_181 = arith.constant 0 : index
    %352 = vector.load %arg26[%c0_180, %c0_181] : memref<1x32xf32, #tpu.memory_space<vmem>>, vector<1x32xf32>
    %cst_182 = arith.constant dense<0.000000e+00> : vector<2xf32>
    %353 = vector.multi_reduction <add>, %350, %cst_182 [1] : vector<2x32xf32> to vector<2xf32>
    %354 = vector.shape_cast %353 : vector<2xf32> to vector<2x1xf32>
    %cst_183 = arith.constant 3.200000e+01 : f32
    %355 = vector.broadcast %cst_183 : f32 to vector<2x1xf32>
    %356 = arith.divf %354, %355 : vector<2x1xf32>
    %357 = vector.broadcast %356 : vector<2x1xf32> to vector<2x32xf32>
    %358 = arith.subf %350, %357 : vector<2x32xf32>
    %359 = arith.mulf %358, %358 : vector<2x32xf32>
    %cst_184 = arith.constant dense<0.000000e+00> : vector<2xf32>
    %360 = vector.multi_reduction <add>, %359, %cst_184 [1] : vector<2x32xf32> to vector<2xf32>
    %361 = vector.shape_cast %360 : vector<2xf32> to vector<2x1xf32>
    %cst_185 = arith.constant 3.200000e+01 : f32
    %362 = vector.broadcast %cst_185 : f32 to vector<2x1xf32>
    %363 = arith.divf %361, %362 : vector<2x1xf32>
    %364 = vector.broadcast %356 : vector<2x1xf32> to vector<2x32xf32>
    %365 = arith.subf %350, %364 : vector<2x32xf32>
    %cst_186 = arith.constant 9.99999996E-13 : f32
    %366 = vector.broadcast %cst_186 : f32 to vector<2x1xf32>
    %367 = arith.addf %363, %366 : vector<2x1xf32>
    %368 = math.rsqrt %367 : vector<2x1xf32>
    %369 = vector.broadcast %368 : vector<2x1xf32> to vector<2x32xf32>
    %370 = arith.mulf %365, %369 : vector<2x32xf32>
    %371 = vector.broadcast %351 : vector<1x32xf32> to vector<2x32xf32>
    %372 = arith.mulf %370, %371 : vector<2x32xf32>
    %373 = vector.broadcast %352 : vector<1x32xf32> to vector<2x32xf32>
    %374 = arith.addf %372, %373 : vector<2x32xf32>
    %c0_187 = arith.constant 0 : index
    %c0_188 = arith.constant 0 : index
    %375 = vector.load %arg27[%c0_187, %c0_188] : memref<32x128xf32, #tpu.memory_space<vmem>>, vector<32x128xf32>
    %cst_189 = arith.constant dense<0.000000e+00> : vector<2x128xf32>
    %376 = tpu.matmul %374, %375, %cst_189 {dimension_numbers = #tpu.dot_dimension_numbers<[1], [0], [0], [1], [0, 0, 1, 1], [], []>} : vector<2x32xf32>, vector<32x128xf32>, vector<2x128xf32> -> vector<2x128xf32>
    %c0_190 = arith.constant 0 : index
    %c0_191 = arith.constant 0 : index
    %377 = vector.load %arg28[%c0_190, %c0_191] : memref<1x128xf32, #tpu.memory_space<vmem>>, vector<1x128xf32>
    %378 = vector.broadcast %377 : vector<1x128xf32> to vector<2x128xf32>
    %379 = arith.addf %376, %378 : vector<2x128xf32>
    %c0_192 = arith.constant 0 : index
    %c0_193 = arith.constant 0 : index
    %380 = vector.load %arg3[%c0_192, %c0_193] : memref<128x2xf32, #tpu.memory_space<vmem>>, vector<128x2xf32>
    %cst_194 = arith.constant dense<0.000000e+00> : vector<2x2xf32>
    %381 = tpu.matmul %379, %380, %cst_194 {dimension_numbers = #tpu.dot_dimension_numbers<[1], [0], [0], [1], [0, 0, 1, 1], [], []>} : vector<2x128xf32>, vector<128x2xf32>, vector<2x2xf32> -> vector<2x2xf32>
    %cst_195 = arith.constant dense<0xFF800000> : vector<2xf32>
    %382 = vector.multi_reduction <maximumf>, %381, %cst_195 [1] : vector<2x2xf32> to vector<2xf32>
    %383 = vector.shape_cast %382 : vector<2xf32> to vector<2x1xf32>
    %384 = vector.broadcast %383 : vector<2x1xf32> to vector<2x2xf32>
    %385 = arith.subf %381, %384 : vector<2x2xf32>
    %386 = math.exp %385 : vector<2x2xf32>
    %cst_196 = arith.constant dense<0.000000e+00> : vector<2xf32>
    %387 = vector.multi_reduction <add>, %386, %cst_196 [1] : vector<2x2xf32> to vector<2xf32>
    %388 = vector.shape_cast %387 : vector<2xf32> to vector<2x1xf32>
    %389 = vector.broadcast %388 : vector<2x1xf32> to vector<2x2xf32>
    %390 = arith.divf %386, %389 : vector<2x2xf32>
    %c0_197 = arith.constant 0 : index
    %c0_198 = arith.constant 0 : index
    %391 = vector.load %arg30[%c0_197, %c0_198] : memref<2x2xf32, #tpu.memory_space<vmem>>, vector<2x2xf32>
    tpu.vector_store %arg30[%c0_197, %c0_198], %390 {strides = array<i32>} : memref<2x2xf32, #tpu.memory_space<vmem>>, vector<2x2xf32>,
    %392 = math.log %388 : vector<2x1xf32>
    %393 = arith.addf %392, %383 : vector<2x1xf32>
    %c0_199 = arith.constant 0 : index
    %c0_200 = arith.constant 0 : index
    %394 = vector.load %arg4[%c0_199, %c0_200] : memref<2x2xf32, #tpu.memory_space<vmem>>, vector<2x2xf32>
    %395 = arith.mulf %381, %394 : vector<2x2xf32>
    %cst_201 = arith.constant dense<0.000000e+00> : vector<2xf32>
    %396 = vector.multi_reduction <add>, %395, %cst_201 [1] : vector<2x2xf32> to vector<2xf32>
    %397 = vector.shape_cast %396 : vector<2xf32> to vector<2x1xf32>
    %398 = arith.subf %393, %397 : vector<2x1xf32>
    %cst_202 = arith.constant dense<0.000000e+00> : vector<1xf32>
    %399 = vector.multi_reduction <add>, %398, %cst_202 [0] : vector<2x1xf32> to vector<1xf32>
    %400 = vector.shape_cast %399 : vector<1xf32> to vector<1x1xf32>
    %cst_203 = arith.constant 2.000000e+00 : f32
    %401 = vector.broadcast %cst_203 : f32 to vector<1x1xf32>
    %402 = arith.divf %400, %401 : vector<1x1xf32>
    %c0_204 = arith.constant 0 : index
    %c0_205 = arith.constant 0 : index
    %403 = vector.load %arg29[%c0_204, %c0_205] : memref<1x1xf32, #tpu.memory_space<vmem>>, vector<1x1xf32>
    tpu.vector_store %arg29[%c0_204, %c0_205], %402 {strides = array<i32>} : memref<1x1xf32, #tpu.memory_space<vmem>>, vector<1x1xf32>,
    return
  }
}

</mosaic_0001>

<llo_original>
// kernel: bert_prompt4nr_forward.1
$region0: #{bert_prompt4nr_forward.1}
  #allocation0 [shape = 'u32[]', space=smem, size = 0x4, offset = 0x4, fixed_abs, tag = 'smem constant byte address 0x4 - core index']
  #allocation1 [shape = 'u32[144,128]{1,0:T(1,128)}', space=vmem, size = 0x12000, scoped, tag = 'internal scratch']
  %s0 = inlined_call_operand.smem [shape: u32[31], index: -1, kind: input, shape index: {}]
  %s1 = sld [smem:[%s0]]
  %s2 = scalar_lea.smem %s0, 1
  %s3 = sld [smem:[%s2]]
  %s4 = scalar_lea.smem %s0, 2
  %s5 = sld [smem:[%s4]]
  %s6 = scalar_lea.smem %s0, 3
  %s7 = sld [smem:[%s6]]
  %s8 = scalar_lea.smem %s0, 4
  %s9 = sld [smem:[%s8]]
  %s10 = scalar_lea.smem %s0, 5
  %s11 = sld [smem:[%s10]]
  %s12 = scalar_lea.smem %s0, 6
  %s13 = sld [smem:[%s12]]
  %s14 = scalar_lea.smem %s0, 7
  %s15 = sld [smem:[%s14]]
  %s16 = scalar_lea.smem %s0, 8
  %s17 = sld [smem:[%s16]]
  %s18 = scalar_lea.smem %s0, 9
  %s19 = sld [smem:[%s18]]
  %s20 = scalar_lea.smem %s0, 10
  %s21 = sld [smem:[%s20]]
  %s22 = scalar_lea.smem %s0, 11
  %s23 = sld [smem:[%s22]]
  %s24 = scalar_lea.smem %s0, 12
  %s25 = sld [smem:[%s24]]
  %s26 = scalar_lea.smem %s0, 13
  %s27 = sld [smem:[%s26]]
  %s28 = scalar_lea.smem %s0, 14
  %s29 = sld [smem:[%s28]]
  %s30 = scalar_lea.smem %s0, 15
  %s31 = sld [smem:[%s30]]
  %s32 = scalar_lea.smem %s0, 16
  %s33 = sld [smem:[%s32]]
  %s34 = scalar_lea.smem %s0, 17
  %s35 = sld [smem:[%s34]]
  %s36 = scalar_lea.smem %s0, 18
  %s37 = sld [smem:[%s36]]
  %s38 = scalar_lea.smem %s0, 19
  %s39 = sld [smem:[%s38]]
  %s40 = scalar_lea.smem %s0, 20
  %s41 = sld [smem:[%s40]]
  %s42 = scalar_lea.smem %s0, 21
  %s43 = sld [smem:[%s42]]
  %s44 = scalar_lea.smem %s0, 22
  %s45 = sld [smem:[%s44]]
  %s46 = scalar_lea.smem %s0, 23
  %s47 = sld [smem:[%s46]]
  %s48 = scalar_lea.smem %s0, 24
  %s49 = sld [smem:[%s48]]
  %s50 = scalar_lea.smem %s0, 25
  %s51 = sld [smem:[%s50]]
  %s52 = scalar_lea.smem %s0, 26
  %s53 = sld [smem:[%s52]]
  %s54 = scalar_lea.smem %s0, 27
  %s55 = sld [smem:[%s54]]
  %s56 = scalar_lea.smem %s0, 28
  %s57 = sld [smem:[%s56]]
  %s58 = scalar_lea.smem %s0, 29
  %s59 = sld [smem:[%s58]]
  %s60 = scalar_lea.smem %s0, 30
  %s61 = sld [smem:[%s60]]
  %62 = xla_tuple %s59, %s61
  %s63 = sld [smem:[#allocation0]]
  $region134: #{bert_prompt4nr_forward.1} parent=0
    _
  %s65 = ssub.s32 1, %s63
  %s66 = scalar_select 0, %s65, %s63
  $region1: #{bert_prompt4nr_forward.1} parent=0
    #allocation2 [shape = 'u8[512]{0}', space=vmem, size = 0x400, scoped, tag = 'output window, operand 0, single buffered']
    #allocation3 [shape = 's32[1]{0}', space=sflag, size = 0x4, scoped, tag = 'scoped memory for bert_prompt4nr_forward.1']
    #allocation4 [shape = 'u8[1024]{0}', space=vmem, size = 0x400, scoped, tag = 'output window, operand 1, single buffered']
    #allocation5 [shape = 's32[1]{0}', space=sflag, size = 0x4, scoped, tag = 'scoped memory for bert_prompt4nr_forward.1']
    %67 = vsyncpa [#allocation3], 0
    %68 = vsyncpa [#allocation5], 0
    // Predicated region
    $region2: #{bert_prompt4nr_forward.1} parent=1 // pred_check
      _
    $region3: #{bert_prompt4nr_forward.1} parent=1 // pred_check_branch
      %70 = sbr.rel (0) target = $region5
    $region4: #{bert_prompt4nr_forward.1} parent=1 // pred_region
      _
    $region5: #{bert_prompt4nr_forward.1} parent=1 // pred_fallthru
      _
    // Predicated region
    $region6: #{bert_prompt4nr_forward.1} parent=1 // pred_check
      _
    $region7: #{bert_prompt4nr_forward.1} parent=1 // pred_check_branch
      %72 = sbr.rel (0) target = $region9
    $region8: #{bert_prompt4nr_forward.1} parent=1 // pred_region
      _
    $region9: #{bert_prompt4nr_forward.1} parent=1 // pred_fallthru
      _
    // Predicated region
    $region10: #{bert_prompt4nr_forward.1} parent=1 // pred_check
      _
    $region11: #{bert_prompt4nr_forward.1} parent=1 // pred_check_branch
      %74 = sbr.rel (0) target = $region13
    $region12: #{bert_prompt4nr_forward.1} parent=1 // pred_region
      _
    $region13: #{bert_prompt4nr_forward.1} parent=1 // pred_fallthru
      _
    // Predicated region
    $region14: #{bert_prompt4nr_forward.1} parent=1 // pred_check
      _
    $region15: #{bert_prompt4nr_forward.1} parent=1 // pred_check_branch
      %76 = sbr.rel (0) target = $region17
    $region16: #{bert_prompt4nr_forward.1} parent=1 // pred_region
      _
    $region17: #{bert_prompt4nr_forward.1} parent=1 // pred_fallthru
      _
    // Predicated region
    $region18: #{bert_prompt4nr_forward.1} parent=1 // pred_check
      _
    $region19: #{bert_prompt4nr_forward.1} parent=1 // pred_check_branch
      %78 = sbr.rel (0) target = $region21
    $region20: #{bert_prompt4nr_forward.1} parent=1 // pred_region
      _
    $region21: #{bert_prompt4nr_forward.1} parent=1 // pred_fallthru
      _
    // Predicated region
    $region22: #{bert_prompt4nr_forward.1} parent=1 // pred_check
      _
    $region23: #{bert_prompt4nr_forward.1} parent=1 // pred_check_branch
      %80 = sbr.rel (0) target = $region25
    $region24: #{bert_prompt4nr_forward.1} parent=1 // pred_region
      _
    $region25: #{bert_prompt4nr_forward.1} parent=1 // pred_fallthru
      _
    // Predicated region
    $region26: #{bert_prompt4nr_forward.1} parent=1 // pred_check
      _
    $region27: #{bert_prompt4nr_forward.1} parent=1 // pred_check_branch
      %82 = sbr.rel (0) target = $region29
    $region28: #{bert_prompt4nr_forward.1} parent=1 // pred_region
      _
    $region29: #{bert_prompt4nr_forward.1} parent=1 // pred_fallthru
      _
    // Predicated region
    $region30: #{bert_prompt4nr_forward.1} parent=1 // pred_check
      _
    $region31: #{bert_prompt4nr_forward.1} parent=1 // pred_check_branch
      %84 = sbr.rel (0) target = $region33
    $region32: #{bert_prompt4nr_forward.1} parent=1 // pred_region
      _
    $region33: #{bert_prompt4nr_forward.1} parent=1 // pred_fallthru
      _
    // Predicated region
    $region34: #{bert_prompt4nr_forward.1} parent=1 // pred_check
      _
    $region35: #{bert_prompt4nr_forward.1} parent=1 // pred_check_branch
      %86 = sbr.rel (0) target = $region37
    $region36: #{bert_prompt4nr_forward.1} parent=1 // pred_region
      _
    $region37: #{bert_prompt4nr_forward.1} parent=1 // pred_fallthru
      _
    // Predicated region
    $region38: #{bert_prompt4nr_forward.1} parent=1 // pred_check
      _
    $region39: #{bert_prompt4nr_forward.1} parent=1 // pred_check_branch
      %88 = sbr.rel (0) target = $region41
    $region40: #{bert_prompt4nr_forward.1} parent=1 // pred_region
      _
    $region41: #{bert_prompt4nr_forward.1} parent=1 // pred_fallthru
      _
    // Predicated region
    $region42: #{bert_prompt4nr_forward.1} parent=1 // pred_check
      _
    $region43: #{bert_prompt4nr_forward.1} parent=1 // pred_check_branch
      %90 = sbr.rel (0) target = $region45
    $region44: #{bert_prompt4nr_forward.1} parent=1 // pred_region
      _
    $region45: #{bert_prompt4nr_forward.1} parent=1 // pred_fallthru
      _
    // Predicated region
    $region46: #{bert_prompt4nr_forward.1} parent=1 // pred_check
      _
    $region47: #{bert_prompt4nr_forward.1} parent=1 // pred_check_branch
      %92 = sbr.rel (0) target = $region49
    $region48: #{bert_prompt4nr_forward.1} parent=1 // pred_region
      _
    $region49: #{bert_prompt4nr_forward.1} parent=1 // pred_fallthru
      _
    // Predicated region
    $region50: #{bert_prompt4nr_forward.1} parent=1 // pred_check
      _
    $region51: #{bert_prompt4nr_forward.1} parent=1 // pred_check_branch
      %94 = sbr.rel (0) target = $region53
    $region52: #{bert_prompt4nr_forward.1} parent=1 // pred_region
      _
    $region53: #{bert_prompt4nr_forward.1} parent=1 // pred_fallthru
      _
    // Predicated region
    $region54: #{bert_prompt4nr_forward.1} parent=1 // pred_check
      _
    $region55: #{bert_prompt4nr_forward.1} parent=1 // pred_check_branch
      %96 = sbr.rel (0) target = $region57
    $region56: #{bert_prompt4nr_forward.1} parent=1 // pred_region
      _
    $region57: #{bert_prompt4nr_forward.1} parent=1 // pred_fallthru
      _
    // Predicated region
    $region58: #{bert_prompt4nr_forward.1} parent=1 // pred_check
      _
    $region59: #{bert_prompt4nr_forward.1} parent=1 // pred_check_branch
      %98 = sbr.rel (0) target = $region61
    $region60: #{bert_prompt4nr_forward.1} parent=1 // pred_region
      _
    $region61: #{bert_prompt4nr_forward.1} parent=1 // pred_fallthru
      _
    // Predicated region
    $region62: #{bert_prompt4nr_forward.1} parent=1 // pred_check
      _
    $region63: #{bert_prompt4nr_forward.1} parent=1 // pred_check_branch
      %100 = sbr.rel (0) target = $region65
    $region64: #{bert_prompt4nr_forward.1} parent=1 // pred_region
      _
    $region65: #{bert_prompt4nr_forward.1} parent=1 // pred_fallthru
      _
    // Predicated region
    $region66: #{bert_prompt4nr_forward.1} parent=1 // pred_check
      _
    $region67: #{bert_prompt4nr_forward.1} parent=1 // pred_check_branch
      %102 = sbr.rel (0) target = $region69
    $region68: #{bert_prompt4nr_forward.1} parent=1 // pred_region
      _
    $region69: #{bert_prompt4nr_forward.1} parent=1 // pred_fallthru
      _
    // Predicated region
    $region70: #{bert_prompt4nr_forward.1} parent=1 // pred_check
      _
    $region71: #{bert_prompt4nr_forward.1} parent=1 // pred_check_branch
      %104 = sbr.rel (0) target = $region73
    $region72: #{bert_prompt4nr_forward.1} parent=1 // pred_region
      _
    $region73: #{bert_prompt4nr_forward.1} parent=1 // pred_fallthru
      _
    // Predicated region
    $region74: #{bert_prompt4nr_forward.1} parent=1 // pred_check
      _
    $region75: #{bert_prompt4nr_forward.1} parent=1 // pred_check_branch
      %106 = sbr.rel (0) target = $region77
    $region76: #{bert_prompt4nr_forward.1} parent=1 // pred_region
      _
    $region77: #{bert_prompt4nr_forward.1} parent=1 // pred_fallthru
      _
    // Predicated region
    $region78: #{bert_prompt4nr_forward.1} parent=1 // pred_check
      _
    $region79: #{bert_prompt4nr_forward.1} parent=1 // pred_check_branch
      %108 = sbr.rel (0) target = $region81
    $region80: #{bert_prompt4nr_forward.1} parent=1 // pred_region
      _
    $region81: #{bert_prompt4nr_forward.1} parent=1 // pred_fallthru
      _
    // Predicated region
    $region82: #{bert_prompt4nr_forward.1} parent=1 // pred_check
      _
    $region83: #{bert_prompt4nr_forward.1} parent=1 // pred_check_branch
      %110 = sbr.rel (0) target = $region85
    $region84: #{bert_prompt4nr_forward.1} parent=1 // pred_region
      _
    $region85: #{bert_prompt4nr_forward.1} parent=1 // pred_fallthru
      _
    // Predicated region
    $region86: #{bert_prompt4nr_forward.1} parent=1 // pred_check
      _
    $region87: #{bert_prompt4nr_forward.1} parent=1 // pred_check_branch
      %112 = sbr.rel (0) target = $region89
    $region88: #{bert_prompt4nr_forward.1} parent=1 // pred_region
      _
    $region89: #{bert_prompt4nr_forward.1} parent=1 // pred_fallthru
      _
    // Predicated region
    $region90: #{bert_prompt4nr_forward.1} parent=1 // pred_check
      _
    $region91: #{bert_prompt4nr_forward.1} parent=1 // pred_check_branch
      %114 = sbr.rel (0) target = $region93
    $region92: #{bert_prompt4nr_forward.1} parent=1 // pred_region
      _
    $region93: #{bert_prompt4nr_forward.1} parent=1 // pred_fallthru
      _
    // Predicated region
    $region94: #{bert_prompt4nr_forward.1} parent=1 // pred_check
      _
    $region95: #{bert_prompt4nr_forward.1} parent=1 // pred_check_branch
      %116 = sbr.rel (0) target = $region97
    $region96: #{bert_prompt4nr_forward.1} parent=1 // pred_region
      _
    $region97: #{bert_prompt4nr_forward.1} parent=1 // pred_fallthru
      _
    // Predicated region
    $region98: #{bert_prompt4nr_forward.1} parent=1 // pred_check
      _
    $region99: #{bert_prompt4nr_forward.1} parent=1 // pred_check_branch
      %118 = sbr.rel (0) target = $region101
    $region100: #{bert_prompt4nr_forward.1} parent=1 // pred_region
      _
    $region101: #{bert_prompt4nr_forward.1} parent=1 // pred_fallthru
      _
    // Predicated region
    $region102: #{bert_prompt4nr_forward.1} parent=1 // pred_check
      _
    $region103: #{bert_prompt4nr_forward.1} parent=1 // pred_check_branch
      %120 = sbr.rel (0) target = $region105
    $region104: #{bert_prompt4nr_forward.1} parent=1 // pred_region
      _
    $region105: #{bert_prompt4nr_forward.1} parent=1 // pred_fallthru
      _
    // Predicated region
    $region106: #{bert_prompt4nr_forward.1} parent=1 // pred_check
      _
    $region107: #{bert_prompt4nr_forward.1} parent=1 // pred_check_branch
      %122 = sbr.rel (0) target = $region109
    $region108: #{bert_prompt4nr_forward.1} parent=1 // pred_region
      _
    $region109: #{bert_prompt4nr_forward.1} parent=1 // pred_fallthru
      _
    // Predicated region
    $region110: #{bert_prompt4nr_forward.1} parent=1 // pred_check
      _
    $region111: #{bert_prompt4nr_forward.1} parent=1 // pred_check_branch
      %124 = sbr.rel (0) target = $region113
    $region112: #{bert_prompt4nr_forward.1} parent=1 // pred_region
      _
    $region113: #{bert_prompt4nr_forward.1} parent=1 // pred_fallthru
      _
    // Predicated region
    $region114: #{bert_prompt4nr_forward.1} parent=1 // pred_check
      _
    $region115: #{bert_prompt4nr_forward.1} parent=1 // pred_check_branch
      %126 = sbr.rel (0) target = $region117
    $region116: #{bert_prompt4nr_forward.1} parent=1 // pred_region
      _
    $region117: #{bert_prompt4nr_forward.1} parent=1 // pred_fallthru
      _
    %v127 = vld [vmem:[%s1] sm:$0xff]
    %v128 = vld [vmem:[%s1 + $0x8] sm:$0xff]
    %v129 = vld [vmem:[%s1 + $0x10] sm:$0xff]
    %v130 = vld [vmem:[%s1 + $0x18] sm:$0xff]
    %v131 = vld [vmem:[%s11] sm:$0x1]
    %v132 = vld [vmem:[%s13] sm:$0x1]
    %vm133 = vcmask 261120
    %v134 = vsel %vm133, %v127, 0.0
    %135 = vadd.xlane.f32.xlu0 %v134
    %v136 = vpop.xlane.xlu0 %135
    %v137 = vsel %vm133, %v128, 0.0
    %138 = vadd.xlane.f32.xlu0 %v137
    %v139 = vpop.xlane.xlu0 %138
    %v140 = vsel %vm133, %v129, 0.0
    %141 = vadd.xlane.f32.xlu0 %v140
    %v142 = vpop.xlane.xlu0 %141
    %v143 = vsel %vm133, %v130, 0.0
    %144 = vadd.xlane.f32.xlu0 %v143
    %v145 = vpop.xlane.xlu0 %144
    %v146 = vrcp.pop 32.0
    %v147 = vmul.f32 %v136, %v146
    %v148 = vmul.f32 %v139, %v146
    %v149 = vmul.f32 %v142, %v146
    %v150 = vmul.f32 %v145, %v146
    %v151 = vsub.f32 %v127, %v147
    %v152 = vsub.f32 %v128, %v148
    %v153 = vsub.f32 %v129, %v149
    %v154 = vsub.f32 %v130, %v150
    %v155 = vmul.f32 %v151, %v151
    %v156 = vmul.f32 %v152, %v152
    %v157 = vmul.f32 %v153, %v153
    %v158 = vmul.f32 %v154, %v154
    %v159 = vsel %vm133, %v155, 0.0
    %160 = vadd.xlane.f32.xlu0 %v159
    %v161 = vpop.xlane.xlu0 %160
    %v162 = vsel %vm133, %v156, 0.0
    %163 = vadd.xlane.f32.xlu0 %v162
    %v164 = vpop.xlane.xlu0 %163
    %v165 = vsel %vm133, %v157, 0.0
    %166 = vadd.xlane.f32.xlu0 %v165
    %v167 = vpop.xlane.xlu0 %166
    %v168 = vsel %vm133, %v158, 0.0
    %169 = vadd.xlane.f32.xlu0 %v168
    %v170 = vpop.xlane.xlu0 %169
    %v171 = vmul.f32 %v161, %v146
    %v172 = vmul.f32 %v164, %v146
    %v173 = vmul.f32 %v167, %v146
    %v174 = vmul.f32 %v170, %v146
    %v175 = vadd.f32 %v171, 1e-12
    %v176 = vadd.f32 %v172, 1e-12
    %v177 = vadd.f32 %v173, 1e-12
    %v178 = vadd.f32 %v174, 1e-12
    %v179 = vrsqrt.pop %v175
    %v180 = vrsqrt.pop %v176
    %v181 = vrsqrt.pop %v177
    %v182 = vrsqrt.pop %v178
    %v183 = vmul.f32 %v151, %v179
    %v184 = vmul.f32 %v152, %v180
    %v185 = vmul.f32 %v153, %v181
    %v186 = vmul.f32 %v154, %v182
    %v188 = vlaneseq
    %v189 = vshrl.u32 %v188, 7
    %v190 = vsub.s32 0, %v189
    %v191 = vrot.slane %v131, %v190
    %v193 = vmul.f32 %v183, %v191
    %v194 = vmul.f32 %v184, %v191
    %v195 = vmul.f32 %v185, %v191
    %v196 = vmul.f32 %v186, %v191
    %v198 = vlaneseq
    %v199 = vshrl.u32 %v198, 7
    %v200 = vsub.s32 0, %v199
    %v201 = vrot.slane %v132, %v200
    %v203 = vadd.f32 %v193, %v201
    %v204 = vadd.f32 %v194, %v201
    %v205 = vadd.f32 %v195, %v201
    %v206 = vadd.f32 %v196, %v201
    %v207 = vld [vmem:[%s3] sm:$0x3]
    %v210 = vunpack.c.l.s4 1966171168
    %v211 = vunpack.c.0.s8 %v210
    %v212 = vlaneseq
    %v213 = vshrl.u32 %v212, 7
    %v214 = vsub.s32 %v211, %v213
    %v215 = vrot.slane %v207, %v214
    %v216 = vcombine.high %v215, %v215
    %v218 = vunpack.c.l.s4 1966171168
    %v219 = vunpack.c.0.s8 %v218
    %v220 = vlaneseq
    %v221 = vshrl.u32 %v220, 7
    %v222 = vsub.s32 %v219, %v221
    %v223 = vrot.slane %v215, %v222
    %v225 = vunpack.c.l.s4 1966171168
    %v226 = vunpack.c.0.s8 %v225
    %v227 = vlaneseq
    %v228 = vshrl.u32 %v227, 7
    %v229 = vsub.s32 %v226, %v228
    %v230 = vrot.slane %v216, %v229
    %v231 = vld [vmem:[%s15] sm:$0xff]
    %v232 = vld [vmem:[%s15 + $0x8] sm:$0xff]
    %v233 = vld [vmem:[%s15 + $0x10] sm:$0xff]
    %v234 = vld [vmem:[%s15 + $0x18] sm:$0xff]
    %v235 = vld [vmem:[%s17] sm:$0x1]
    %v237 = vlaneseq
    %v238 = vshrl.u32 %v237, 7
    %v239 = vsub.s32 0, %v238
    %v240 = vrot.slane %v235, %v239
    %v243 = vsel %vm133, %v203, 0
    %v246 = vsel %vm133, %v204, 0
    %v249 = vsel %vm133, %v205, 0
    %v252 = vsel %vm133, %v206, 0
    %254 = vmatprep.subr.mxu0 0.0
    %255 = vmatpush1.msra.mxu0 %v231
    %256 = vmatprep.subr.mxu0 0.0
    %257 = vmatpush1.msra.mxu0 %v232
    %258 = vmatprep.subr.mxu0 0.0
    %259 = vmatpush1.msra.mxu0 %v233
    %260 = vmatprep.subr.mxu0 0.0
    %261 = vmatpush1.msra.mxu0 %v234
    %262 = vmatprep.subr.mxu0 0.0
    %263 = vmatpush1.msra.mxu0 0.0
    %264 = vmatprep.subr.mxu0 0.0
    %265 = vmatpush1.msra.mxu0 0.0
    %266 = vmatprep.subr.mxu0 0.0
    %267 = vmatpush1.msra.mxu0 0.0
    %268 = vmatprep.subr.mxu0 0.0
    %269 = vmatpush1.msra.mxu0 0.0
    %270 = vmatprep.subr.mxu0 0.0
    %271 = vmatpush1.msra.mxu0 0.0
    %272 = vmatprep.subr.mxu0 0.0
    %273 = vmatpush1.msra.mxu0 0.0
    %274 = vmatprep.subr.mxu0 0.0
    %275 = vmatpush1.msra.mxu0 0.0
    %276 = vmatprep.subr.mxu0 0.0
    %277 = vmatpush1.msra.mxu0 0.0
    %278 = vmatprep.subr.mxu0 0.0
    %279 = vmatpush1.msra.mxu0 0.0
    %280 = vmatprep.subr.mxu0 0.0
    %281 = vmatpush1.msra.mxu0 0.0
    %282 = vmatprep.subr.mxu0 0.0
    %283 = vmatpush1.msra.mxu0 0.0
    %284 = vmatprep.subr.mxu0 0.0
    %285 = vmatpush1.msra.mxu0 0.0
    %286 = vmatprep.subr.mxu0 0.0
    %287 = vmatpush1.msra.mxu0 0.0
    %288 = vmatprep.subr.mxu0 0.0
    %289 = vmatpush1.msra.mxu0 0.0
    %290 = vmatprep.subr.mxu0 0.0
    %291 = vmatpush1.msra.mxu0 0.0
    %292 = vmatprep.subr.mxu0 0.0
    %293 = vmatpush1.msra.mxu0 0.0
    %294 = vmatprep.subr.mxu0 0.0
    %295 = vmatpush1.msra.mxu0 0.0
    %296 = vmatprep.subr.mxu0 0.0
    %297 = vmatpush1.msra.mxu0 0.0
    %298 = vmatprep.subr.mxu0 0.0
    %299 = vmatpush1.msra.mxu0 0.0
    %300 = vmatprep.subr.mxu0 0.0
    %301 = vmatpush1.msra.mxu0 0.0
    %302 = vmatprep.subr.mxu0 0.0
    %303 = vmatpush1.msra.mxu0 0.0
    %304 = vmatprep.subr.mxu0 0.0
    %305 = vmatpush1.msra.mxu0 0.0
    %306 = vmatprep.subr.mxu0 0.0
    %307 = vmatpush1.msra.mxu0 0.0
    %308 = vmatprep.subr.mxu0 0.0
    %309 = vmatpush1.msra.mxu0 0.0
    %310 = vmatprep.subr.mxu0 0.0
    %311 = vmatpush1.msra.mxu0 0.0
    %312 = vmatprep.subr.mxu0 0.0
    %313 = vmatpush1.msra.mxu0 0.0
    %314 = vmatprep.subr.mxu0 0.0
    %315 = vmatpush1.msra.mxu0 0.0
    %316 = vmatprep.subr.mxu0 0.0
    %317 = vmatpush1.msra.mxu0 0.0
    %318 = vmatprep.mubr.f32.mxu0 0.0
    %319 = vmatmul.mubr.f32.gmra.mrb[0].mxu0 %v243
    %v320 = vpop.f32.mrb[0].mxu0
    %v321 = vadd.f32 %v240, %v320
    %v322 = vpop.f32.mrb[0].mxu0
    %323 = vmatprep.mubr.f32.mxu0 0.0
    %324 = vmatmul.mubr.f32.gmra.mrb[0].mxu0 %v246
    %v325 = vpop.f32.mrb[0].mxu0
    %v326 = vadd.f32 %v240, %v325
    %v327 = vpop.f32.mrb[0].mxu0
    %328 = vmatprep.mubr.f32.mxu0 0.0
    %329 = vmatmul.mubr.f32.gmra.mrb[0].mxu0 %v249
    %v330 = vpop.f32.mrb[0].mxu0
    %v331 = vadd.f32 %v240, %v330
    %v332 = vpop.f32.mrb[0].mxu0
    %333 = vmatprep.mubr.f32.mxu0 0.0
    %334 = vmatmul.mubr.f32.gmra.mrb[0].mxu0 %v252
    %v335 = vpop.f32.mrb[0].mxu0
    %v336 = vadd.f32 %v240, %v335
    %v337 = vpop.f32.mrb[0].mxu0
    %338 = vdwg.mxu0
    %v339 = vld [vmem:[%s19] sm:$0xff]
    %v340 = vld [vmem:[%s19 + $0x8] sm:$0xff]
    %v341 = vld [vmem:[%s19 + $0x10] sm:$0xff]
    %v342 = vld [vmem:[%s19 + $0x18] sm:$0xff]
    %v343 = vld [vmem:[%s21] sm:$0x1]
    %v345 = vlaneseq
    %v346 = vshrl.u32 %v345, 7
    %v347 = vsub.s32 0, %v346
    %v348 = vrot.slane %v343, %v347
    %350 = vmatprep.subr.mxu0 0.0
    %351 = vmatpush1.msra.mxu0 %v339
    %352 = vmatprep.subr.mxu0 0.0
    %353 = vmatpush1.msra.mxu0 %v340
    %354 = vmatprep.subr.mxu0 0.0
    %355 = vmatpush1.msra.mxu0 %v341
    %356 = vmatprep.subr.mxu0 0.0
    %357 = vmatpush1.msra.mxu0 %v342
    %358 = vmatprep.subr.mxu0 0.0
    %359 = vmatpush1.msra.mxu0 0.0
    %360 = vmatprep.subr.mxu0 0.0
    %361 = vmatpush1.msra.mxu0 0.0
    %362 = vmatprep.subr.mxu0 0.0
    %363 = vmatpush1.msra.mxu0 0.0
    %364 = vmatprep.subr.mxu0 0.0
    %365 = vmatpush1.msra.mxu0 0.0
    %366 = vmatprep.subr.mxu0 0.0
    %367 = vmatpush1.msra.mxu0 0.0
    %368 = vmatprep.subr.mxu0 0.0
    %369 = vmatpush1.msra.mxu0 0.0
    %370 = vmatprep.subr.mxu0 0.0
    %371 = vmatpush1.msra.mxu0 0.0
    %372 = vmatprep.subr.mxu0 0.0
    %373 = vmatpush1.msra.mxu0 0.0
    %374 = vmatprep.subr.mxu0 0.0
    %375 = vmatpush1.msra.mxu0 0.0
    %376 = vmatprep.subr.mxu0 0.0
    %377 = vmatpush1.msra.mxu0 0.0
    %378 = vmatprep.subr.mxu0 0.0
    %379 = vmatpush1.msra.mxu0 0.0
    %380 = vmatprep.subr.mxu0 0.0
    %381 = vmatpush1.msra.mxu0 0.0
    %382 = vmatprep.subr.mxu0 0.0
    %383 = vmatpush1.msra.mxu0 0.0
    %384 = vmatprep.subr.mxu0 0.0
    %385 = vmatpush1.msra.mxu0 0.0
    %386 = vmatprep.subr.mxu0 0.0
    %387 = vmatpush1.msra.mxu0 0.0
    %388 = vmatprep.subr.mxu0 0.0
    %389 = vmatpush1.msra.mxu0 0.0
    %390 = vmatprep.subr.mxu0 0.0
    %391 = vmatpush1.msra.mxu0 0.0
    %392 = vmatprep.subr.mxu0 0.0
    %393 = vmatpush1.msra.mxu0 0.0
    %394 = vmatprep.subr.mxu0 0.0
    %395 = vmatpush1.msra.mxu0 0.0
    %396 = vmatprep.subr.mxu0 0.0
    %397 = vmatpush1.msra.mxu0 0.0
    %398 = vmatprep.subr.mxu0 0.0
    %399 = vmatpush1.msra.mxu0 0.0
    %400 = vmatprep.subr.mxu0 0.0
    %401 = vmatpush1.msra.mxu0 0.0
    %402 = vmatprep.subr.mxu0 0.0
    %403 = vmatpush1.msra.mxu0 0.0
    %404 = vmatprep.subr.mxu0 0.0
    %405 = vmatpush1.msra.mxu0 0.0
    %406 = vmatprep.subr.mxu0 0.0
    %407 = vmatpush1.msra.mxu0 0.0
    %408 = vmatprep.subr.mxu0 0.0
    %409 = vmatpush1.msra.mxu0 0.0
    %410 = vmatprep.subr.mxu0 0.0
    %411 = vmatpush1.msra.mxu0 0.0
    %412 = vmatprep.subr.mxu0 0.0
    %413 = vmatpush1.msra.mxu0 0.0
    %414 = vmatprep.mubr.f32.mxu0 0.0
    %415 = vmatmul.mubr.f32.gmra.mrb[0].mxu0 %v243
    %v416 = vpop.f32.mrb[0].mxu0
    %v417 = vadd.f32 %v348, %v416
    %v418 = vpop.f32.mrb[0].mxu0
    %419 = vmatprep.mubr.f32.mxu0 0.0
    %420 = vmatmul.mubr.f32.gmra.mrb[0].mxu0 %v246
    %v421 = vpop.f32.mrb[0].mxu0
    %v422 = vadd.f32 %v348, %v421
    %v423 = vpop.f32.mrb[0].mxu0
    %424 = vmatprep.mubr.f32.mxu0 0.0
    %425 = vmatmul.mubr.f32.gmra.mrb[0].mxu0 %v249
    %v426 = vpop.f32.mrb[0].mxu0
    %v427 = vadd.f32 %v348, %v426
    %v428 = vpop.f32.mrb[0].mxu0
    %429 = vmatprep.mubr.f32.mxu0 0.0
    %430 = vmatmul.mubr.f32.gmra.mrb[0].mxu0 %v252
    %v431 = vpop.f32.mrb[0].mxu0
    %v432 = vadd.f32 %v348, %v431
    %v433 = vpop.f32.mrb[0].mxu0
    %434 = vdwg.mxu0
    %v435 = vld [vmem:[%s23] sm:$0xff]
    %v436 = vld [vmem:[%s23 + $0x8] sm:$0xff]
    %v437 = vld [vmem:[%s23 + $0x10] sm:$0xff]
    %v438 = vld [vmem:[%s23 + $0x18] sm:$0xff]
    %v439 = vld [vmem:[%s25] sm:$0x1]
    %v441 = vlaneseq
    %v442 = vshrl.u32 %v441, 7
    %v443 = vsub.s32 0, %v442
    %v444 = vrot.slane %v439, %v443
    %446 = vmatprep.subr.mxu0 0.0
    %447 = vmatpush1.msra.mxu0 %v435
    %448 = vmatprep.subr.mxu0 0.0
    %449 = vmatpush1.msra.mxu0 %v436
    %450 = vmatprep.subr.mxu0 0.0
    %451 = vmatpush1.msra.mxu0 %v437
    %452 = vmatprep.subr.mxu0 0.0
    %453 = vmatpush1.msra.mxu0 %v438
    %454 = vmatprep.subr.mxu0 0.0
    %455 = vmatpush1.msra.mxu0 0.0
    %456 = vmatprep.subr.mxu0 0.0
    %457 = vmatpush1.msra.mxu0 0.0
    %458 = vmatprep.subr.mxu0 0.0
    %459 = vmatpush1.msra.mxu0 0.0
    %460 = vmatprep.subr.mxu0 0.0
    %461 = vmatpush1.msra.mxu0 0.0
    %462 = vmatprep.subr.mxu0 0.0
    %463 = vmatpush1.msra.mxu0 0.0
    %464 = vmatprep.subr.mxu0 0.0
    %465 = vmatpush1.msra.mxu0 0.0
    %466 = vmatprep.subr.mxu0 0.0
    %467 = vmatpush1.msra.mxu0 0.0
    %468 = vmatprep.subr.mxu0 0.0
    %469 = vmatpush1.msra.mxu0 0.0
    %470 = vmatprep.subr.mxu0 0.0
    %471 = vmatpush1.msra.mxu0 0.0
    %472 = vmatprep.subr.mxu0 0.0
    %473 = vmatpush1.msra.mxu0 0.0
    %474 = vmatprep.subr.mxu0 0.0
    %475 = vmatpush1.msra.mxu0 0.0
    %476 = vmatprep.subr.mxu0 0.0
    %477 = vmatpush1.msra.mxu0 0.0
    %478 = vmatprep.subr.mxu0 0.0
    %479 = vmatpush1.msra.mxu0 0.0
    %480 = vmatprep.subr.mxu0 0.0
    %481 = vmatpush1.msra.mxu0 0.0
    %482 = vmatprep.subr.mxu0 0.0
    %483 = vmatpush1.msra.mxu0 0.0
    %484 = vmatprep.subr.mxu0 0.0
    %485 = vmatpush1.msra.mxu0 0.0
    %486 = vmatprep.subr.mxu0 0.0
    %487 = vmatpush1.msra.mxu0 0.0
    %488 = vmatprep.subr.mxu0 0.0
    %489 = vmatpush1.msra.mxu0 0.0
    %490 = vmatprep.subr.mxu0 0.0
    %491 = vmatpush1.msra.mxu0 0.0
    %492 = vmatprep.subr.mxu0 0.0
    %493 = vmatpush1.msra.mxu0 0.0
    %494 = vmatprep.subr.mxu0 0.0
    %495 = vmatpush1.msra.mxu0 0.0
    %496 = vmatprep.subr.mxu0 0.0
    %497 = vmatpush1.msra.mxu0 0.0
    %498 = vmatprep.subr.mxu0 0.0
    %499 = vmatpush1.msra.mxu0 0.0
    %500 = vmatprep.subr.mxu0 0.0
    %501 = vmatpush1.msra.mxu0 0.0
    %502 = vmatprep.subr.mxu0 0.0
    %503 = vmatpush1.msra.mxu0 0.0
    %504 = vmatprep.subr.mxu0 0.0
    %505 = vmatpush1.msra.mxu0 0.0
    %506 = vmatprep.subr.mxu0 0.0
    %507 = vmatpush1.msra.mxu0 0.0
    %508 = vmatprep.subr.mxu0 0.0
    %509 = vmatpush1.msra.mxu0 0.0
    %510 = vmatprep.mubr.f32.mxu0 0.0
    %511 = vmatmul.mubr.f32.gmra.mrb[0].mxu0 %v243
    %v512 = vpop.f32.mrb[0].mxu0
    %v513 = vadd.f32 %v444, %v512
    %v514 = vpop.f32.mrb[0].mxu0
    %515 = vmatprep.mubr.f32.mxu0 0.0
    %516 = vmatmul.mubr.f32.gmra.mrb[0].mxu0 %v246
    %v517 = vpop.f32.mrb[0].mxu0
    %v518 = vadd.f32 %v444, %v517
    %v519 = vpop.f32.mrb[0].mxu0
    %520 = vmatprep.mubr.f32.mxu0 0.0
    %521 = vmatmul.mubr.f32.gmra.mrb[0].mxu0 %v249
    %v522 = vpop.f32.mrb[0].mxu0
    %v523 = vadd.f32 %v444, %v522
    %v524 = vpop.f32.mrb[0].mxu0
    %525 = vmatprep.mubr.f32.mxu0 0.0
    %526 = vmatmul.mubr.f32.gmra.mrb[0].mxu0 %v252
    %v527 = vpop.f32.mrb[0].mxu0
    %v528 = vadd.f32 %v444, %v527
    %v529 = vpop.f32.mrb[0].mxu0
    %530 = vdwg.mxu0
    %vm531 = vcmask 130048
    %v533 = vsel %vm531, %v321, 0
    %v536 = vsel %vm531, %v326, 0
    %v539 = vsel %vm531, %v417, 0
    %v542 = vsel %vm531, %v422, 0
    %544 = vmatprep.subr.mxu0 0.0
    %545 = vmatpush1.xpose.msra.mxu0 %v539
    %546 = vmatprep.subr.mxu0 0.0
    %547 = vmatpush1.xpose.msra.mxu0 %v542
    %548 = vmatprep.subr.mxu0 0.0
    %549 = vmatpush1.xpose.msra.mxu0 0.0
    %550 = vmatprep.subr.mxu0 0.0
    %551 = vmatpush1.xpose.msra.mxu0 0.0
    %552 = vmatprep.subr.mxu0 0.0
    %553 = vmatpush1.xpose.msra.mxu0 0.0
    %554 = vmatprep.subr.mxu0 0.0
    %555 = vmatpush1.xpose.msra.mxu0 0.0
    %556 = vmatprep.subr.mxu0 0.0
    %557 = vmatpush1.xpose.msra.mxu0 0.0
    %558 = vmatprep.subr.mxu0 0.0
    %559 = vmatpush1.xpose.msra.mxu0 0.0
    %560 = vmatprep.subr.mxu0 0.0
    %561 = vmatpush1.xpose.msra.mxu0 0.0
    %562 = vmatprep.subr.mxu0 0.0
    %563 = vmatpush1.xpose.msra.mxu0 0.0
    %564 = vmatprep.subr.mxu0 0.0
    %565 = vmatpush1.xpose.msra.mxu0 0.0
    %566 = vmatprep.subr.mxu0 0.0
    %567 = vmatpush1.xpose.msra.mxu0 0.0
    %568 = vmatprep.subr.mxu0 0.0
    %569 = vmatpush1.xpose.msra.mxu0 0.0
    %570 = vmatprep.subr.mxu0 0.0
    %571 = vmatpush1.xpose.msra.mxu0 0.0
    %572 = vmatprep.subr.mxu0 0.0
    %573 = vmatpush1.xpose.msra.mxu0 0.0
    %574 = vmatprep.subr.mxu0 0.0
    %575 = vmatpush1.xpose.msra.mxu0 0.0
    %576 = vmatprep.subr.mxu0 0.0
    %577 = vmatpush1.xpose.msra.mxu0 0.0
    %578 = vmatprep.subr.mxu0 0.0
    %579 = vmatpush1.xpose.msra.mxu0 0.0
    %580 = vmatprep.subr.mxu0 0.0
    %581 = vmatpush1.xpose.msra.mxu0 0.0
    %582 = vmatprep.subr.mxu0 0.0
    %583 = vmatpush1.xpose.msra.mxu0 0.0
    %584 = vmatprep.subr.mxu0 0.0
    %585 = vmatpush1.xpose.msra.mxu0 0.0
    %586 = vmatprep.subr.mxu0 0.0
    %587 = vmatpush1.xpose.msra.mxu0 0.0
    %588 = vmatprep.subr.mxu0 0.0
    %589 = vmatpush1.xpose.msra.mxu0 0.0
    %590 = vmatprep.subr.mxu0 0.0
    %591 = vmatpush1.xpose.msra.mxu0 0.0
    %592 = vmatprep.subr.mxu0 0.0
    %593 = vmatpush1.xpose.msra.mxu0 0.0
    %594 = vmatprep.subr.mxu0 0.0
    %595 = vmatpush1.xpose.msra.mxu0 0.0
    %596 = vmatprep.subr.mxu0 0.0
    %597 = vmatpush1.xpose.msra.mxu0 0.0
    %598 = vmatprep.subr.mxu0 0.0
    %599 = vmatpush1.xpose.msra.mxu0 0.0
    %600 = vmatprep.subr.mxu0 0.0
    %601 = vmatpush1.xpose.msra.mxu0 0.0
    %602 = vmatprep.subr.mxu0 0.0
    %603 = vmatpush1.xpose.msra.mxu0 0.0
    %604 = vmatprep.subr.mxu0 0.0
    %605 = vmatpush1.xpose.msra.mxu0 0.0
    %606 = vmatprep.subr.mxu0 0.0
    %607 = vmatpush1.xpose.msra.mxu0 0.0
    %608 = vmatprep.mubr.f32.mxu0 0.0
    %609 = vmatmul.mubr.f32.gmra.mrb[0].mxu0 %v533
    %v610 = vpop.f32.mrb[0].mxu0
    %v611 = vadd.f32 0.0, %v610
    %v612 = vpop.f32.mrb[0].mxu0
    %613 = vmatprep.mubr.f32.mxu0 0.0
    %614 = vmatmul.mubr.f32.gmra.mrb[0].mxu0 %v536
    %v615 = vpop.f32.mrb[0].mxu0
    %v616 = vadd.f32 0.0, %v615
    %v617 = vpop.f32.mrb[0].mxu0
    %618 = vdwg.mxu0
    %v620 = vsel %vm531, %v331, 0
    %v623 = vsel %vm531, %v336, 0
    %v626 = vsel %vm531, %v427, 0
    %v629 = vsel %vm531, %v432, 0
    %631 = vmatprep.subr.mxu0 0.0
    %632 = vmatpush1.xpose.msra.mxu0 %v626
    %633 = vmatprep.subr.mxu0 0.0
    %634 = vmatpush1.xpose.msra.mxu0 %v629
    %635 = vmatprep.subr.mxu0 0.0
    %636 = vmatpush1.xpose.msra.mxu0 0.0
    %637 = vmatprep.subr.mxu0 0.0
    %638 = vmatpush1.xpose.msra.mxu0 0.0
    %639 = vmatprep.subr.mxu0 0.0
    %640 = vmatpush1.xpose.msra.mxu0 0.0
    %641 = vmatprep.subr.mxu0 0.0
    %642 = vmatpush1.xpose.msra.mxu0 0.0
    %643 = vmatprep.subr.mxu0 0.0
    %644 = vmatpush1.xpose.msra.mxu0 0.0
    %645 = vmatprep.subr.mxu0 0.0
    %646 = vmatpush1.xpose.msra.mxu0 0.0
    %647 = vmatprep.subr.mxu0 0.0
    %648 = vmatpush1.xpose.msra.mxu0 0.0
    %649 = vmatprep.subr.mxu0 0.0
    %650 = vmatpush1.xpose.msra.mxu0 0.0
    %651 = vmatprep.subr.mxu0 0.0
    %652 = vmatpush1.xpose.msra.mxu0 0.0
    %653 = vmatprep.subr.mxu0 0.0
    %654 = vmatpush1.xpose.msra.mxu0 0.0
    %655 = vmatprep.subr.mxu0 0.0
    %656 = vmatpush1.xpose.msra.mxu0 0.0
    %657 = vmatprep.subr.mxu0 0.0
    %658 = vmatpush1.xpose.msra.mxu0 0.0
    %659 = vmatprep.subr.mxu0 0.0
    %660 = vmatpush1.xpose.msra.mxu0 0.0
    %661 = vmatprep.subr.mxu0 0.0
    %662 = vmatpush1.xpose.msra.mxu0 0.0
    %663 = vmatprep.subr.mxu0 0.0
    %664 = vmatpush1.xpose.msra.mxu0 0.0
    %665 = vmatprep.subr.mxu0 0.0
    %666 = vmatpush1.xpose.msra.mxu0 0.0
    %667 = vmatprep.subr.mxu0 0.0
    %668 = vmatpush1.xpose.msra.mxu0 0.0
    %669 = vmatprep.subr.mxu0 0.0
    %670 = vmatpush1.xpose.msra.mxu0 0.0
    %671 = vmatprep.subr.mxu0 0.0
    %672 = vmatpush1.xpose.msra.mxu0 0.0
    %673 = vmatprep.subr.mxu0 0.0
    %674 = vmatpush1.xpose.msra.mxu0 0.0
    %675 = vmatprep.subr.mxu0 0.0
    %676 = vmatpush1.xpose.msra.mxu0 0.0
    %677 = vmatprep.subr.mxu0 0.0
    %678 = vmatpush1.xpose.msra.mxu0 0.0
    %679 = vmatprep.subr.mxu0 0.0
    %680 = vmatpush1.xpose.msra.mxu0 0.0
    %681 = vmatprep.subr.mxu0 0.0
    %682 = vmatpush1.xpose.msra.mxu0 0.0
    %683 = vmatprep.subr.mxu0 0.0
    %684 = vmatpush1.xpose.msra.mxu0 0.0
    %685 = vmatprep.subr.mxu0 0.0
    %686 = vmatpush1.xpose.msra.mxu0 0.0
    %687 = vmatprep.subr.mxu0 0.0
    %688 = vmatpush1.xpose.msra.mxu0 0.0
    %689 = vmatprep.subr.mxu0 0.0
    %690 = vmatpush1.xpose.msra.mxu0 0.0
    %691 = vmatprep.subr.mxu0 0.0
    %692 = vmatpush1.xpose.msra.mxu0 0.0
    %693 = vmatprep.subr.mxu0 0.0
    %694 = vmatpush1.xpose.msra.mxu0 0.0
    %695 = vmatprep.mubr.f32.mxu0 0.0
    %696 = vmatmul.mubr.f32.gmra.mrb[0].mxu0 %v620
    %v697 = vpop.f32.mrb[0].mxu0
    %v698 = vadd.f32 0.0, %v697
    %v699 = vpop.f32.mrb[0].mxu0
    %700 = vmatprep.mubr.f32.mxu0 0.0
    %701 = vmatmul.mubr.f32.gmra.mrb[0].mxu0 %v623
    %v702 = vpop.f32.mrb[0].mxu0
    %v703 = vadd.f32 0.0, %v702
    %v704 = vpop.f32.mrb[0].mxu0
    %705 = vdwg.mxu0
    %v706 = vmul.f32 %v611, 0.25
    %v707 = vmul.f32 %v616, 0.25
    %v708 = vmul.f32 %v698, 0.25
    %v709 = vmul.f32 %v703, 0.25
    %v710 = vlaneseq
    %v711 = vshrl.u32 %v710, 7
    %v712 = vsub.s32 0, %v711
    %v713 = vrot.slane %v223, %v712
    %v714 = vlaneseq
    %v715 = vshrl.u32 %v714, 7
    %v716 = vsub.s32 0, %v715
    %v717 = vrot.slane %v230, %v716
    %v720 = vadd.f32 %v706, %v713
    %v721 = vadd.f32 %v707, %v713
    %v722 = vadd.f32 %v708, %v717
    %v723 = vadd.f32 %v709, %v717
    %v724 = vsel %vm531, %v720, -inf
    %725 = vmax.xlane.f32.xlu0 %v724
    %v726 = vpop.xlane.xlu0 %725
    %v727 = vsel %vm531, %v721, -inf
    %728 = vmax.xlane.f32.xlu0 %v727
    %v729 = vpop.xlane.xlu0 %728
    %v730 = vsel %vm531, %v722, -inf
    %731 = vmax.xlane.f32.xlu0 %v730
    %v732 = vpop.xlane.xlu0 %731
    %v733 = vsel %vm531, %v723, -inf
    %734 = vmax.xlane.f32.xlu0 %v733
    %v735 = vpop.xlane.xlu0 %734
    %v736 = vsub.f32 %v720, %v726
    %v737 = vsub.f32 %v721, %v729
    %v738 = vsub.f32 %v722, %v732
    %v739 = vsub.f32 %v723, %v735
    %v740 = vmul.f32 %v736, 1.442695
    %v741 = vpow.pop %v740
    %v742 = vmul.f32 %v737, 1.442695
    %v743 = vpow.pop %v742
    %v744 = vmul.f32 %v738, 1.442695
    %v745 = vpow.pop %v744
    %v746 = vmul.f32 %v739, 1.442695
    %v747 = vpow.pop %v746
    %v748 = vsel %vm531, %v741, 0.0
    %749 = vadd.xlane.f32.xlu0 %v748
    %v750 = vpop.xlane.xlu0 %749
    %v751 = vsel %vm531, %v743, 0.0
    %752 = vadd.xlane.f32.xlu0 %v751
    %v753 = vpop.xlane.xlu0 %752
    %v754 = vsel %vm531, %v745, 0.0
    %755 = vadd.xlane.f32.xlu0 %v754
    %v756 = vpop.xlane.xlu0 %755
    %v757 = vsel %vm531, %v747, 0.0
    %758 = vadd.xlane.f32.xlu0 %v757
    %v759 = vpop.xlane.xlu0 %758
    %v760 = vrcp.pop %v750
    %v761 = vrcp.pop %v753
    %v762 = vrcp.pop %v756
    %v763 = vrcp.pop %v759
    %v764 = vmul.f32 %v741, %v760
    %v765 = vmul.f32 %v743, %v761
    %v766 = vmul.f32 %v745, %v762
    %v767 = vmul.f32 %v747, %v763
    %v769 = vsel %vm531, %v764, 0
    %v772 = vsel %vm531, %v765, 0
    %774 = vmatprep.subr.mxu0 0.0
    %775 = vmatpush1.msra.mxu0 %v513
    %776 = vmatprep.subr.mxu0 0.0
    %777 = vmatpush1.msra.mxu0 %v518
    %778 = vmatprep.subr.mxu0 0.0
    %779 = vmatpush1.msra.mxu0 0.0
    %780 = vmatprep.subr.mxu0 0.0
    %781 = vmatpush1.msra.mxu0 0.0
    %782 = vmatprep.subr.mxu0 0.0
    %783 = vmatpush1.msra.mxu0 0.0
    %784 = vmatprep.subr.mxu0 0.0
    %785 = vmatpush1.msra.mxu0 0.0
    %786 = vmatprep.subr.mxu0 0.0
    %787 = vmatpush1.msra.mxu0 0.0
    %788 = vmatprep.subr.mxu0 0.0
    %789 = vmatpush1.msra.mxu0 0.0
    %790 = vmatprep.subr.mxu0 0.0
    %791 = vmatpush1.msra.mxu0 0.0
    %792 = vmatprep.subr.mxu0 0.0
    %793 = vmatpush1.msra.mxu0 0.0
    %794 = vmatprep.subr.mxu0 0.0
    %795 = vmatpush1.msra.mxu0 0.0
    %796 = vmatprep.subr.mxu0 0.0
    %797 = vmatpush1.msra.mxu0 0.0
    %798 = vmatprep.subr.mxu0 0.0
    %799 = vmatpush1.msra.mxu0 0.0
    %800 = vmatprep.subr.mxu0 0.0
    %801 = vmatpush1.msra.mxu0 0.0
    %802 = vmatprep.subr.mxu0 0.0
    %803 = vmatpush1.msra.mxu0 0.0
    %804 = vmatprep.subr.mxu0 0.0
    %805 = vmatpush1.msra.mxu0 0.0
    %806 = vmatprep.subr.mxu0 0.0
    %807 = vmatpush1.msra.mxu0 0.0
    %808 = vmatprep.subr.mxu0 0.0
    %809 = vmatpush1.msra.mxu0 0.0
    %810 = vmatprep.subr.mxu0 0.0
    %811 = vmatpush1.msra.mxu0 0.0
    %812 = vmatprep.subr.mxu0 0.0
    %813 = vmatpush1.msra.mxu0 0.0
    %814 = vmatprep.subr.mxu0 0.0
    %815 = vmatpush1.msra.mxu0 0.0
    %816 = vmatprep.subr.mxu0 0.0
    %817 = vmatpush1.msra.mxu0 0.0
    %818 = vmatprep.subr.mxu0 0.0
    %819 = vmatpush1.msra.mxu0 0.0
    %820 = vmatprep.subr.mxu0 0.0
    %821 = vmatpush1.msra.mxu0 0.0
    %822 = vmatprep.subr.mxu0 0.0
    %823 = vmatpush1.msra.mxu0 0.0
    %824 = vmatprep.subr.mxu0 0.0
    %825 = vmatpush1.msra.mxu0 0.0
    %826 = vmatprep.subr.mxu0 0.0
    %827 = vmatpush1.msra.mxu0 0.0
    %828 = vmatprep.subr.mxu0 0.0
    %829 = vmatpush1.msra.mxu0 0.0
    %830 = vmatprep.subr.mxu0 0.0
    %831 = vmatpush1.msra.mxu0 0.0
    %832 = vmatprep.subr.mxu0 0.0
    %833 = vmatpush1.msra.mxu0 0.0
    %834 = vmatprep.subr.mxu0 0.0
    %835 = vmatpush1.msra.mxu0 0.0
    %836 = vmatprep.subr.mxu0 0.0
    %837 = vmatpush1.msra.mxu0 0.0
    %838 = vmatprep.mubr.f32.mxu0 0.0
    %839 = vmatmul.mubr.f32.gmra.mrb[0].mxu0 %v769
    %v840 = vpop.f32.mrb[0].mxu0
    %v841 = vadd.f32 0.0, %v840
    %v842 = vpop.f32.mrb[0].mxu0
    %843 = vmatprep.mubr.f32.mxu0 0.0
    %844 = vmatmul.mubr.f32.gmra.mrb[0].mxu0 %v772
    %v845 = vpop.f32.mrb[0].mxu0
    %v846 = vadd.f32 0.0, %v845
    %v847 = vpop.f32.mrb[0].mxu0
    %848 = vdwg.mxu0
    %v850 = vsel %vm531, %v766, 0
    %v853 = vsel %vm531, %v767, 0
    %855 = vmatprep.subr.mxu0 0.0
    %856 = vmatpush1.msra.mxu0 %v523
    %857 = vmatprep.subr.mxu0 0.0
    %858 = vmatpush1.msra.mxu0 %v528
    %859 = vmatprep.subr.mxu0 0.0
    %860 = vmatpush1.msra.mxu0 0.0
    %861 = vmatprep.subr.mxu0 0.0
    %862 = vmatpush1.msra.mxu0 0.0
    %863 = vmatprep.subr.mxu0 0.0
    %864 = vmatpush1.msra.mxu0 0.0
    %865 = vmatprep.subr.mxu0 0.0
    %866 = vmatpush1.msra.mxu0 0.0
    %867 = vmatprep.subr.mxu0 0.0
    %868 = vmatpush1.msra.mxu0 0.0
    %869 = vmatprep.subr.mxu0 0.0
    %870 = vmatpush1.msra.mxu0 0.0
    %871 = vmatprep.subr.mxu0 0.0
    %872 = vmatpush1.msra.mxu0 0.0
    %873 = vmatprep.subr.mxu0 0.0
    %874 = vmatpush1.msra.mxu0 0.0
    %875 = vmatprep.subr.mxu0 0.0
    %876 = vmatpush1.msra.mxu0 0.0
    %877 = vmatprep.subr.mxu0 0.0
    %878 = vmatpush1.msra.mxu0 0.0
    %879 = vmatprep.subr.mxu0 0.0
    %880 = vmatpush1.msra.mxu0 0.0
    %881 = vmatprep.subr.mxu0 0.0
    %882 = vmatpush1.msra.mxu0 0.0
    %883 = vmatprep.subr.mxu0 0.0
    %884 = vmatpush1.msra.mxu0 0.0
    %885 = vmatprep.subr.mxu0 0.0
    %886 = vmatpush1.msra.mxu0 0.0
    %887 = vmatprep.subr.mxu0 0.0
    %888 = vmatpush1.msra.mxu0 0.0
    %889 = vmatprep.subr.mxu0 0.0
    %890 = vmatpush1.msra.mxu0 0.0
    %891 = vmatprep.subr.mxu0 0.0
    %892 = vmatpush1.msra.mxu0 0.0
    %893 = vmatprep.subr.mxu0 0.0
    %894 = vmatpush1.msra.mxu0 0.0
    %895 = vmatprep.subr.mxu0 0.0
    %896 = vmatpush1.msra.mxu0 0.0
    %897 = vmatprep.subr.mxu0 0.0
    %898 = vmatpush1.msra.mxu0 0.0
    %899 = vmatprep.subr.mxu0 0.0
    %900 = vmatpush1.msra.mxu0 0.0
    %901 = vmatprep.subr.mxu0 0.0
    %902 = vmatpush1.msra.mxu0 0.0
    %903 = vmatprep.subr.mxu0 0.0
    %904 = vmatpush1.msra.mxu0 0.0
    %905 = vmatprep.subr.mxu0 0.0
    %906 = vmatpush1.msra.mxu0 0.0
    %907 = vmatprep.subr.mxu0 0.0
    %908 = vmatpush1.msra.mxu0 0.0
    %909 = vmatprep.subr.mxu0 0.0
    %910 = vmatpush1.msra.mxu0 0.0
    %911 = vmatprep.subr.mxu0 0.0
    %912 = vmatpush1.msra.mxu0 0.0
    %913 = vmatprep.subr.mxu0 0.0
    %914 = vmatpush1.msra.mxu0 0.0
    %915 = vmatprep.subr.mxu0 0.0
    %916 = vmatpush1.msra.mxu0 0.0
    %917 = vmatprep.subr.mxu0 0.0
    %918 = vmatpush1.msra.mxu0 0.0
    %919 = vmatprep.mubr.f32.mxu0 0.0
    %920 = vmatmul.mubr.f32.gmra.mrb[0].mxu0 %v850
    %v921 = vpop.f32.mrb[0].mxu0
    %v922 = vadd.f32 0.0, %v921
    %v923 = vpop.f32.mrb[0].mxu0
    %924 = vmatprep.mubr.f32.mxu0 0.0
    %925 = vmatmul.mubr.f32.gmra.mrb[0].mxu0 %v853
    %v926 = vpop.f32.mrb[0].mxu0
    %v927 = vadd.f32 0.0, %v926
    %v928 = vpop.f32.mrb[0].mxu0
    %929 = vdwg.mxu0
    %930 = vrot.lane.b32.xlu0 %v321, 112
    %v931 = vpop.permute.xlu0 %930
    %932 = vrot.lane.b32.xlu0 %v326, 112
    %v933 = vpop.permute.xlu0 %932
    %934 = vrot.lane.b32.xlu0 %v417, 112
    %v935 = vpop.permute.xlu0 %934
    %936 = vrot.lane.b32.xlu0 %v422, 112
    %v937 = vpop.permute.xlu0 %936
    %v938 = vsel %vm531, %v931, 0
    %v940 = vsel %vm531, %v933, 0
    %v942 = vsel %vm531, %v935, 0
    %v944 = vsel %vm531, %v937, 0
    %946 = vmatprep.subr.mxu0 0.0
    %947 = vmatpush1.xpose.msra.mxu0 %v942
    %948 = vmatprep.subr.mxu0 0.0
    %949 = vmatpush1.xpose.msra.mxu0 %v944
    %950 = vmatprep.subr.mxu0 0.0
    %951 = vmatpush1.xpose.msra.mxu0 0.0
    %952 = vmatprep.subr.mxu0 0.0
    %953 = vmatpush1.xpose.msra.mxu0 0.0
    %954 = vmatprep.subr.mxu0 0.0
    %955 = vmatpush1.xpose.msra.mxu0 0.0
    %956 = vmatprep.subr.mxu0 0.0
    %957 = vmatpush1.xpose.msra.mxu0 0.0
    %958 = vmatprep.subr.mxu0 0.0
    %959 = vmatpush1.xpose.msra.mxu0 0.0
    %960 = vmatprep.subr.mxu0 0.0
    %961 = vmatpush1.xpose.msra.mxu0 0.0
    %962 = vmatprep.subr.mxu0 0.0
    %963 = vmatpush1.xpose.msra.mxu0 0.0
    %964 = vmatprep.subr.mxu0 0.0
    %965 = vmatpush1.xpose.msra.mxu0 0.0
    %966 = vmatprep.subr.mxu0 0.0
    %967 = vmatpush1.xpose.msra.mxu0 0.0
    %968 = vmatprep.subr.mxu0 0.0
    %969 = vmatpush1.xpose.msra.mxu0 0.0
    %970 = vmatprep.subr.mxu0 0.0
    %971 = vmatpush1.xpose.msra.mxu0 0.0
    %972 = vmatprep.subr.mxu0 0.0
    %973 = vmatpush1.xpose.msra.mxu0 0.0
    %974 = vmatprep.subr.mxu0 0.0
    %975 = vmatpush1.xpose.msra.mxu0 0.0
    %976 = vmatprep.subr.mxu0 0.0
    %977 = vmatpush1.xpose.msra.mxu0 0.0
    %978 = vmatprep.subr.mxu0 0.0
    %979 = vmatpush1.xpose.msra.mxu0 0.0
    %980 = vmatprep.subr.mxu0 0.0
    %981 = vmatpush1.xpose.msra.mxu0 0.0
    %982 = vmatprep.subr.mxu0 0.0
    %983 = vmatpush1.xpose.msra.mxu0 0.0
    %984 = vmatprep.subr.mxu0 0.0
    %985 = vmatpush1.xpose.msra.mxu0 0.0
    %986 = vmatprep.subr.mxu0 0.0
    %987 = vmatpush1.xpose.msra.mxu0 0.0
    %988 = vmatprep.subr.mxu0 0.0
    %989 = vmatpush1.xpose.msra.mxu0 0.0
    %990 = vmatprep.subr.mxu0 0.0
    %991 = vmatpush1.xpose.msra.mxu0 0.0
    %992 = vmatprep.subr.mxu0 0.0
    %993 = vmatpush1.xpose.msra.mxu0 0.0
    %994 = vmatprep.subr.mxu0 0.0
    %995 = vmatpush1.xpose.msra.mxu0 0.0
    %996 = vmatprep.subr.mxu0 0.0
    %997 = vmatpush1.xpose.msra.mxu0 0.0
    %998 = vmatprep.subr.mxu0 0.0
    %999 = vmatpush1.xpose.msra.mxu0 0.0
    %1000 = vmatprep.subr.mxu0 0.0
    %1001 = vmatpush1.xpose.msra.mxu0 0.0
    %1002 = vmatprep.subr.mxu0 0.0
    %1003 = vmatpush1.xpose.msra.mxu0 0.0
    %1004 = vmatprep.subr.mxu0 0.0
    %1005 = vmatpush1.xpose.msra.mxu0 0.0
    %1006 = vmatprep.subr.mxu0 0.0
    %1007 = vmatpush1.xpose.msra.mxu0 0.0
    %1008 = vmatprep.subr.mxu0 0.0
    %1009 = vmatpush1.xpose.msra.mxu0 0.0
    %1010 = vmatprep.mubr.f32.mxu0 0.0
    %1011 = vmatmul.mubr.f32.gmra.mrb[0].mxu0 %v938
    %v1012 = vpop.f32.mrb[0].mxu0
    %v1013 = vadd.f32 0.0, %v1012
    %v1014 = vpop.f32.mrb[0].mxu0
    %1015 = vmatprep.mubr.f32.mxu0 0.0
    %1016 = vmatmul.mubr.f32.gmra.mrb[0].mxu0 %v940
    %v1017 = vpop.f32.mrb[0].mxu0
    %v1018 = vadd.f32 0.0, %v1017
    %v1019 = vpop.f32.mrb[0].mxu0
    %1020 = vdwg.mxu0
    %1021 = vrot.lane.b32.xlu0 %v331, 112
    %v1022 = vpop.permute.xlu0 %1021
    %1023 = vrot.lane.b32.xlu0 %v336, 112
    %v1024 = vpop.permute.xlu0 %1023
    %1025 = vrot.lane.b32.xlu0 %v427, 112
    %v1026 = vpop.permute.xlu0 %1025
    %1027 = vrot.lane.b32.xlu0 %v432, 112
    %v1028 = vpop.permute.xlu0 %1027
    %v1029 = vsel %vm531, %v1022, 0
    %v1031 = vsel %vm531, %v1024, 0
    %v1033 = vsel %vm531, %v1026, 0
    %v1035 = vsel %vm531, %v1028, 0
    %1037 = vmatprep.subr.mxu0 0.0
    %1038 = vmatpush1.xpose.msra.mxu0 %v1033
    %1039 = vmatprep.subr.mxu0 0.0
    %1040 = vmatpush1.xpose.msra.mxu0 %v1035
    %1041 = vmatprep.subr.mxu0 0.0
    %1042 = vmatpush1.xpose.msra.mxu0 0.0
    %1043 = vmatprep.subr.mxu0 0.0
    %1044 = vmatpush1.xpose.msra.mxu0 0.0
    %1045 = vmatprep.subr.mxu0 0.0
    %1046 = vmatpush1.xpose.msra.mxu0 0.0
    %1047 = vmatprep.subr.mxu0 0.0
    %1048 = vmatpush1.xpose.msra.mxu0 0.0
    %1049 = vmatprep.subr.mxu0 0.0
    %1050 = vmatpush1.xpose.msra.mxu0 0.0
    %1051 = vmatprep.subr.mxu0 0.0
    %1052 = vmatpush1.xpose.msra.mxu0 0.0
    %1053 = vmatprep.subr.mxu0 0.0
    %1054 = vmatpush1.xpose.msra.mxu0 0.0
    %1055 = vmatprep.subr.mxu0 0.0
    %1056 = vmatpush1.xpose.msra.mxu0 0.0
    %1057 = vmatprep.subr.mxu0 0.0
    %1058 = vmatpush1.xpose.msra.mxu0 0.0
    %1059 = vmatprep.subr.mxu0 0.0
    %1060 = vmatpush1.xpose.msra.mxu0 0.0
    %1061 = vmatprep.subr.mxu0 0.0
    %1062 = vmatpush1.xpose.msra.mxu0 0.0
    %1063 = vmatprep.subr.mxu0 0.0
    %1064 = vmatpush1.xpose.msra.mxu0 0.0
    %1065 = vmatprep.subr.mxu0 0.0
    %1066 = vmatpush1.xpose.msra.mxu0 0.0
    %1067 = vmatprep.subr.mxu0 0.0
    %1068 = vmatpush1.xpose.msra.mxu0 0.0
    %1069 = vmatprep.subr.mxu0 0.0
    %1070 = vmatpush1.xpose.msra.mxu0 0.0
    %1071 = vmatprep.subr.mxu0 0.0
    %1072 = vmatpush1.xpose.msra.mxu0 0.0
    %1073 = vmatprep.subr.mxu0 0.0
    %1074 = vmatpush1.xpose.msra.mxu0 0.0
    %1075 = vmatprep.subr.mxu0 0.0
    %1076 = vmatpush1.xpose.msra.mxu0 0.0
    %1077 = vmatprep.subr.mxu0 0.0
    %1078 = vmatpush1.xpose.msra.mxu0 0.0
    %1079 = vmatprep.subr.mxu0 0.0
    %1080 = vmatpush1.xpose.msra.mxu0 0.0
    %1081 = vmatprep.subr.mxu0 0.0
    %1082 = vmatpush1.xpose.msra.mxu0 0.0
    %1083 = vmatprep.subr.mxu0 0.0
    %1084 = vmatpush1.xpose.msra.mxu0 0.0
    %1085 = vmatprep.subr.mxu0 0.0
    %1086 = vmatpush1.xpose.msra.mxu0 0.0
    %1087 = vmatprep.subr.mxu0 0.0
    %1088 = vmatpush1.xpose.msra.mxu0 0.0
    %1089 = vmatprep.subr.mxu0 0.0
    %1090 = vmatpush1.xpose.msra.mxu0 0.0
    %1091 = vmatprep.subr.mxu0 0.0
    %1092 = vmatpush1.xpose.msra.mxu0 0.0
    %1093 = vmatprep.subr.mxu0 0.0
    %1094 = vmatpush1.xpose.msra.mxu0 0.0
    %1095 = vmatprep.subr.mxu0 0.0
    %1096 = vmatpush1.xpose.msra.mxu0 0.0
    %1097 = vmatprep.subr.mxu0 0.0
    %1098 = vmatpush1.xpose.msra.mxu0 0.0
    %1099 = vmatprep.subr.mxu0 0.0
    %1100 = vmatpush1.xpose.msra.mxu0 0.0
    %1101 = vmatprep.mubr.f32.mxu0 0.0
    %1102 = vmatmul.mubr.f32.gmra.mrb[0].mxu0 %v1029
    %v1103 = vpop.f32.mrb[0].mxu0
    %v1104 = vadd.f32 0.0, %v1103
    %v1105 = vpop.f32.mrb[0].mxu0
    %1106 = vmatprep.mubr.f32.mxu0 0.0
    %1107 = vmatmul.mubr.f32.gmra.mrb[0].mxu0 %v1031
    %v1108 = vpop.f32.mrb[0].mxu0
    %v1109 = vadd.f32 0.0, %v1108
    %v1110 = vpop.f32.mrb[0].mxu0
    %1111 = vdwg.mxu0
    %v1112 = vmul.f32 %v1013, 0.25
    %v1113 = vmul.f32 %v1018, 0.25
    %v1114 = vmul.f32 %v1104, 0.25
    %v1115 = vmul.f32 %v1109, 0.25
    %v1116 = vadd.f32 %v1112, %v713
    %v1117 = vadd.f32 %v1113, %v713
    %v1118 = vadd.f32 %v1114, %v717
    %v1119 = vadd.f32 %v1115, %v717
    %v1120 = vsel %vm531, %v1116, -inf
    %1121 = vmax.xlane.f32.xlu0 %v1120
    %v1122 = vpop.xlane.xlu0 %1121
    %v1123 = vsel %vm531, %v1117, -inf
    %1124 = vmax.xlane.f32.xlu0 %v1123
    %v1125 = vpop.xlane.xlu0 %1124
    %v1126 = vsel %vm531, %v1118, -inf
    %1127 = vmax.xlane.f32.xlu0 %v1126
    %v1128 = vpop.xlane.xlu0 %1127
    %v1129 = vsel %vm531, %v1119, -inf
    %1130 = vmax.xlane.f32.xlu0 %v1129
    %v1131 = vpop.xlane.xlu0 %1130
    %v1132 = vsub.f32 %v1116, %v1122
    %v1133 = vsub.f32 %v1117, %v1125
    %v1134 = vsub.f32 %v1118, %v1128
    %v1135 = vsub.f32 %v1119, %v1131
    %v1136 = vmul.f32 %v1132, 1.442695
    %v1137 = vpow.pop %v1136
    %v1138 = vmul.f32 %v1133, 1.442695
    %v1139 = vpow.pop %v1138
    %v1140 = vmul.f32 %v1134, 1.442695
    %v1141 = vpow.pop %v1140
    %v1142 = vmul.f32 %v1135, 1.442695
    %v1143 = vpow.pop %v1142
    %v1144 = vsel %vm531, %v1137, 0.0
    %1145 = vadd.xlane.f32.xlu0 %v1144
    %v1146 = vpop.xlane.xlu0 %1145
    %v1147 = vsel %vm531, %v1139, 0.0
    %1148 = vadd.xlane.f32.xlu0 %v1147
    %v1149 = vpop.xlane.xlu0 %1148
    %v1150 = vsel %vm531, %v1141, 0.0
    %1151 = vadd.xlane.f32.xlu0 %v1150
    %v1152 = vpop.xlane.xlu0 %1151
    %v1153 = vsel %vm531, %v1143, 0.0
    %1154 = vadd.xlane.f32.xlu0 %v1153
    %v1155 = vpop.xlane.xlu0 %1154
    %v1156 = vrcp.pop %v1146
    %v1157 = vrcp.pop %v1149
    %v1158 = vrcp.pop %v1152
    %v1159 = vrcp.pop %v1155
    %v1160 = vmul.f32 %v1137, %v1156
    %v1161 = vmul.f32 %v1139, %v1157
    %v1162 = vmul.f32 %v1141, %v1158
    %v1163 = vmul.f32 %v1143, %v1159
    %1166 = vrot.lane.b32.xlu0 %v513, 112
    %v1167 = vpop.permute.xlu0 %1166
    %1168 = vrot.lane.b32.xlu0 %v518, 112
    %v1169 = vpop.permute.xlu0 %1168
    %v1173 = vsel %vm531, %v1160, 0
    %v1176 = vsel %vm531, %v1161, 0
    %1178 = vmatprep.subr.mxu0 0.0
    %1179 = vmatpush1.msra.mxu0 %v1167
    %1180 = vmatprep.subr.mxu0 0.0
    %1181 = vmatpush1.msra.mxu0 %v1169
    %1182 = vmatprep.subr.mxu0 0.0
    %1183 = vmatpush1.msra.mxu0 0.0
    %1184 = vmatprep.subr.mxu0 0.0
    %1185 = vmatpush1.msra.mxu0 0.0
    %1186 = vmatprep.subr.mxu0 0.0
    %1187 = vmatpush1.msra.mxu0 0.0
    %1188 = vmatprep.subr.mxu0 0.0
    %1189 = vmatpush1.msra.mxu0 0.0
    %1190 = vmatprep.subr.mxu0 0.0
    %1191 = vmatpush1.msra.mxu0 0.0
    %1192 = vmatprep.subr.mxu0 0.0
    %1193 = vmatpush1.msra.mxu0 0.0
    %1194 = vmatprep.subr.mxu0 0.0
    %1195 = vmatpush1.msra.mxu0 0.0
    %1196 = vmatprep.subr.mxu0 0.0
    %1197 = vmatpush1.msra.mxu0 0.0
    %1198 = vmatprep.subr.mxu0 0.0
    %1199 = vmatpush1.msra.mxu0 0.0
    %1200 = vmatprep.subr.mxu0 0.0
    %1201 = vmatpush1.msra.mxu0 0.0
    %1202 = vmatprep.subr.mxu0 0.0
    %1203 = vmatpush1.msra.mxu0 0.0
    %1204 = vmatprep.subr.mxu0 0.0
    %1205 = vmatpush1.msra.mxu0 0.0
    %1206 = vmatprep.subr.mxu0 0.0
    %1207 = vmatpush1.msra.mxu0 0.0
    %1208 = vmatprep.subr.mxu0 0.0
    %1209 = vmatpush1.msra.mxu0 0.0
    %1210 = vmatprep.subr.mxu0 0.0
    %1211 = vmatpush1.msra.mxu0 0.0
    %1212 = vmatprep.subr.mxu0 0.0
    %1213 = vmatpush1.msra.mxu0 0.0
    %1214 = vmatprep.subr.mxu0 0.0
    %1215 = vmatpush1.msra.mxu0 0.0
    %1216 = vmatprep.subr.mxu0 0.0
    %1217 = vmatpush1.msra.mxu0 0.0
    %1218 = vmatprep.subr.mxu0 0.0
    %1219 = vmatpush1.msra.mxu0 0.0
    %1220 = vmatprep.subr.mxu0 0.0
    %1221 = vmatpush1.msra.mxu0 0.0
    %1222 = vmatprep.subr.mxu0 0.0
    %1223 = vmatpush1.msra.mxu0 0.0
    %1224 = vmatprep.subr.mxu0 0.0
    %1225 = vmatpush1.msra.mxu0 0.0
    %1226 = vmatprep.subr.mxu0 0.0
    %1227 = vmatpush1.msra.mxu0 0.0
    %1228 = vmatprep.subr.mxu0 0.0
    %1229 = vmatpush1.msra.mxu0 0.0
    %1230 = vmatprep.subr.mxu0 0.0
    %1231 = vmatpush1.msra.mxu0 0.0
    %1232 = vmatprep.subr.mxu0 0.0
    %1233 = vmatpush1.msra.mxu0 0.0
    %1234 = vmatprep.subr.mxu0 0.0
    %1235 = vmatpush1.msra.mxu0 0.0
    %1236 = vmatprep.subr.mxu0 0.0
    %1237 = vmatpush1.msra.mxu0 0.0
    %1238 = vmatprep.subr.mxu0 0.0
    %1239 = vmatpush1.msra.mxu0 0.0
    %1240 = vmatprep.subr.mxu0 0.0
    %1241 = vmatpush1.msra.mxu0 0.0
    %1242 = vmatprep.mubr.f32.mxu0 0.0
    %1243 = vmatmul.mubr.f32.gmra.mrb[0].mxu0 %v1173
    %v1244 = vpop.f32.mrb[0].mxu0
    %v1245 = vadd.f32 0.0, %v1244
    %v1246 = vpop.f32.mrb[0].mxu0
    %1247 = vmatprep.mubr.f32.mxu0 0.0
    %1248 = vmatmul.mubr.f32.gmra.mrb[0].mxu0 %v1176
    %v1249 = vpop.f32.mrb[0].mxu0
    %v1250 = vadd.f32 0.0, %v1249
    %v1251 = vpop.f32.mrb[0].mxu0
    %1252 = vdwg.mxu0
    %1255 = vrot.lane.b32.xlu0 %v523, 112
    %v1256 = vpop.permute.xlu0 %1255
    %1257 = vrot.lane.b32.xlu0 %v528, 112
    %v1258 = vpop.permute.xlu0 %1257
    %v1262 = vsel %vm531, %v1162, 0
    %v1265 = vsel %vm531, %v1163, 0
    %1267 = vmatprep.subr.mxu0 0.0
    %1268 = vmatpush1.msra.mxu0 %v1256
    %1269 = vmatprep.subr.mxu0 0.0
    %1270 = vmatpush1.msra.mxu0 %v1258
    %1271 = vmatprep.subr.mxu0 0.0
    %1272 = vmatpush1.msra.mxu0 0.0
    %1273 = vmatprep.subr.mxu0 0.0
    %1274 = vmatpush1.msra.mxu0 0.0
    %1275 = vmatprep.subr.mxu0 0.0
    %1276 = vmatpush1.msra.mxu0 0.0
    %1277 = vmatprep.subr.mxu0 0.0
    %1278 = vmatpush1.msra.mxu0 0.0
    %1279 = vmatprep.subr.mxu0 0.0
    %1280 = vmatpush1.msra.mxu0 0.0
    %1281 = vmatprep.subr.mxu0 0.0
    %1282 = vmatpush1.msra.mxu0 0.0
    %1283 = vmatprep.subr.mxu0 0.0
    %1284 = vmatpush1.msra.mxu0 0.0
    %1285 = vmatprep.subr.mxu0 0.0
    %1286 = vmatpush1.msra.mxu0 0.0
    %1287 = vmatprep.subr.mxu0 0.0
    %1288 = vmatpush1.msra.mxu0 0.0
    %1289 = vmatprep.subr.mxu0 0.0
    %1290 = vmatpush1.msra.mxu0 0.0
    %1291 = vmatprep.subr.mxu0 0.0
    %1292 = vmatpush1.msra.mxu0 0.0
    %1293 = vmatprep.subr.mxu0 0.0
    %1294 = vmatpush1.msra.mxu0 0.0
    %1295 = vmatprep.subr.mxu0 0.0
    %1296 = vmatpush1.msra.mxu0 0.0
    %1297 = vmatprep.subr.mxu0 0.0
    %1298 = vmatpush1.msra.mxu0 0.0
    %1299 = vmatprep.subr.mxu0 0.0
    %1300 = vmatpush1.msra.mxu0 0.0
    %1301 = vmatprep.subr.mxu0 0.0
    %1302 = vmatpush1.msra.mxu0 0.0
    %1303 = vmatprep.subr.mxu0 0.0
    %1304 = vmatpush1.msra.mxu0 0.0
    %1305 = vmatprep.subr.mxu0 0.0
    %1306 = vmatpush1.msra.mxu0 0.0
    %1307 = vmatprep.subr.mxu0 0.0
    %1308 = vmatpush1.msra.mxu0 0.0
    %1309 = vmatprep.subr.mxu0 0.0
    %1310 = vmatpush1.msra.mxu0 0.0
    %1311 = vmatprep.subr.mxu0 0.0
    %1312 = vmatpush1.msra.mxu0 0.0
    %1313 = vmatprep.subr.mxu0 0.0
    %1314 = vmatpush1.msra.mxu0 0.0
    %1315 = vmatprep.subr.mxu0 0.0
    %1316 = vmatpush1.msra.mxu0 0.0
    %1317 = vmatprep.subr.mxu0 0.0
    %1318 = vmatpush1.msra.mxu0 0.0
    %1319 = vmatprep.subr.mxu0 0.0
    %1320 = vmatpush1.msra.mxu0 0.0
    %1321 = vmatprep.subr.mxu0 0.0
    %1322 = vmatpush1.msra.mxu0 0.0
    %1323 = vmatprep.subr.mxu0 0.0
    %1324 = vmatpush1.msra.mxu0 0.0
    %1325 = vmatprep.subr.mxu0 0.0
    %1326 = vmatpush1.msra.mxu0 0.0
    %1327 = vmatprep.subr.mxu0 0.0
    %1328 = vmatpush1.msra.mxu0 0.0
    %1329 = vmatprep.subr.mxu0 0.0
    %1330 = vmatpush1.msra.mxu0 0.0
    %1331 = vmatprep.mubr.f32.mxu0 0.0
    %1332 = vmatmul.mubr.f32.gmra.mrb[0].mxu0 %v1262
    %v1333 = vpop.f32.mrb[0].mxu0
    %v1334 = vadd.f32 0.0, %v1333
    %v1335 = vpop.f32.mrb[0].mxu0
    %1336 = vmatprep.mubr.f32.mxu0 0.0
    %1337 = vmatmul.mubr.f32.gmra.mrb[0].mxu0 %v1265
    %v1338 = vpop.f32.mrb[0].mxu0
    %v1339 = vadd.f32 0.0, %v1338
    %v1340 = vpop.f32.mrb[0].mxu0
    %1341 = vdwg.mxu0
    %1346 = vrot.lane.b32.xlu0 %v1245, 16
    %v1347 = vpop.permute.xlu0 %1346
    %1348 = vrot.lane.b32.xlu0 %v1250, 16
    %v1349 = vpop.permute.xlu0 %1348
    %1350 = vrot.lane.b32.xlu0 %v1334, 16
    %v1351 = vpop.permute.xlu0 %1350
    %1352 = vrot.lane.b32.xlu0 %v1339, 16
    %v1353 = vpop.permute.xlu0 %1352
    %v1358 = vsel %vm531, %v841, %v1347
    %v1359 = vsel %vm531, %v846, %v1349
    %v1360 = vsel %vm531, %v922, %v1351
    %v1361 = vsel %vm531, %v927, %v1353
    %v1362 = vld [vmem:[%s27] sm:$0xff]
    %v1363 = vld [vmem:[%s27 + $0x8] sm:$0xff]
    %v1364 = vld [vmem:[%s27 + $0x10] sm:$0xff]
    %v1365 = vld [vmem:[%s27 + $0x18] sm:$0xff]
    %v1366 = vld [vmem:[%s29] sm:$0x1]
    %v1368 = vlaneseq
    %v1369 = vshrl.u32 %v1368, 7
    %v1370 = vsub.s32 0, %v1369
    %v1371 = vrot.slane %v1366, %v1370
    %v1374 = vsel %vm133, %v1358, 0
    %v1377 = vsel %vm133, %v1359, 0
    %v1380 = vsel %vm133, %v1360, 0
    %v1383 = vsel %vm133, %v1361, 0
    %1385 = vmatprep.subr.mxu0 0.0
    %1386 = vmatpush1.msra.mxu0 %v1362
    %1387 = vmatprep.subr.mxu0 0.0
    %1388 = vmatpush1.msra.mxu0 %v1363
    %1389 = vmatprep.subr.mxu0 0.0
    %1390 = vmatpush1.msra.mxu0 %v1364
    %1391 = vmatprep.subr.mxu0 0.0
    %1392 = vmatpush1.msra.mxu0 %v1365
    %1393 = vmatprep.subr.mxu0 0.0
    %1394 = vmatpush1.msra.mxu0 0.0
    %1395 = vmatprep.subr.mxu0 0.0
    %1396 = vmatpush1.msra.mxu0 0.0
    %1397 = vmatprep.subr.mxu0 0.0
    %1398 = vmatpush1.msra.mxu0 0.0
    %1399 = vmatprep.subr.mxu0 0.0
    %1400 = vmatpush1.msra.mxu0 0.0
    %1401 = vmatprep.subr.mxu0 0.0
    %1402 = vmatpush1.msra.mxu0 0.0
    %1403 = vmatprep.subr.mxu0 0.0
    %1404 = vmatpush1.msra.mxu0 0.0
    %1405 = vmatprep.subr.mxu0 0.0
    %1406 = vmatpush1.msra.mxu0 0.0
    %1407 = vmatprep.subr.mxu0 0.0
    %1408 = vmatpush1.msra.mxu0 0.0
    %1409 = vmatprep.subr.mxu0 0.0
    %1410 = vmatpush1.msra.mxu0 0.0
    %1411 = vmatprep.subr.mxu0 0.0
    %1412 = vmatpush1.msra.mxu0 0.0
    %1413 = vmatprep.subr.mxu0 0.0
    %1414 = vmatpush1.msra.mxu0 0.0
    %1415 = vmatprep.subr.mxu0 0.0
    %1416 = vmatpush1.msra.mxu0 0.0
    %1417 = vmatprep.subr.mxu0 0.0
    %1418 = vmatpush1.msra.mxu0 0.0
    %1419 = vmatprep.subr.mxu0 0.0
    %1420 = vmatpush1.msra.mxu0 0.0
    %1421 = vmatprep.subr.mxu0 0.0
    %1422 = vmatpush1.msra.mxu0 0.0
    %1423 = vmatprep.subr.mxu0 0.0
    %1424 = vmatpush1.msra.mxu0 0.0
    %1425 = vmatprep.subr.mxu0 0.0
    %1426 = vmatpush1.msra.mxu0 0.0
    %1427 = vmatprep.subr.mxu0 0.0
    %1428 = vmatpush1.msra.mxu0 0.0
    %1429 = vmatprep.subr.mxu0 0.0
    %1430 = vmatpush1.msra.mxu0 0.0
    %1431 = vmatprep.subr.mxu0 0.0
    %1432 = vmatpush1.msra.mxu0 0.0
    %1433 = vmatprep.subr.mxu0 0.0
    %1434 = vmatpush1.msra.mxu0 0.0
    %1435 = vmatprep.subr.mxu0 0.0
    %1436 = vmatpush1.msra.mxu0 0.0
    %1437 = vmatprep.subr.mxu0 0.0
    %1438 = vmatpush1.msra.mxu0 0.0
    %1439 = vmatprep.subr.mxu0 0.0
    %1440 = vmatpush1.msra.mxu0 0.0
    %1441 = vmatprep.subr.mxu0 0.0
    %1442 = vmatpush1.msra.mxu0 0.0
    %1443 = vmatprep.subr.mxu0 0.0
    %1444 = vmatpush1.msra.mxu0 0.0
    %1445 = vmatprep.subr.mxu0 0.0
    %1446 = vmatpush1.msra.mxu0 0.0
    %1447 = vmatprep.subr.mxu0 0.0
    %1448 = vmatpush1.msra.mxu0 0.0
    %1449 = vmatprep.mubr.f32.mxu0 0.0
    %1450 = vmatmul.mubr.f32.gmra.mrb[0].mxu0 %v1374
    %v1451 = vpop.f32.mrb[0].mxu0
    %v1452 = vadd.f32 %v1371, %v1451
    %v1453 = vpop.f32.mrb[0].mxu0
    %1454 = vmatprep.mubr.f32.mxu0 0.0
    %1455 = vmatmul.mubr.f32.gmra.mrb[0].mxu0 %v1377
    %v1456 = vpop.f32.mrb[0].mxu0
    %v1457 = vadd.f32 %v1371, %v1456
    %v1458 = vpop.f32.mrb[0].mxu0
    %1459 = vmatprep.mubr.f32.mxu0 0.0
    %1460 = vmatmul.mubr.f32.gmra.mrb[0].mxu0 %v1380
    %v1461 = vpop.f32.mrb[0].mxu0
    %v1462 = vadd.f32 %v1371, %v1461
    %v1463 = vpop.f32.mrb[0].mxu0
    %1464 = vmatprep.mubr.f32.mxu0 0.0
    %1465 = vmatmul.mubr.f32.gmra.mrb[0].mxu0 %v1383
    %v1466 = vpop.f32.mrb[0].mxu0
    %v1467 = vadd.f32 %v1371, %v1466
    %v1468 = vpop.f32.mrb[0].mxu0
    %1469 = vdwg.mxu0
    %v1470 = vadd.f32 %v203, %v1452
    %v1471 = vadd.f32 %v204, %v1457
    %v1472 = vadd.f32 %v205, %v1462
    %v1473 = vadd.f32 %v206, %v1467
    %v1474 = vld [vmem:[%s31] sm:$0x1]
    %v1475 = vld [vmem:[%s33] sm:$0x1]
    %v1476 = vsel %vm133, %v1470, 0.0
    %1477 = vadd.xlane.f32.xlu0 %v1476
    %v1478 = vpop.xlane.xlu0 %1477
    %v1479 = vsel %vm133, %v1471, 0.0
    %1480 = vadd.xlane.f32.xlu0 %v1479
    %v1481 = vpop.xlane.xlu0 %1480
    %v1482 = vsel %vm133, %v1472, 0.0
    %1483 = vadd.xlane.f32.xlu0 %v1482
    %v1484 = vpop.xlane.xlu0 %1483
    %v1485 = vsel %vm133, %v1473, 0.0
    %1486 = vadd.xlane.f32.xlu0 %v1485
    %v1487 = vpop.xlane.xlu0 %1486
    %v1488 = vmul.f32 %v1478, %v146
    %v1489 = vmul.f32 %v1481, %v146
    %v1490 = vmul.f32 %v1484, %v146
    %v1491 = vmul.f32 %v1487, %v146
    %v1492 = vsub.f32 %v1470, %v1488
    %v1493 = vsub.f32 %v1471, %v1489
    %v1494 = vsub.f32 %v1472, %v1490
    %v1495 = vsub.f32 %v1473, %v1491
    %v1496 = vmul.f32 %v1492, %v1492
    %v1497 = vmul.f32 %v1493, %v1493
    %v1498 = vmul.f32 %v1494, %v1494
    %v1499 = vmul.f32 %v1495, %v1495
    %v1500 = vsel %vm133, %v1496, 0.0
    %1501 = vadd.xlane.f32.xlu0 %v1500
    %v1502 = vpop.xlane.xlu0 %1501
    %v1503 = vsel %vm133, %v1497, 0.0
    %1504 = vadd.xlane.f32.xlu0 %v1503
    %v1505 = vpop.xlane.xlu0 %1504
    %v1506 = vsel %vm133, %v1498, 0.0
    %1507 = vadd.xlane.f32.xlu0 %v1506
    %v1508 = vpop.xlane.xlu0 %1507
    %v1509 = vsel %vm133, %v1499, 0.0
    %1510 = vadd.xlane.f32.xlu0 %v1509
    %v1511 = vpop.xlane.xlu0 %1510
    %v1512 = vmul.f32 %v1502, %v146
    %v1513 = vmul.f32 %v1505, %v146
    %v1514 = vmul.f32 %v1508, %v146
    %v1515 = vmul.f32 %v1511, %v146
    %v1516 = vadd.f32 %v1512, 1e-12
    %v1517 = vadd.f32 %v1513, 1e-12
    %v1518 = vadd.f32 %v1514, 1e-12
    %v1519 = vadd.f32 %v1515, 1e-12
    %v1520 = vrsqrt.pop %v1516
    %v1521 = vrsqrt.pop %v1517
    %v1522 = vrsqrt.pop %v1518
    %v1523 = vrsqrt.pop %v1519
    %v1524 = vmul.f32 %v1492, %v1520
    %v1525 = vmul.f32 %v1493, %v1521
    %v1526 = vmul.f32 %v1494, %v1522
    %v1527 = vmul.f32 %v1495, %v1523
    %v1529 = vlaneseq
    %v1530 = vshrl.u32 %v1529, 7
    %v1531 = vsub.s32 0, %v1530
    %v1532 = vrot.slane %v1474, %v1531
    %v1534 = vmul.f32 %v1524, %v1532
    %v1535 = vmul.f32 %v1525, %v1532
    %v1536 = vmul.f32 %v1526, %v1532
    %v1537 = vmul.f32 %v1527, %v1532
    %v1539 = vlaneseq
    %v1540 = vshrl.u32 %v1539, 7
    %v1541 = vsub.s32 0, %v1540
    %v1542 = vrot.slane %v1475, %v1541
    %v1544 = vadd.f32 %v1534, %v1542
    %v1545 = vadd.f32 %v1535, %v1542
    %v1546 = vadd.f32 %v1536, %v1542
    %v1547 = vadd.f32 %v1537, %v1542
    %v1548 = vld [vmem:[%s35] sm:$0xff]
    %v1549 = vld [vmem:[%s35 + $0x8] sm:$0xff]
    %v1550 = vld [vmem:[%s35 + $0x10] sm:$0xff]
    %v1551 = vld [vmem:[%s35 + $0x18] sm:$0xff]
    %v1552 = vld [vmem:[%s37] sm:$0x1]
    %v1554 = vlaneseq
    %v1555 = vshrl.u32 %v1554, 7
    %v1556 = vsub.s32 0, %v1555
    %v1557 = vrot.slane %v1552, %v1556
    %v1560 = vsel %vm133, %v1544, 0
    %v1563 = vsel %vm133, %v1545, 0
    %v1566 = vsel %vm133, %v1546, 0
    %v1569 = vsel %vm133, %v1547, 0
    %1571 = vmatprep.subr.mxu0 0.0
    %1572 = vmatpush1.msra.mxu0 %v1548
    %1573 = vmatprep.subr.mxu0 0.0
    %1574 = vmatpush1.msra.mxu0 %v1549
    %1575 = vmatprep.subr.mxu0 0.0
    %1576 = vmatpush1.msra.mxu0 %v1550
    %1577 = vmatprep.subr.mxu0 0.0
    %1578 = vmatpush1.msra.mxu0 %v1551
    %1579 = vmatprep.subr.mxu0 0.0
    %1580 = vmatpush1.msra.mxu0 0.0
    %1581 = vmatprep.subr.mxu0 0.0
    %1582 = vmatpush1.msra.mxu0 0.0
    %1583 = vmatprep.subr.mxu0 0.0
    %1584 = vmatpush1.msra.mxu0 0.0
    %1585 = vmatprep.subr.mxu0 0.0
    %1586 = vmatpush1.msra.mxu0 0.0
    %1587 = vmatprep.subr.mxu0 0.0
    %1588 = vmatpush1.msra.mxu0 0.0
    %1589 = vmatprep.subr.mxu0 0.0
    %1590 = vmatpush1.msra.mxu0 0.0
    %1591 = vmatprep.subr.mxu0 0.0
    %1592 = vmatpush1.msra.mxu0 0.0
    %1593 = vmatprep.subr.mxu0 0.0
    %1594 = vmatpush1.msra.mxu0 0.0
    %1595 = vmatprep.subr.mxu0 0.0
    %1596 = vmatpush1.msra.mxu0 0.0
    %1597 = vmatprep.subr.mxu0 0.0
    %1598 = vmatpush1.msra.mxu0 0.0
    %1599 = vmatprep.subr.mxu0 0.0
    %1600 = vmatpush1.msra.mxu0 0.0
    %1601 = vmatprep.subr.mxu0 0.0
    %1602 = vmatpush1.msra.mxu0 0.0
    %1603 = vmatprep.subr.mxu0 0.0
    %1604 = vmatpush1.msra.mxu0 0.0
    %1605 = vmatprep.subr.mxu0 0.0
    %1606 = vmatpush1.msra.mxu0 0.0
    %1607 = vmatprep.subr.mxu0 0.0
    %1608 = vmatpush1.msra.mxu0 0.0
    %1609 = vmatprep.subr.mxu0 0.0
    %1610 = vmatpush1.msra.mxu0 0.0
    %1611 = vmatprep.subr.mxu0 0.0
    %1612 = vmatpush1.msra.mxu0 0.0
    %1613 = vmatprep.subr.mxu0 0.0
    %1614 = vmatpush1.msra.mxu0 0.0
    %1615 = vmatprep.subr.mxu0 0.0
    %1616 = vmatpush1.msra.mxu0 0.0
    %1617 = vmatprep.subr.mxu0 0.0
    %1618 = vmatpush1.msra.mxu0 0.0
    %1619 = vmatprep.subr.mxu0 0.0
    %1620 = vmatpush1.msra.mxu0 0.0
    %1621 = vmatprep.subr.mxu0 0.0
    %1622 = vmatpush1.msra.mxu0 0.0
    %1623 = vmatprep.subr.mxu0 0.0
    %1624 = vmatpush1.msra.mxu0 0.0
    %1625 = vmatprep.subr.mxu0 0.0
    %1626 = vmatpush1.msra.mxu0 0.0
    %1627 = vmatprep.subr.mxu0 0.0
    %1628 = vmatpush1.msra.mxu0 0.0
    %1629 = vmatprep.subr.mxu0 0.0
    %1630 = vmatpush1.msra.mxu0 0.0
    %1631 = vmatprep.subr.mxu0 0.0
    %1632 = vmatpush1.msra.mxu0 0.0
    %1633 = vmatprep.subr.mxu0 0.0
    %1634 = vmatpush1.msra.mxu0 0.0
    %1635 = vmatprep.mubr.f32.mxu0 0.0
    %1636 = vmatmul.mubr.f32.gmra.mrb[0].mxu0 %v1560
    %v1637 = vpop.f32.mrb[0].mxu0
    %v1638 = vadd.f32 %v1557, %v1637
    %v1639 = vpop.f32.mrb[0].mxu0
    %1640 = vmatprep.mubr.f32.mxu0 0.0
    %1641 = vmatmul.mubr.f32.gmra.mrb[0].mxu0 %v1563
    %v1642 = vpop.f32.mrb[0].mxu0
    %v1643 = vadd.f32 %v1557, %v1642
    %v1644 = vpop.f32.mrb[0].mxu0
    %1645 = vmatprep.mubr.f32.mxu0 0.0
    %1646 = vmatmul.mubr.f32.gmra.mrb[0].mxu0 %v1566
    %v1647 = vpop.f32.mrb[0].mxu0
    %v1648 = vadd.f32 %v1557, %v1647
    %v1649 = vpop.f32.mrb[0].mxu0
    %1650 = vmatprep.mubr.f32.mxu0 0.0
    %1651 = vmatmul.mubr.f32.gmra.mrb[0].mxu0 %v1569
    %v1652 = vpop.f32.mrb[0].mxu0
    %v1653 = vadd.f32 %v1557, %v1652
    %v1654 = vpop.f32.mrb[0].mxu0
    %1655 = vdwg.mxu0
    %v1656 = vmul.f32 %v1638, 0.5
    %v1657 = vmul.f32 %v1643, 0.5
    %v1658 = vmul.f32 %v1648, 0.5
    %v1659 = vmul.f32 %v1653, 0.5
    %v1660 = vmul.f32 %v1638, 0.044715
    %v1661 = vmul.f32 %v1643, 0.044715
    %v1662 = vmul.f32 %v1648, 0.044715
    %v1663 = vmul.f32 %v1653, 0.044715
    %v1664 = vmul.f32 %v1660, %v1638
    %v1665 = vmul.f32 %v1661, %v1643
    %v1666 = vmul.f32 %v1662, %v1648
    %v1667 = vmul.f32 %v1663, %v1653
    %v1668 = vmul.f32 %v1664, %v1638
    %v1669 = vmul.f32 %v1665, %v1643
    %v1670 = vmul.f32 %v1666, %v1648
    %v1671 = vmul.f32 %v1667, %v1653
    %v1672 = vadd.f32 %v1638, %v1668
    %v1673 = vadd.f32 %v1643, %v1669
    %v1674 = vadd.f32 %v1648, %v1670
    %v1675 = vadd.f32 %v1653, %v1671
    %v1676 = vmul.f32 %v1672, 0.7978846
    %v1677 = vmul.f32 %v1673, 0.7978846
    %v1678 = vmul.f32 %v1674, 0.7978846
    %v1679 = vmul.f32 %v1675, 0.7978846
    %v1680 = vtanh.pop %v1676
    %v1681 = vtanh.pop %v1677
    %v1682 = vtanh.pop %v1678
    %v1683 = vtanh.pop %v1679
    %v1684 = vadd.f32 %v1680, 1.0
    %v1685 = vadd.f32 %v1681, 1.0
    %v1686 = vadd.f32 %v1682, 1.0
    %v1687 = vadd.f32 %v1683, 1.0
    %v1688 = vmul.f32 %v1656, %v1684
    %v1689 = vmul.f32 %v1657, %v1685
    %v1690 = vmul.f32 %v1658, %v1686
    %v1691 = vmul.f32 %v1659, %v1687
    %v1692 = vld [vmem:[%s39] sm:$0xff]
    %v1693 = vld [vmem:[%s39 + $0x8] sm:$0xff]
    %v1694 = vld [vmem:[%s39 + $0x10] sm:$0xff]
    %v1695 = vld [vmem:[%s39 + $0x18] sm:$0xff]
    %v1696 = vld [vmem:[%s39 + $0x20] sm:$0xff]
    %v1697 = vld [vmem:[%s39 + $0x28] sm:$0xff]
    %v1698 = vld [vmem:[%s39 + $0x30] sm:$0xff]
    %v1699 = vld [vmem:[%s39 + $0x38] sm:$0xff]
    %v1700 = vld [vmem:[%s41] sm:$0x1]
    %v1702 = vlaneseq
    %v1703 = vshrl.u32 %v1702, 7
    %v1704 = vsub.s32 0, %v1703
    %v1705 = vrot.slane %v1700, %v1704
    %vm1707 = vcmask 523264
    %v1709 = vsel %vm1707, %v1688, 0
    %v1712 = vsel %vm1707, %v1689, 0
    %v1715 = vsel %vm1707, %v1690, 0
    %v1718 = vsel %vm1707, %v1691, 0
    %1720 = vmatprep.subr.mxu0 0.0
    %1721 = vmatpush1.msra.mxu0 %v1692
    %1722 = vmatprep.subr.mxu0 0.0
    %1723 = vmatpush1.msra.mxu0 %v1693
    %1724 = vmatprep.subr.mxu0 0.0
    %1725 = vmatpush1.msra.mxu0 %v1694
    %1726 = vmatprep.subr.mxu0 0.0
    %1727 = vmatpush1.msra.mxu0 %v1695
    %1728 = vmatprep.subr.mxu0 0.0
    %1729 = vmatpush1.msra.mxu0 %v1696
    %1730 = vmatprep.subr.mxu0 0.0
    %1731 = vmatpush1.msra.mxu0 %v1697
    %1732 = vmatprep.subr.mxu0 0.0
    %1733 = vmatpush1.msra.mxu0 %v1698
    %1734 = vmatprep.subr.mxu0 0.0
    %1735 = vmatpush1.msra.mxu0 %v1699
    %1736 = vmatprep.subr.mxu0 0.0
    %1737 = vmatpush1.msra.mxu0 0.0
    %1738 = vmatprep.subr.mxu0 0.0
    %1739 = vmatpush1.msra.mxu0 0.0
    %1740 = vmatprep.subr.mxu0 0.0
    %1741 = vmatpush1.msra.mxu0 0.0
    %1742 = vmatprep.subr.mxu0 0.0
    %1743 = vmatpush1.msra.mxu0 0.0
    %1744 = vmatprep.subr.mxu0 0.0
    %1745 = vmatpush1.msra.mxu0 0.0
    %1746 = vmatprep.subr.mxu0 0.0
    %1747 = vmatpush1.msra.mxu0 0.0
    %1748 = vmatprep.subr.mxu0 0.0
    %1749 = vmatpush1.msra.mxu0 0.0
    %1750 = vmatprep.subr.mxu0 0.0
    %1751 = vmatpush1.msra.mxu0 0.0
    %1752 = vmatprep.subr.mxu0 0.0
    %1753 = vmatpush1.msra.mxu0 0.0
    %1754 = vmatprep.subr.mxu0 0.0
    %1755 = vmatpush1.msra.mxu0 0.0
    %1756 = vmatprep.subr.mxu0 0.0
    %1757 = vmatpush1.msra.mxu0 0.0
    %1758 = vmatprep.subr.mxu0 0.0
    %1759 = vmatpush1.msra.mxu0 0.0
    %1760 = vmatprep.subr.mxu0 0.0
    %1761 = vmatpush1.msra.mxu0 0.0
    %1762 = vmatprep.subr.mxu0 0.0
    %1763 = vmatpush1.msra.mxu0 0.0
    %1764 = vmatprep.subr.mxu0 0.0
    %1765 = vmatpush1.msra.mxu0 0.0
    %1766 = vmatprep.subr.mxu0 0.0
    %1767 = vmatpush1.msra.mxu0 0.0
    %1768 = vmatprep.subr.mxu0 0.0
    %1769 = vmatpush1.msra.mxu0 0.0
    %1770 = vmatprep.subr.mxu0 0.0
    %1771 = vmatpush1.msra.mxu0 0.0
    %1772 = vmatprep.subr.mxu0 0.0
    %1773 = vmatpush1.msra.mxu0 0.0
    %1774 = vmatprep.subr.mxu0 0.0
    %1775 = vmatpush1.msra.mxu0 0.0
    %1776 = vmatprep.subr.mxu0 0.0
    %1777 = vmatpush1.msra.mxu0 0.0
    %1778 = vmatprep.subr.mxu0 0.0
    %1779 = vmatpush1.msra.mxu0 0.0
    %1780 = vmatprep.subr.mxu0 0.0
    %1781 = vmatpush1.msra.mxu0 0.0
    %1782 = vmatprep.subr.mxu0 0.0
    %1783 = vmatpush1.msra.mxu0 0.0
    %1784 = vmatprep.mubr.f32.mxu0 0.0
    %1785 = vmatmul.mubr.f32.gmra.mrb[0].mxu0 %v1709
    %v1786 = vpop.f32.mrb[0].mxu0
    %v1787 = vadd.f32 %v1705, %v1786
    %v1788 = vpop.f32.mrb[0].mxu0
    %1789 = vmatprep.mubr.f32.mxu0 0.0
    %1790 = vmatmul.mubr.f32.gmra.mrb[0].mxu0 %v1712
    %v1791 = vpop.f32.mrb[0].mxu0
    %v1792 = vadd.f32 %v1705, %v1791
    %v1793 = vpop.f32.mrb[0].mxu0
    %1794 = vmatprep.mubr.f32.mxu0 0.0
    %1795 = vmatmul.mubr.f32.gmra.mrb[0].mxu0 %v1715
    %v1796 = vpop.f32.mrb[0].mxu0
    %v1797 = vadd.f32 %v1705, %v1796
    %v1798 = vpop.f32.mrb[0].mxu0
    %1799 = vmatprep.mubr.f32.mxu0 0.0
    %1800 = vmatmul.mubr.f32.gmra.mrb[0].mxu0 %v1718
    %v1801 = vpop.f32.mrb[0].mxu0
    %v1802 = vadd.f32 %v1705, %v1801
    %v1803 = vpop.f32.mrb[0].mxu0
    %1804 = vdwg.mxu0
    %v1805 = vadd.f32 %v1544, %v1787
    %v1806 = vadd.f32 %v1545, %v1792
    %v1807 = vadd.f32 %v1546, %v1797
    %v1808 = vadd.f32 %v1547, %v1802
    %v1809 = vld [vmem:[%s43] sm:$0x1]
    %v1810 = vld [vmem:[%s45] sm:$0x1]
    %v1811 = vsel %vm133, %v1805, 0.0
    %1812 = vadd.xlane.f32.xlu0 %v1811
    %v1813 = vpop.xlane.xlu0 %1812
    %v1814 = vsel %vm133, %v1806, 0.0
    %1815 = vadd.xlane.f32.xlu0 %v1814
    %v1816 = vpop.xlane.xlu0 %1815
    %v1817 = vsel %vm133, %v1807, 0.0
    %1818 = vadd.xlane.f32.xlu0 %v1817
    %v1819 = vpop.xlane.xlu0 %1818
    %v1820 = vsel %vm133, %v1808, 0.0
    %1821 = vadd.xlane.f32.xlu0 %v1820
    %v1822 = vpop.xlane.xlu0 %1821
    %v1823 = vmul.f32 %v1813, %v146
    %v1824 = vmul.f32 %v1816, %v146
    %v1825 = vmul.f32 %v1819, %v146
    %v1826 = vmul.f32 %v1822, %v146
    %v1827 = vsub.f32 %v1805, %v1823
    %v1828 = vsub.f32 %v1806, %v1824
    %v1829 = vsub.f32 %v1807, %v1825
    %v1830 = vsub.f32 %v1808, %v1826
    %v1831 = vmul.f32 %v1827, %v1827
    %v1832 = vmul.f32 %v1828, %v1828
    %v1833 = vmul.f32 %v1829, %v1829
    %v1834 = vmul.f32 %v1830, %v1830
    %v1835 = vsel %vm133, %v1831, 0.0
    %1836 = vadd.xlane.f32.xlu0 %v1835
    %v1837 = vpop.xlane.xlu0 %1836
    %v1838 = vsel %vm133, %v1832, 0.0
    %1839 = vadd.xlane.f32.xlu0 %v1838
    %v1840 = vpop.xlane.xlu0 %1839
    %v1841 = vsel %vm133, %v1833, 0.0
    %1842 = vadd.xlane.f32.xlu0 %v1841
    %v1843 = vpop.xlane.xlu0 %1842
    %v1844 = vsel %vm133, %v1834, 0.0
    %1845 = vadd.xlane.f32.xlu0 %v1844
    %v1846 = vpop.xlane.xlu0 %1845
    %v1847 = vmul.f32 %v1837, %v146
    %v1848 = vmul.f32 %v1840, %v146
    %v1849 = vmul.f32 %v1843, %v146
    %v1850 = vmul.f32 %v1846, %v146
    %v1851 = vadd.f32 %v1847, 1e-12
    %v1852 = vadd.f32 %v1848, 1e-12
    %v1853 = vadd.f32 %v1849, 1e-12
    %v1854 = vadd.f32 %v1850, 1e-12
    %v1855 = vrsqrt.pop %v1851
    %v1856 = vrsqrt.pop %v1852
    %v1857 = vrsqrt.pop %v1853
    %v1858 = vrsqrt.pop %v1854
    %v1859 = vmul.f32 %v1827, %v1855
    %v1860 = vmul.f32 %v1828, %v1856
    %v1861 = vmul.f32 %v1829, %v1857
    %v1862 = vmul.f32 %v1830, %v1858
    %v1864 = vlaneseq
    %v1865 = vshrl.u32 %v1864, 7
    %v1866 = vsub.s32 0, %v1865
    %v1867 = vrot.slane %v1809, %v1866
    %v1869 = vmul.f32 %v1859, %v1867
    %v1870 = vmul.f32 %v1860, %v1867
    %v1871 = vmul.f32 %v1861, %v1867
    %v1872 = vmul.f32 %v1862, %v1867
    %v1874 = vlaneseq
    %v1875 = vshrl.u32 %v1874, 7
    %v1876 = vsub.s32 0, %v1875
    %v1877 = vrot.slane %v1810, %v1876
    %v1879 = vadd.f32 %v1869, %v1877
    %v1880 = vadd.f32 %v1870, %v1877
    %v1881 = vadd.f32 %v1871, %v1877
    %v1882 = vadd.f32 %v1872, %v1877
    %s1883 = scalar_lea.vmem %s15, 32
    %v1884 = vld [vmem:[%s1883] sm:$0xff]
    %v1885 = vld [vmem:[%s1883 + $0x8] sm:$0xff]
    %v1886 = vld [vmem:[%s1883 + $0x10] sm:$0xff]
    %v1887 = vld [vmem:[%s1883 + $0x18] sm:$0xff]
    %s1888 = scalar_lea.vmem %s17, 1
    %v1889 = vld [vmem:[%s1888] sm:$0x1]
    %v1891 = vlaneseq
    %v1892 = vshrl.u32 %v1891, 7
    %v1893 = vsub.s32 0, %v1892
    %v1894 = vrot.slane %v1889, %v1893
    %v1897 = vsel %vm133, %v1879, 0
    %v1900 = vsel %vm133, %v1880, 0
    %v1903 = vsel %vm133, %v1881, 0
    %v1906 = vsel %vm133, %v1882, 0
    %1908 = vmatprep.subr.mxu0 0.0
    %1909 = vmatpush1.msra.mxu0 %v1884
    %1910 = vmatprep.subr.mxu0 0.0
    %1911 = vmatpush1.msra.mxu0 %v1885
    %1912 = vmatprep.subr.mxu0 0.0
    %1913 = vmatpush1.msra.mxu0 %v1886
    %1914 = vmatprep.subr.mxu0 0.0
    %1915 = vmatpush1.msra.mxu0 %v1887
    %1916 = vmatprep.subr.mxu0 0.0
    %1917 = vmatpush1.msra.mxu0 0.0
    %1918 = vmatprep.subr.mxu0 0.0
    %1919 = vmatpush1.msra.mxu0 0.0
    %1920 = vmatprep.subr.mxu0 0.0
    %1921 = vmatpush1.msra.mxu0 0.0
    %1922 = vmatprep.subr.mxu0 0.0
    %1923 = vmatpush1.msra.mxu0 0.0
    %1924 = vmatprep.subr.mxu0 0.0
    %1925 = vmatpush1.msra.mxu0 0.0
    %1926 = vmatprep.subr.mxu0 0.0
    %1927 = vmatpush1.msra.mxu0 0.0
    %1928 = vmatprep.subr.mxu0 0.0
    %1929 = vmatpush1.msra.mxu0 0.0
    %1930 = vmatprep.subr.mxu0 0.0
    %1931 = vmatpush1.msra.mxu0 0.0
    %1932 = vmatprep.subr.mxu0 0.0
    %1933 = vmatpush1.msra.mxu0 0.0
    %1934 = vmatprep.subr.mxu0 0.0
    %1935 = vmatpush1.msra.mxu0 0.0
    %1936 = vmatprep.subr.mxu0 0.0
    %1937 = vmatpush1.msra.mxu0 0.0
    %1938 = vmatprep.subr.mxu0 0.0
    %1939 = vmatpush1.msra.mxu0 0.0
    %1940 = vmatprep.subr.mxu0 0.0
    %1941 = vmatpush1.msra.mxu0 0.0
    %1942 = vmatprep.subr.mxu0 0.0
    %1943 = vmatpush1.msra.mxu0 0.0
    %1944 = vmatprep.subr.mxu0 0.0
    %1945 = vmatpush1.msra.mxu0 0.0
    %1946 = vmatprep.subr.mxu0 0.0
    %1947 = vmatpush1.msra.mxu0 0.0
    %1948 = vmatprep.subr.mxu0 0.0
    %1949 = vmatpush1.msra.mxu0 0.0
    %1950 = vmatprep.subr.mxu0 0.0
    %1951 = vmatpush1.msra.mxu0 0.0
    %1952 = vmatprep.subr.mxu0 0.0
    %1953 = vmatpush1.msra.mxu0 0.0
    %1954 = vmatprep.subr.mxu0 0.0
    %1955 = vmatpush1.msra.mxu0 0.0
    %1956 = vmatprep.subr.mxu0 0.0
    %1957 = vmatpush1.msra.mxu0 0.0
    %1958 = vmatprep.subr.mxu0 0.0
    %1959 = vmatpush1.msra.mxu0 0.0
    %1960 = vmatprep.subr.mxu0 0.0
    %1961 = vmatpush1.msra.mxu0 0.0
    %1962 = vmatprep.subr.mxu0 0.0
    %1963 = vmatpush1.msra.mxu0 0.0
    %1964 = vmatprep.subr.mxu0 0.0
    %1965 = vmatpush1.msra.mxu0 0.0
    %1966 = vmatprep.subr.mxu0 0.0
    %1967 = vmatpush1.msra.mxu0 0.0
    %1968 = vmatprep.subr.mxu0 0.0
    %1969 = vmatpush1.msra.mxu0 0.0
    %1970 = vmatprep.subr.mxu0 0.0
    %1971 = vmatpush1.msra.mxu0 0.0
    %1972 = vmatprep.mubr.f32.mxu0 0.0
    %1973 = vmatmul.mubr.f32.gmra.mrb[0].mxu0 %v1897
    %v1974 = vpop.f32.mrb[0].mxu0
    %v1975 = vadd.f32 %v1894, %v1974
    %v1976 = vpop.f32.mrb[0].mxu0
    %1977 = vmatprep.mubr.f32.mxu0 0.0
    %1978 = vmatmul.mubr.f32.gmra.mrb[0].mxu0 %v1900
    %v1979 = vpop.f32.mrb[0].mxu0
    %v1980 = vadd.f32 %v1894, %v1979
    %v1981 = vpop.f32.mrb[0].mxu0
    %1982 = vmatprep.mubr.f32.mxu0 0.0
    %1983 = vmatmul.mubr.f32.gmra.mrb[0].mxu0 %v1903
    %v1984 = vpop.f32.mrb[0].mxu0
    %v1985 = vadd.f32 %v1894, %v1984
    %v1986 = vpop.f32.mrb[0].mxu0
    %1987 = vmatprep.mubr.f32.mxu0 0.0
    %1988 = vmatmul.mubr.f32.gmra.mrb[0].mxu0 %v1906
    %v1989 = vpop.f32.mrb[0].mxu0
    %v1990 = vadd.f32 %v1894, %v1989
    %v1991 = vpop.f32.mrb[0].mxu0
    %1992 = vdwg.mxu0
    %s1993 = scalar_lea.vmem %s19, 32
    %v1994 = vld [vmem:[%s1993] sm:$0xff]
    %v1995 = vld [vmem:[%s1993 + $0x8] sm:$0xff]
    %v1996 = vld [vmem:[%s1993 + $0x10] sm:$0xff]
    %v1997 = vld [vmem:[%s1993 + $0x18] sm:$0xff]
    %s1998 = scalar_lea.vmem %s21, 1
    %v1999 = vld [vmem:[%s1998] sm:$0x1]
    %v2001 = vlaneseq
    %v2002 = vshrl.u32 %v2001, 7
    %v2003 = vsub.s32 0, %v2002
    %v2004 = vrot.slane %v1999, %v2003
    %2006 = vmatprep.subr.mxu0 0.0
    %2007 = vmatpush1.msra.mxu0 %v1994
    %2008 = vmatprep.subr.mxu0 0.0
    %2009 = vmatpush1.msra.mxu0 %v1995
    %2010 = vmatprep.subr.mxu0 0.0
    %2011 = vmatpush1.msra.mxu0 %v1996
    %2012 = vmatprep.subr.mxu0 0.0
    %2013 = vmatpush1.msra.mxu0 %v1997
    %2014 = vmatprep.subr.mxu0 0.0
    %2015 = vmatpush1.msra.mxu0 0.0
    %2016 = vmatprep.subr.mxu0 0.0
    %2017 = vmatpush1.msra.mxu0 0.0
    %2018 = vmatprep.subr.mxu0 0.0
    %2019 = vmatpush1.msra.mxu0 0.0
    %2020 = vmatprep.subr.mxu0 0.0
    %2021 = vmatpush1.msra.mxu0 0.0
    %2022 = vmatprep.subr.mxu0 0.0
    %2023 = vmatpush1.msra.mxu0 0.0
    %2024 = vmatprep.subr.mxu0 0.0
    %2025 = vmatpush1.msra.mxu0 0.0
    %2026 = vmatprep.subr.mxu0 0.0
    %2027 = vmatpush1.msra.mxu0 0.0
    %2028 = vmatprep.subr.mxu0 0.0
    %2029 = vmatpush1.msra.mxu0 0.0
    %2030 = vmatprep.subr.mxu0 0.0
    %2031 = vmatpush1.msra.mxu0 0.0
    %2032 = vmatprep.subr.mxu0 0.0
    %2033 = vmatpush1.msra.mxu0 0.0
    %2034 = vmatprep.subr.mxu0 0.0
    %2035 = vmatpush1.msra.mxu0 0.0
    %2036 = vmatprep.subr.mxu0 0.0
    %2037 = vmatpush1.msra.mxu0 0.0
    %2038 = vmatprep.subr.mxu0 0.0
    %2039 = vmatpush1.msra.mxu0 0.0
    %2040 = vmatprep.subr.mxu0 0.0
    %2041 = vmatpush1.msra.mxu0 0.0
    %2042 = vmatprep.subr.mxu0 0.0
    %2043 = vmatpush1.msra.mxu0 0.0
    %2044 = vmatprep.subr.mxu0 0.0
    %2045 = vmatpush1.msra.mxu0 0.0
    %2046 = vmatprep.subr.mxu0 0.0
    %2047 = vmatpush1.msra.mxu0 0.0
    %2048 = vmatprep.subr.mxu0 0.0
    %2049 = vmatpush1.msra.mxu0 0.0
    %2050 = vmatprep.subr.mxu0 0.0
    %2051 = vmatpush1.msra.mxu0 0.0
    %2052 = vmatprep.subr.mxu0 0.0
    %2053 = vmatpush1.msra.mxu0 0.0
    %2054 = vmatprep.subr.mxu0 0.0
    %2055 = vmatpush1.msra.mxu0 0.0
    %2056 = vmatprep.subr.mxu0 0.0
    %2057 = vmatpush1.msra.mxu0 0.0
    %2058 = vmatprep.subr.mxu0 0.0
    %2059 = vmatpush1.msra.mxu0 0.0
    %2060 = vmatprep.subr.mxu0 0.0
    %2061 = vmatpush1.msra.mxu0 0.0
    %2062 = vmatprep.subr.mxu0 0.0
    %2063 = vmatpush1.msra.mxu0 0.0
    %2064 = vmatprep.subr.mxu0 0.0
    %2065 = vmatpush1.msra.mxu0 0.0
    %2066 = vmatprep.subr.mxu0 0.0
    %2067 = vmatpush1.msra.mxu0 0.0
    %2068 = vmatprep.subr.mxu0 0.0
    %2069 = vmatpush1.msra.mxu0 0.0
    %2070 = vmatprep.mubr.f32.mxu0 0.0
    %2071 = vmatmul.mubr.f32.gmra.mrb[0].mxu0 %v1897
    %v2072 = vpop.f32.mrb[0].mxu0
    %v2073 = vadd.f32 %v2004, %v2072
    %v2074 = vpop.f32.mrb[0].mxu0
    %2075 = vmatprep.mubr.f32.mxu0 0.0
    %2076 = vmatmul.mubr.f32.gmra.mrb[0].mxu0 %v1900
    %v2077 = vpop.f32.mrb[0].mxu0
    %v2078 = vadd.f32 %v2004, %v2077
    %v2079 = vpop.f32.mrb[0].mxu0
    %2080 = vmatprep.mubr.f32.mxu0 0.0
    %2081 = vmatmul.mubr.f32.gmra.mrb[0].mxu0 %v1903
    %v2082 = vpop.f32.mrb[0].mxu0
    %v2083 = vadd.f32 %v2004, %v2082
    %v2084 = vpop.f32.mrb[0].mxu0
    %2085 = vmatprep.mubr.f32.mxu0 0.0
    %2086 = vmatmul.mubr.f32.gmra.mrb[0].mxu0 %v1906
    %v2087 = vpop.f32.mrb[0].mxu0
    %v2088 = vadd.f32 %v2004, %v2087
    %v2089 = vpop.f32.mrb[0].mxu0
    %2090 = vdwg.mxu0
    %s2091 = scalar_lea.vmem %s23, 32
    %v2092 = vld [vmem:[%s2091] sm:$0xff]
    %v2093 = vld [vmem:[%s2091 + $0x8] sm:$0xff]
    %v2094 = vld [vmem:[%s2091 + $0x10] sm:$0xff]
    %v2095 = vld [vmem:[%s2091 + $0x18] sm:$0xff]
    %s2096 = scalar_lea.vmem %s25, 1
    %v2097 = vld [vmem:[%s2096] sm:$0x1]
    %v2099 = vlaneseq
    %v2100 = vshrl.u32 %v2099, 7
    %v2101 = vsub.s32 0, %v2100
    %v2102 = vrot.slane %v2097, %v2101
    %2104 = vmatprep.subr.mxu0 0.0
    %2105 = vmatpush1.msra.mxu0 %v2092
    %2106 = vmatprep.subr.mxu0 0.0
    %2107 = vmatpush1.msra.mxu0 %v2093
    %2108 = vmatprep.subr.mxu0 0.0
    %2109 = vmatpush1.msra.mxu0 %v2094
    %2110 = vmatprep.subr.mxu0 0.0
    %2111 = vmatpush1.msra.mxu0 %v2095
    %2112 = vmatprep.subr.mxu0 0.0
    %2113 = vmatpush1.msra.mxu0 0.0
    %2114 = vmatprep.subr.mxu0 0.0
    %2115 = vmatpush1.msra.mxu0 0.0
    %2116 = vmatprep.subr.mxu0 0.0
    %2117 = vmatpush1.msra.mxu0 0.0
    %2118 = vmatprep.subr.mxu0 0.0
    %2119 = vmatpush1.msra.mxu0 0.0
    %2120 = vmatprep.subr.mxu0 0.0
    %2121 = vmatpush1.msra.mxu0 0.0
    %2122 = vmatprep.subr.mxu0 0.0
    %2123 = vmatpush1.msra.mxu0 0.0
    %2124 = vmatprep.subr.mxu0 0.0
    %2125 = vmatpush1.msra.mxu0 0.0
    %2126 = vmatprep.subr.mxu0 0.0
    %2127 = vmatpush1.msra.mxu0 0.0
    %2128 = vmatprep.subr.mxu0 0.0
    %2129 = vmatpush1.msra.mxu0 0.0
    %2130 = vmatprep.subr.mxu0 0.0
    %2131 = vmatpush1.msra.mxu0 0.0
    %2132 = vmatprep.subr.mxu0 0.0
    %2133 = vmatpush1.msra.mxu0 0.0
    %2134 = vmatprep.subr.mxu0 0.0
    %2135 = vmatpush1.msra.mxu0 0.0
    %2136 = vmatprep.subr.mxu0 0.0
    %2137 = vmatpush1.msra.mxu0 0.0
    %2138 = vmatprep.subr.mxu0 0.0
    %2139 = vmatpush1.msra.mxu0 0.0
    %2140 = vmatprep.subr.mxu0 0.0
    %2141 = vmatpush1.msra.mxu0 0.0
    %2142 = vmatprep.subr.mxu0 0.0
    %2143 = vmatpush1.msra.mxu0 0.0
    %2144 = vmatprep.subr.mxu0 0.0
    %2145 = vmatpush1.msra.mxu0 0.0
    %2146 = vmatprep.subr.mxu0 0.0
    %2147 = vmatpush1.msra.mxu0 0.0
    %2148 = vmatprep.subr.mxu0 0.0
    %2149 = vmatpush1.msra.mxu0 0.0
    %2150 = vmatprep.subr.mxu0 0.0
    %2151 = vmatpush1.msra.mxu0 0.0
    %2152 = vmatprep.subr.mxu0 0.0
    %2153 = vmatpush1.msra.mxu0 0.0
    %2154 = vmatprep.subr.mxu0 0.0
    %2155 = vmatpush1.msra.mxu0 0.0
    %2156 = vmatprep.subr.mxu0 0.0
    %2157 = vmatpush1.msra.mxu0 0.0
    %2158 = vmatprep.subr.mxu0 0.0
    %2159 = vmatpush1.msra.mxu0 0.0
    %2160 = vmatprep.subr.mxu0 0.0
    %2161 = vmatpush1.msra.mxu0 0.0
    %2162 = vmatprep.subr.mxu0 0.0
    %2163 = vmatpush1.msra.mxu0 0.0
    %2164 = vmatprep.subr.mxu0 0.0
    %2165 = vmatpush1.msra.mxu0 0.0
    %2166 = vmatprep.subr.mxu0 0.0
    %2167 = vmatpush1.msra.mxu0 0.0
    %2168 = vmatprep.mubr.f32.mxu0 0.0
    %2169 = vmatmul.mubr.f32.gmra.mrb[0].mxu0 %v1897
    %v2170 = vpop.f32.mrb[0].mxu0
    %v2171 = vadd.f32 %v2102, %v2170
    %v2172 = vpop.f32.mrb[0].mxu0
    %2173 = vmatprep.mubr.f32.mxu0 0.0
    %2174 = vmatmul.mubr.f32.gmra.mrb[0].mxu0 %v1900
    %v2175 = vpop.f32.mrb[0].mxu0
    %v2176 = vadd.f32 %v2102, %v2175
    %v2177 = vpop.f32.mrb[0].mxu0
    %2178 = vmatprep.mubr.f32.mxu0 0.0
    %2179 = vmatmul.mubr.f32.gmra.mrb[0].mxu0 %v1903
    %v2180 = vpop.f32.mrb[0].mxu0
    %v2181 = vadd.f32 %v2102, %v2180
    %v2182 = vpop.f32.mrb[0].mxu0
    %2183 = vmatprep.mubr.f32.mxu0 0.0
    %2184 = vmatmul.mubr.f32.gmra.mrb[0].mxu0 %v1906
    %v2185 = vpop.f32.mrb[0].mxu0
    %v2186 = vadd.f32 %v2102, %v2185
    %v2187 = vpop.f32.mrb[0].mxu0
    %2188 = vdwg.mxu0
    %v2190 = vsel %vm531, %v1975, 0
    %v2193 = vsel %vm531, %v1980, 0
    %v2196 = vsel %vm531, %v2073, 0
    %v2199 = vsel %vm531, %v2078, 0
    %2201 = vmatprep.subr.mxu0 0.0
    %2202 = vmatpush1.xpose.msra.mxu0 %v2196
    %2203 = vmatprep.subr.mxu0 0.0
    %2204 = vmatpush1.xpose.msra.mxu0 %v2199
    %2205 = vmatprep.subr.mxu0 0.0
    %2206 = vmatpush1.xpose.msra.mxu0 0.0
    %2207 = vmatprep.subr.mxu0 0.0
    %2208 = vmatpush1.xpose.msra.mxu0 0.0
    %2209 = vmatprep.subr.mxu0 0.0
    %2210 = vmatpush1.xpose.msra.mxu0 0.0
    %2211 = vmatprep.subr.mxu0 0.0
    %2212 = vmatpush1.xpose.msra.mxu0 0.0
    %2213 = vmatprep.subr.mxu0 0.0
    %2214 = vmatpush1.xpose.msra.mxu0 0.0
    %2215 = vmatprep.subr.mxu0 0.0
    %2216 = vmatpush1.xpose.msra.mxu0 0.0
    %2217 = vmatprep.subr.mxu0 0.0
    %2218 = vmatpush1.xpose.msra.mxu0 0.0
    %2219 = vmatprep.subr.mxu0 0.0
    %2220 = vmatpush1.xpose.msra.mxu0 0.0
    %2221 = vmatprep.subr.mxu0 0.0
    %2222 = vmatpush1.xpose.msra.mxu0 0.0
    %2223 = vmatprep.subr.mxu0 0.0
    %2224 = vmatpush1.xpose.msra.mxu0 0.0
    %2225 = vmatprep.subr.mxu0 0.0
    %2226 = vmatpush1.xpose.msra.mxu0 0.0
    %2227 = vmatprep.subr.mxu0 0.0
    %2228 = vmatpush1.xpose.msra.mxu0 0.0
    %2229 = vmatprep.subr.mxu0 0.0
    %2230 = vmatpush1.xpose.msra.mxu0 0.0
    %2231 = vmatprep.subr.mxu0 0.0
    %2232 = vmatpush1.xpose.msra.mxu0 0.0
    %2233 = vmatprep.subr.mxu0 0.0
    %2234 = vmatpush1.xpose.msra.mxu0 0.0
    %2235 = vmatprep.subr.mxu0 0.0
    %2236 = vmatpush1.xpose.msra.mxu0 0.0
    %2237 = vmatprep.subr.mxu0 0.0
    %2238 = vmatpush1.xpose.msra.mxu0 0.0
    %2239 = vmatprep.subr.mxu0 0.0
    %2240 = vmatpush1.xpose.msra.mxu0 0.0
    %2241 = vmatprep.subr.mxu0 0.0
    %2242 = vmatpush1.xpose.msra.mxu0 0.0
    %2243 = vmatprep.subr.mxu0 0.0
    %2244 = vmatpush1.xpose.msra.mxu0 0.0
    %2245 = vmatprep.subr.mxu0 0.0
    %2246 = vmatpush1.xpose.msra.mxu0 0.0
    %2247 = vmatprep.subr.mxu0 0.0
    %2248 = vmatpush1.xpose.msra.mxu0 0.0
    %2249 = vmatprep.subr.mxu0 0.0
    %2250 = vmatpush1.xpose.msra.mxu0 0.0
    %2251 = vmatprep.subr.mxu0 0.0
    %2252 = vmatpush1.xpose.msra.mxu0 0.0
    %2253 = vmatprep.subr.mxu0 0.0
    %2254 = vmatpush1.xpose.msra.mxu0 0.0
    %2255 = vmatprep.subr.mxu0 0.0
    %2256 = vmatpush1.xpose.msra.mxu0 0.0
    %2257 = vmatprep.subr.mxu0 0.0
    %2258 = vmatpush1.xpose.msra.mxu0 0.0
    %2259 = vmatprep.subr.mxu0 0.0
    %2260 = vmatpush1.xpose.msra.mxu0 0.0
    %2261 = vmatprep.subr.mxu0 0.0
    %2262 = vmatpush1.xpose.msra.mxu0 0.0
    %2263 = vmatprep.subr.mxu0 0.0
    %2264 = vmatpush1.xpose.msra.mxu0 0.0
    %2265 = vmatprep.mubr.f32.mxu0 0.0
    %2266 = vmatmul.mubr.f32.gmra.mrb[0].mxu0 %v2190
    %v2267 = vpop.f32.mrb[0].mxu0
    %v2268 = vadd.f32 0.0, %v2267
    %v2269 = vpop.f32.mrb[0].mxu0
    %2270 = vmatprep.mubr.f32.mxu0 0.0
    %2271 = vmatmul.mubr.f32.gmra.mrb[0].mxu0 %v2193
    %v2272 = vpop.f32.mrb[0].mxu0
    %v2273 = vadd.f32 0.0, %v2272
    %v2274 = vpop.f32.mrb[0].mxu0
    %2275 = vdwg.mxu0
    %v2277 = vsel %vm531, %v1985, 0
    %v2280 = vsel %vm531, %v1990, 0
    %v2283 = vsel %vm531, %v2083, 0
    %v2286 = vsel %vm531, %v2088, 0
    %2288 = vmatprep.subr.mxu0 0.0
    %2289 = vmatpush1.xpose.msra.mxu0 %v2283
    %2290 = vmatprep.subr.mxu0 0.0
    %2291 = vmatpush1.xpose.msra.mxu0 %v2286
    %2292 = vmatprep.subr.mxu0 0.0
    %2293 = vmatpush1.xpose.msra.mxu0 0.0
    %2294 = vmatprep.subr.mxu0 0.0
    %2295 = vmatpush1.xpose.msra.mxu0 0.0
    %2296 = vmatprep.subr.mxu0 0.0
    %2297 = vmatpush1.xpose.msra.mxu0 0.0
    %2298 = vmatprep.subr.mxu0 0.0
    %2299 = vmatpush1.xpose.msra.mxu0 0.0
    %2300 = vmatprep.subr.mxu0 0.0
    %2301 = vmatpush1.xpose.msra.mxu0 0.0
    %2302 = vmatprep.subr.mxu0 0.0
    %2303 = vmatpush1.xpose.msra.mxu0 0.0
    %2304 = vmatprep.subr.mxu0 0.0
    %2305 = vmatpush1.xpose.msra.mxu0 0.0
    %2306 = vmatprep.subr.mxu0 0.0
    %2307 = vmatpush1.xpose.msra.mxu0 0.0
    %2308 = vmatprep.subr.mxu0 0.0
    %2309 = vmatpush1.xpose.msra.mxu0 0.0
    %2310 = vmatprep.subr.mxu0 0.0
    %2311 = vmatpush1.xpose.msra.mxu0 0.0
    %2312 = vmatprep.subr.mxu0 0.0
    %2313 = vmatpush1.xpose.msra.mxu0 0.0
    %2314 = vmatprep.subr.mxu0 0.0
    %2315 = vmatpush1.xpose.msra.mxu0 0.0
    %2316 = vmatprep.subr.mxu0 0.0
    %2317 = vmatpush1.xpose.msra.mxu0 0.0
    %2318 = vmatprep.subr.mxu0 0.0
    %2319 = vmatpush1.xpose.msra.mxu0 0.0
    %2320 = vmatprep.subr.mxu0 0.0
    %2321 = vmatpush1.xpose.msra.mxu0 0.0
    %2322 = vmatprep.subr.mxu0 0.0
    %2323 = vmatpush1.xpose.msra.mxu0 0.0
    %2324 = vmatprep.subr.mxu0 0.0
    %2325 = vmatpush1.xpose.msra.mxu0 0.0
    %2326 = vmatprep.subr.mxu0 0.0
    %2327 = vmatpush1.xpose.msra.mxu0 0.0
    %2328 = vmatprep.subr.mxu0 0.0
    %2329 = vmatpush1.xpose.msra.mxu0 0.0
    %2330 = vmatprep.subr.mxu0 0.0
    %2331 = vmatpush1.xpose.msra.mxu0 0.0
    %2332 = vmatprep.subr.mxu0 0.0
    %2333 = vmatpush1.xpose.msra.mxu0 0.0
    %2334 = vmatprep.subr.mxu0 0.0
    %2335 = vmatpush1.xpose.msra.mxu0 0.0
    %2336 = vmatprep.subr.mxu0 0.0
    %2337 = vmatpush1.xpose.msra.mxu0 0.0
    %2338 = vmatprep.subr.mxu0 0.0
    %2339 = vmatpush1.xpose.msra.mxu0 0.0
    %2340 = vmatprep.subr.mxu0 0.0
    %2341 = vmatpush1.xpose.msra.mxu0 0.0
    %2342 = vmatprep.subr.mxu0 0.0
    %2343 = vmatpush1.xpose.msra.mxu0 0.0
    %2344 = vmatprep.subr.mxu0 0.0
    %2345 = vmatpush1.xpose.msra.mxu0 0.0
    %2346 = vmatprep.subr.mxu0 0.0
    %2347 = vmatpush1.xpose.msra.mxu0 0.0
    %2348 = vmatprep.subr.mxu0 0.0
    %2349 = vmatpush1.xpose.msra.mxu0 0.0
    %2350 = vmatprep.subr.mxu0 0.0
    %2351 = vmatpush1.xpose.msra.mxu0 0.0
    %2352 = vmatprep.mubr.f32.mxu0 0.0
    %2353 = vmatmul.mubr.f32.gmra.mrb[0].mxu0 %v2277
    %v2354 = vpop.f32.mrb[0].mxu0
    %v2355 = vadd.f32 0.0, %v2354
    %v2356 = vpop.f32.mrb[0].mxu0
    %2357 = vmatprep.mubr.f32.mxu0 0.0
    %2358 = vmatmul.mubr.f32.gmra.mrb[0].mxu0 %v2280
    %v2359 = vpop.f32.mrb[0].mxu0
    %v2360 = vadd.f32 0.0, %v2359
    %v2361 = vpop.f32.mrb[0].mxu0
    %2362 = vdwg.mxu0
    %v2363 = vmul.f32 %v2268, 0.25
    %v2364 = vmul.f32 %v2273, 0.25
    %v2365 = vmul.f32 %v2355, 0.25
    %v2366 = vmul.f32 %v2360, 0.25
    %v2367 = vadd.f32 %v2363, %v713
    %v2368 = vadd.f32 %v2364, %v713
    %v2369 = vadd.f32 %v2365, %v717
    %v2370 = vadd.f32 %v2366, %v717
    %v2371 = vsel %vm531, %v2367, -inf
    %2372 = vmax.xlane.f32.xlu0 %v2371
    %v2373 = vpop.xlane.xlu0 %2372
    %v2374 = vsel %vm531, %v2368, -inf
    %2375 = vmax.xlane.f32.xlu0 %v2374
    %v2376 = vpop.xlane.xlu0 %2375
    %v2377 = vsel %vm531, %v2369, -inf
    %2378 = vmax.xlane.f32.xlu0 %v2377
    %v2379 = vpop.xlane.xlu0 %2378
    %v2380 = vsel %vm531, %v2370, -inf
    %2381 = vmax.xlane.f32.xlu0 %v2380
    %v2382 = vpop.xlane.xlu0 %2381
    %v2383 = vsub.f32 %v2367, %v2373
    %v2384 = vsub.f32 %v2368, %v2376
    %v2385 = vsub.f32 %v2369, %v2379
    %v2386 = vsub.f32 %v2370, %v2382
    %v2387 = vmul.f32 %v2383, 1.442695
    %v2388 = vpow.pop %v2387
    %v2389 = vmul.f32 %v2384, 1.442695
    %v2390 = vpow.pop %v2389
    %v2391 = vmul.f32 %v2385, 1.442695
    %v2392 = vpow.pop %v2391
    %v2393 = vmul.f32 %v2386, 1.442695
    %v2394 = vpow.pop %v2393
    %v2395 = vsel %vm531, %v2388, 0.0
    %2396 = vadd.xlane.f32.xlu0 %v2395
    %v2397 = vpop.xlane.xlu0 %2396
    %v2398 = vsel %vm531, %v2390, 0.0
    %2399 = vadd.xlane.f32.xlu0 %v2398
    %v2400 = vpop.xlane.xlu0 %2399
    %v2401 = vsel %vm531, %v2392, 0.0
    %2402 = vadd.xlane.f32.xlu0 %v2401
    %v2403 = vpop.xlane.xlu0 %2402
    %v2404 = vsel %vm531, %v2394, 0.0
    %2405 = vadd.xlane.f32.xlu0 %v2404
    %v2406 = vpop.xlane.xlu0 %2405
    %v2407 = vrcp.pop %v2397
    %v2408 = vrcp.pop %v2400
    %v2409 = vrcp.pop %v2403
    %v2410 = vrcp.pop %v2406
    %v2411 = vmul.f32 %v2388, %v2407
    %v2412 = vmul.f32 %v2390, %v2408
    %v2413 = vmul.f32 %v2392, %v2409
    %v2414 = vmul.f32 %v2394, %v2410
    %v2416 = vsel %vm531, %v2411, 0
    %v2419 = vsel %vm531, %v2412, 0
    %2421 = vmatprep.subr.mxu0 0.0
    %2422 = vmatpush1.msra.mxu0 %v2171
    %2423 = vmatprep.subr.mxu0 0.0
    %2424 = vmatpush1.msra.mxu0 %v2176
    %2425 = vmatprep.subr.mxu0 0.0
    %2426 = vmatpush1.msra.mxu0 0.0
    %2427 = vmatprep.subr.mxu0 0.0
    %2428 = vmatpush1.msra.mxu0 0.0
    %2429 = vmatprep.subr.mxu0 0.0
    %2430 = vmatpush1.msra.mxu0 0.0
    %2431 = vmatprep.subr.mxu0 0.0
    %2432 = vmatpush1.msra.mxu0 0.0
    %2433 = vmatprep.subr.mxu0 0.0
    %2434 = vmatpush1.msra.mxu0 0.0
    %2435 = vmatprep.subr.mxu0 0.0
    %2436 = vmatpush1.msra.mxu0 0.0
    %2437 = vmatprep.subr.mxu0 0.0
    %2438 = vmatpush1.msra.mxu0 0.0
    %2439 = vmatprep.subr.mxu0 0.0
    %2440 = vmatpush1.msra.mxu0 0.0
    %2441 = vmatprep.subr.mxu0 0.0
    %2442 = vmatpush1.msra.mxu0 0.0
    %2443 = vmatprep.subr.mxu0 0.0
    %2444 = vmatpush1.msra.mxu0 0.0
    %2445 = vmatprep.subr.mxu0 0.0
    %2446 = vmatpush1.msra.mxu0 0.0
    %2447 = vmatprep.subr.mxu0 0.0
    %2448 = vmatpush1.msra.mxu0 0.0
    %2449 = vmatprep.subr.mxu0 0.0
    %2450 = vmatpush1.msra.mxu0 0.0
    %2451 = vmatprep.subr.mxu0 0.0
    %2452 = vmatpush1.msra.mxu0 0.0
    %2453 = vmatprep.subr.mxu0 0.0
    %2454 = vmatpush1.msra.mxu0 0.0
    %2455 = vmatprep.subr.mxu0 0.0
    %2456 = vmatpush1.msra.mxu0 0.0
    %2457 = vmatprep.subr.mxu0 0.0
    %2458 = vmatpush1.msra.mxu0 0.0
    %2459 = vmatprep.subr.mxu0 0.0
    %2460 = vmatpush1.msra.mxu0 0.0
    %2461 = vmatprep.subr.mxu0 0.0
    %2462 = vmatpush1.msra.mxu0 0.0
    %2463 = vmatprep.subr.mxu0 0.0
    %2464 = vmatpush1.msra.mxu0 0.0
    %2465 = vmatprep.subr.mxu0 0.0
    %2466 = vmatpush1.msra.mxu0 0.0
    %2467 = vmatprep.subr.mxu0 0.0
    %2468 = vmatpush1.msra.mxu0 0.0
    %2469 = vmatprep.subr.mxu0 0.0
    %2470 = vmatpush1.msra.mxu0 0.0
    %2471 = vmatprep.subr.mxu0 0.0
    %2472 = vmatpush1.msra.mxu0 0.0
    %2473 = vmatprep.subr.mxu0 0.0
    %2474 = vmatpush1.msra.mxu0 0.0
    %2475 = vmatprep.subr.mxu0 0.0
    %2476 = vmatpush1.msra.mxu0 0.0
    %2477 = vmatprep.subr.mxu0 0.0
    %2478 = vmatpush1.msra.mxu0 0.0
    %2479 = vmatprep.subr.mxu0 0.0
    %2480 = vmatpush1.msra.mxu0 0.0
    %2481 = vmatprep.subr.mxu0 0.0
    %2482 = vmatpush1.msra.mxu0 0.0
    %2483 = vmatprep.subr.mxu0 0.0
    %2484 = vmatpush1.msra.mxu0 0.0
    %2485 = vmatprep.mubr.f32.mxu0 0.0
    %2486 = vmatmul.mubr.f32.gmra.mrb[0].mxu0 %v2416
    %v2487 = vpop.f32.mrb[0].mxu0
    %v2488 = vadd.f32 0.0, %v2487
    %v2489 = vpop.f32.mrb[0].mxu0
    %2490 = vmatprep.mubr.f32.mxu0 0.0
    %2491 = vmatmul.mubr.f32.gmra.mrb[0].mxu0 %v2419
    %v2492 = vpop.f32.mrb[0].mxu0
    %v2493 = vadd.f32 0.0, %v2492
    %v2494 = vpop.f32.mrb[0].mxu0
    %2495 = vdwg.mxu0
    %v2497 = vsel %vm531, %v2413, 0
    %v2500 = vsel %vm531, %v2414, 0
    %2502 = vmatprep.subr.mxu0 0.0
    %2503 = vmatpush1.msra.mxu0 %v2181
    %2504 = vmatprep.subr.mxu0 0.0
    %2505 = vmatpush1.msra.mxu0 %v2186
    %2506 = vmatprep.subr.mxu0 0.0
    %2507 = vmatpush1.msra.mxu0 0.0
    %2508 = vmatprep.subr.mxu0 0.0
    %2509 = vmatpush1.msra.mxu0 0.0
    %2510 = vmatprep.subr.mxu0 0.0
    %2511 = vmatpush1.msra.mxu0 0.0
    %2512 = vmatprep.subr.mxu0 0.0
    %2513 = vmatpush1.msra.mxu0 0.0
    %2514 = vmatprep.subr.mxu0 0.0
    %2515 = vmatpush1.msra.mxu0 0.0
    %2516 = vmatprep.subr.mxu0 0.0
    %2517 = vmatpush1.msra.mxu0 0.0
    %2518 = vmatprep.subr.mxu0 0.0
    %2519 = vmatpush1.msra.mxu0 0.0
    %2520 = vmatprep.subr.mxu0 0.0
    %2521 = vmatpush1.msra.mxu0 0.0
    %2522 = vmatprep.subr.mxu0 0.0
    %2523 = vmatpush1.msra.mxu0 0.0
    %2524 = vmatprep.subr.mxu0 0.0
    %2525 = vmatpush1.msra.mxu0 0.0
    %2526 = vmatprep.subr.mxu0 0.0
    %2527 = vmatpush1.msra.mxu0 0.0
    %2528 = vmatprep.subr.mxu0 0.0
    %2529 = vmatpush1.msra.mxu0 0.0
    %2530 = vmatprep.subr.mxu0 0.0
    %2531 = vmatpush1.msra.mxu0 0.0
    %2532 = vmatprep.subr.mxu0 0.0
    %2533 = vmatpush1.msra.mxu0 0.0
    %2534 = vmatprep.subr.mxu0 0.0
    %2535 = vmatpush1.msra.mxu0 0.0
    %2536 = vmatprep.subr.mxu0 0.0
    %2537 = vmatpush1.msra.mxu0 0.0
    %2538 = vmatprep.subr.mxu0 0.0
    %2539 = vmatpush1.msra.mxu0 0.0
    %2540 = vmatprep.subr.mxu0 0.0
    %2541 = vmatpush1.msra.mxu0 0.0
    %2542 = vmatprep.subr.mxu0 0.0
    %2543 = vmatpush1.msra.mxu0 0.0
    %2544 = vmatprep.subr.mxu0 0.0
    %2545 = vmatpush1.msra.mxu0 0.0
    %2546 = vmatprep.subr.mxu0 0.0
    %2547 = vmatpush1.msra.mxu0 0.0
    %2548 = vmatprep.subr.mxu0 0.0
    %2549 = vmatpush1.msra.mxu0 0.0
    %2550 = vmatprep.subr.mxu0 0.0
    %2551 = vmatpush1.msra.mxu0 0.0
    %2552 = vmatprep.subr.mxu0 0.0
    %2553 = vmatpush1.msra.mxu0 0.0
    %2554 = vmatprep.subr.mxu0 0.0
    %2555 = vmatpush1.msra.mxu0 0.0
    %2556 = vmatprep.subr.mxu0 0.0
    %2557 = vmatpush1.msra.mxu0 0.0
    %2558 = vmatprep.subr.mxu0 0.0
    %2559 = vmatpush1.msra.mxu0 0.0
    %2560 = vmatprep.subr.mxu0 0.0
    %2561 = vmatpush1.msra.mxu0 0.0
    %2562 = vmatprep.subr.mxu0 0.0
    %2563 = vmatpush1.msra.mxu0 0.0
    %2564 = vmatprep.subr.mxu0 0.0
    %2565 = vmatpush1.msra.mxu0 0.0
    %2566 = vmatprep.mubr.f32.mxu0 0.0
    %2567 = vmatmul.mubr.f32.gmra.mrb[0].mxu0 %v2497
    %v2568 = vpop.f32.mrb[0].mxu0
    %v2569 = vadd.f32 0.0, %v2568
    %v2570 = vpop.f32.mrb[0].mxu0
    %2571 = vmatprep.mubr.f32.mxu0 0.0
    %2572 = vmatmul.mubr.f32.gmra.mrb[0].mxu0 %v2500
    %v2573 = vpop.f32.mrb[0].mxu0
    %v2574 = vadd.f32 0.0, %v2573
    %v2575 = vpop.f32.mrb[0].mxu0
    %2576 = vdwg.mxu0
    %2577 = vrot.lane.b32.xlu0 %v1975, 112
    %v2578 = vpop.permute.xlu0 %2577
    %2579 = vrot.lane.b32.xlu0 %v1980, 112
    %v2580 = vpop.permute.xlu0 %2579
    %2581 = vrot.lane.b32.xlu0 %v2073, 112
    %v2582 = vpop.permute.xlu0 %2581
    %2583 = vrot.lane.b32.xlu0 %v2078, 112
    %v2584 = vpop.permute.xlu0 %2583
    %v2585 = vsel %vm531, %v2578, 0
    %v2587 = vsel %vm531, %v2580, 0
    %v2589 = vsel %vm531, %v2582, 0
    %v2591 = vsel %vm531, %v2584, 0
    %2593 = vmatprep.subr.mxu0 0.0
    %2594 = vmatpush1.xpose.msra.mxu0 %v2589
    %2595 = vmatprep.subr.mxu0 0.0
    %2596 = vmatpush1.xpose.msra.mxu0 %v2591
    %2597 = vmatprep.subr.mxu0 0.0
    %2598 = vmatpush1.xpose.msra.mxu0 0.0
    %2599 = vmatprep.subr.mxu0 0.0
    %2600 = vmatpush1.xpose.msra.mxu0 0.0
    %2601 = vmatprep.subr.mxu0 0.0
    %2602 = vmatpush1.xpose.msra.mxu0 0.0
    %2603 = vmatprep.subr.mxu0 0.0
    %2604 = vmatpush1.xpose.msra.mxu0 0.0
    %2605 = vmatprep.subr.mxu0 0.0
    %2606 = vmatpush1.xpose.msra.mxu0 0.0
    %2607 = vmatprep.subr.mxu0 0.0
    %2608 = vmatpush1.xpose.msra.mxu0 0.0
    %2609 = vmatprep.subr.mxu0 0.0
    %2610 = vmatpush1.xpose.msra.mxu0 0.0
    %2611 = vmatprep.subr.mxu0 0.0
    %2612 = vmatpush1.xpose.msra.mxu0 0.0
    %2613 = vmatprep.subr.mxu0 0.0
    %2614 = vmatpush1.xpose.msra.mxu0 0.0
    %2615 = vmatprep.subr.mxu0 0.0
    %2616 = vmatpush1.xpose.msra.mxu0 0.0
    %2617 = vmatprep.subr.mxu0 0.0
    %2618 = vmatpush1.xpose.msra.mxu0 0.0
    %2619 = vmatprep.subr.mxu0 0.0
    %2620 = vmatpush1.xpose.msra.mxu0 0.0
    %2621 = vmatprep.subr.mxu0 0.0
    %2622 = vmatpush1.xpose.msra.mxu0 0.0
    %2623 = vmatprep.subr.mxu0 0.0
    %2624 = vmatpush1.xpose.msra.mxu0 0.0
    %2625 = vmatprep.subr.mxu0 0.0
    %2626 = vmatpush1.xpose.msra.mxu0 0.0
    %2627 = vmatprep.subr.mxu0 0.0
    %2628 = vmatpush1.xpose.msra.mxu0 0.0
    %2629 = vmatprep.subr.mxu0 0.0
    %2630 = vmatpush1.xpose.msra.mxu0 0.0
    %2631 = vmatprep.subr.mxu0 0.0
    %2632 = vmatpush1.xpose.msra.mxu0 0.0
    %2633 = vmatprep.subr.mxu0 0.0
    %2634 = vmatpush1.xpose.msra.mxu0 0.0
    %2635 = vmatprep.subr.mxu0 0.0
    %2636 = vmatpush1.xpose.msra.mxu0 0.0
    %2637 = vmatprep.subr.mxu0 0.0
    %2638 = vmatpush1.xpose.msra.mxu0 0.0
    %2639 = vmatprep.subr.mxu0 0.0
    %2640 = vmatpush1.xpose.msra.mxu0 0.0
    %2641 = vmatprep.subr.mxu0 0.0
    %2642 = vmatpush1.xpose.msra.mxu0 0.0
    %2643 = vmatprep.subr.mxu0 0.0
    %2644 = vmatpush1.xpose.msra.mxu0 0.0
    %2645 = vmatprep.subr.mxu0 0.0
    %2646 = vmatpush1.xpose.msra.mxu0 0.0
    %2647 = vmatprep.subr.mxu0 0.0
    %2648 = vmatpush1.xpose.msra.mxu0 0.0
    %2649 = vmatprep.subr.mxu0 0.0
    %2650 = vmatpush1.xpose.msra.mxu0 0.0
    %2651 = vmatprep.subr.mxu0 0.0
    %2652 = vmatpush1.xpose.msra.mxu0 0.0
    %2653 = vmatprep.subr.mxu0 0.0
    %2654 = vmatpush1.xpose.msra.mxu0 0.0
    %2655 = vmatprep.subr.mxu0 0.0
    %2656 = vmatpush1.xpose.msra.mxu0 0.0
    %2657 = vmatprep.mubr.f32.mxu0 0.0
    %2658 = vmatmul.mubr.f32.gmra.mrb[0].mxu0 %v2585
    %v2659 = vpop.f32.mrb[0].mxu0
    %v2660 = vadd.f32 0.0, %v2659
    %v2661 = vpop.f32.mrb[0].mxu0
    %2662 = vmatprep.mubr.f32.mxu0 0.0
    %2663 = vmatmul.mubr.f32.gmra.mrb[0].mxu0 %v2587
    %v2664 = vpop.f32.mrb[0].mxu0
    %v2665 = vadd.f32 0.0, %v2664
    %v2666 = vpop.f32.mrb[0].mxu0
    %2667 = vdwg.mxu0
    %2668 = vrot.lane.b32.xlu0 %v1985, 112
    %v2669 = vpop.permute.xlu0 %2668
    %2670 = vrot.lane.b32.xlu0 %v1990, 112
    %v2671 = vpop.permute.xlu0 %2670
    %2672 = vrot.lane.b32.xlu0 %v2083, 112
    %v2673 = vpop.permute.xlu0 %2672
    %2674 = vrot.lane.b32.xlu0 %v2088, 112
    %v2675 = vpop.permute.xlu0 %2674
    %v2676 = vsel %vm531, %v2669, 0
    %v2678 = vsel %vm531, %v2671, 0
    %v2680 = vsel %vm531, %v2673, 0
    %v2682 = vsel %vm531, %v2675, 0
    %2684 = vmatprep.subr.mxu0 0.0
    %2685 = vmatpush1.xpose.msra.mxu0 %v2680
    %2686 = vmatprep.subr.mxu0 0.0
    %2687 = vmatpush1.xpose.msra.mxu0 %v2682
    %2688 = vmatprep.subr.mxu0 0.0
    %2689 = vmatpush1.xpose.msra.mxu0 0.0
    %2690 = vmatprep.subr.mxu0 0.0
    %2691 = vmatpush1.xpose.msra.mxu0 0.0
    %2692 = vmatprep.subr.mxu0 0.0
    %2693 = vmatpush1.xpose.msra.mxu0 0.0
    %2694 = vmatprep.subr.mxu0 0.0
    %2695 = vmatpush1.xpose.msra.mxu0 0.0
    %2696 = vmatprep.subr.mxu0 0.0
    %2697 = vmatpush1.xpose.msra.mxu0 0.0
    %2698 = vmatprep.subr.mxu0 0.0
    %2699 = vmatpush1.xpose.msra.mxu0 0.0
    %2700 = vmatprep.subr.mxu0 0.0
    %2701 = vmatpush1.xpose.msra.mxu0 0.0
    %2702 = vmatprep.subr.mxu0 0.0
    %2703 = vmatpush1.xpose.msra.mxu0 0.0
    %2704 = vmatprep.subr.mxu0 0.0
    %2705 = vmatpush1.xpose.msra.mxu0 0.0
    %2706 = vmatprep.subr.mxu0 0.0
    %2707 = vmatpush1.xpose.msra.mxu0 0.0
    %2708 = vmatprep.subr.mxu0 0.0
    %2709 = vmatpush1.xpose.msra.mxu0 0.0
    %2710 = vmatprep.subr.mxu0 0.0
    %2711 = vmatpush1.xpose.msra.mxu0 0.0
    %2712 = vmatprep.subr.mxu0 0.0
    %2713 = vmatpush1.xpose.msra.mxu0 0.0
    %2714 = vmatprep.subr.mxu0 0.0
    %2715 = vmatpush1.xpose.msra.mxu0 0.0
    %2716 = vmatprep.subr.mxu0 0.0
    %2717 = vmatpush1.xpose.msra.mxu0 0.0
    %2718 = vmatprep.subr.mxu0 0.0
    %2719 = vmatpush1.xpose.msra.mxu0 0.0
    %2720 = vmatprep.subr.mxu0 0.0
    %2721 = vmatpush1.xpose.msra.mxu0 0.0
    %2722 = vmatprep.subr.mxu0 0.0
    %2723 = vmatpush1.xpose.msra.mxu0 0.0
    %2724 = vmatprep.subr.mxu0 0.0
    %2725 = vmatpush1.xpose.msra.mxu0 0.0
    %2726 = vmatprep.subr.mxu0 0.0
    %2727 = vmatpush1.xpose.msra.mxu0 0.0
    %2728 = vmatprep.subr.mxu0 0.0
    %2729 = vmatpush1.xpose.msra.mxu0 0.0
    %2730 = vmatprep.subr.mxu0 0.0
    %2731 = vmatpush1.xpose.msra.mxu0 0.0
    %2732 = vmatprep.subr.mxu0 0.0
    %2733 = vmatpush1.xpose.msra.mxu0 0.0
    %2734 = vmatprep.subr.mxu0 0.0
    %2735 = vmatpush1.xpose.msra.mxu0 0.0
    %2736 = vmatprep.subr.mxu0 0.0
    %2737 = vmatpush1.xpose.msra.mxu0 0.0
    %2738 = vmatprep.subr.mxu0 0.0
    %2739 = vmatpush1.xpose.msra.mxu0 0.0
    %2740 = vmatprep.subr.mxu0 0.0
    %2741 = vmatpush1.xpose.msra.mxu0 0.0
    %2742 = vmatprep.subr.mxu0 0.0
    %2743 = vmatpush1.xpose.msra.mxu0 0.0
    %2744 = vmatprep.subr.mxu0 0.0
    %2745 = vmatpush1.xpose.msra.mxu0 0.0
    %2746 = vmatprep.subr.mxu0 0.0
    %2747 = vmatpush1.xpose.msra.mxu0 0.0
    %2748 = vmatprep.mubr.f32.mxu0 0.0
    %2749 = vmatmul.mubr.f32.gmra.mrb[0].mxu0 %v2676
    %v2750 = vpop.f32.mrb[0].mxu0
    %v2751 = vadd.f32 0.0, %v2750
    %v2752 = vpop.f32.mrb[0].mxu0
    %2753 = vmatprep.mubr.f32.mxu0 0.0
    %2754 = vmatmul.mubr.f32.gmra.mrb[0].mxu0 %v2678
    %v2755 = vpop.f32.mrb[0].mxu0
    %v2756 = vadd.f32 0.0, %v2755
    %v2757 = vpop.f32.mrb[0].mxu0
    %2758 = vdwg.mxu0
    %v2759 = vmul.f32 %v2660, 0.25
    %v2760 = vmul.f32 %v2665, 0.25
    %v2761 = vmul.f32 %v2751, 0.25
    %v2762 = vmul.f32 %v2756, 0.25
    %v2763 = vadd.f32 %v2759, %v713
    %v2764 = vadd.f32 %v2760, %v713
    %v2765 = vadd.f32 %v2761, %v717
    %v2766 = vadd.f32 %v2762, %v717
    %v2767 = vsel %vm531, %v2763, -inf
    %2768 = vmax.xlane.f32.xlu0 %v2767
    %v2769 = vpop.xlane.xlu0 %2768
    %v2770 = vsel %vm531, %v2764, -inf
    %2771 = vmax.xlane.f32.xlu0 %v2770
    %v2772 = vpop.xlane.xlu0 %2771
    %v2773 = vsel %vm531, %v2765, -inf
    %2774 = vmax.xlane.f32.xlu0 %v2773
    %v2775 = vpop.xlane.xlu0 %2774
    %v2776 = vsel %vm531, %v2766, -inf
    %2777 = vmax.xlane.f32.xlu0 %v2776
    %v2778 = vpop.xlane.xlu0 %2777
    %v2779 = vsub.f32 %v2763, %v2769
    %v2780 = vsub.f32 %v2764, %v2772
    %v2781 = vsub.f32 %v2765, %v2775
    %v2782 = vsub.f32 %v2766, %v2778
    %v2783 = vmul.f32 %v2779, 1.442695
    %v2784 = vpow.pop %v2783
    %v2785 = vmul.f32 %v2780, 1.442695
    %v2786 = vpow.pop %v2785
    %v2787 = vmul.f32 %v2781, 1.442695
    %v2788 = vpow.pop %v2787
    %v2789 = vmul.f32 %v2782, 1.442695
    %v2790 = vpow.pop %v2789
    %v2791 = vsel %vm531, %v2784, 0.0
    %2792 = vadd.xlane.f32.xlu0 %v2791
    %v2793 = vpop.xlane.xlu0 %2792
    %v2794 = vsel %vm531, %v2786, 0.0
    %2795 = vadd.xlane.f32.xlu0 %v2794
    %v2796 = vpop.xlane.xlu0 %2795
    %v2797 = vsel %vm531, %v2788, 0.0
    %2798 = vadd.xlane.f32.xlu0 %v2797
    %v2799 = vpop.xlane.xlu0 %2798
    %v2800 = vsel %vm531, %v2790, 0.0
    %2801 = vadd.xlane.f32.xlu0 %v2800
    %v2802 = vpop.xlane.xlu0 %2801
    %v2803 = vrcp.pop %v2793
    %v2804 = vrcp.pop %v2796
    %v2805 = vrcp.pop %v2799
    %v2806 = vrcp.pop %v2802
    %v2807 = vmul.f32 %v2784, %v2803
    %v2808 = vmul.f32 %v2786, %v2804
    %v2809 = vmul.f32 %v2788, %v2805
    %v2810 = vmul.f32 %v2790, %v2806
    %2813 = vrot.lane.b32.xlu0 %v2171, 112
    %v2814 = vpop.permute.xlu0 %2813
    %2815 = vrot.lane.b32.xlu0 %v2176, 112
    %v2816 = vpop.permute.xlu0 %2815
    %v2820 = vsel %vm531, %v2807, 0
    %v2823 = vsel %vm531, %v2808, 0
    %2825 = vmatprep.subr.mxu0 0.0
    %2826 = vmatpush1.msra.mxu0 %v2814
    %2827 = vmatprep.subr.mxu0 0.0
    %2828 = vmatpush1.msra.mxu0 %v2816
    %2829 = vmatprep.subr.mxu0 0.0
    %2830 = vmatpush1.msra.mxu0 0.0
    %2831 = vmatprep.subr.mxu0 0.0
    %2832 = vmatpush1.msra.mxu0 0.0
    %2833 = vmatprep.subr.mxu0 0.0
    %2834 = vmatpush1.msra.mxu0 0.0
    %2835 = vmatprep.subr.mxu0 0.0
    %2836 = vmatpush1.msra.mxu0 0.0
    %2837 = vmatprep.subr.mxu0 0.0
    %2838 = vmatpush1.msra.mxu0 0.0
    %2839 = vmatprep.subr.mxu0 0.0
    %2840 = vmatpush1.msra.mxu0 0.0
    %2841 = vmatprep.subr.mxu0 0.0
    %2842 = vmatpush1.msra.mxu0 0.0
    %2843 = vmatprep.subr.mxu0 0.0
    %2844 = vmatpush1.msra.mxu0 0.0
    %2845 = vmatprep.subr.mxu0 0.0
    %2846 = vmatpush1.msra.mxu0 0.0
    %2847 = vmatprep.subr.mxu0 0.0
    %2848 = vmatpush1.msra.mxu0 0.0
    %2849 = vmatprep.subr.mxu0 0.0
    %2850 = vmatpush1.msra.mxu0 0.0
    %2851 = vmatprep.subr.mxu0 0.0
    %2852 = vmatpush1.msra.mxu0 0.0
    %2853 = vmatprep.subr.mxu0 0.0
    %2854 = vmatpush1.msra.mxu0 0.0
    %2855 = vmatprep.subr.mxu0 0.0
    %2856 = vmatpush1.msra.mxu0 0.0
    %2857 = vmatprep.subr.mxu0 0.0
    %2858 = vmatpush1.msra.mxu0 0.0
    %2859 = vmatprep.subr.mxu0 0.0
    %2860 = vmatpush1.msra.mxu0 0.0
    %2861 = vmatprep.subr.mxu0 0.0
    %2862 = vmatpush1.msra.mxu0 0.0
    %2863 = vmatprep.subr.mxu0 0.0
    %2864 = vmatpush1.msra.mxu0 0.0
    %2865 = vmatprep.subr.mxu0 0.0
    %2866 = vmatpush1.msra.mxu0 0.0
    %2867 = vmatprep.subr.mxu0 0.0
    %2868 = vmatpush1.msra.mxu0 0.0
    %2869 = vmatprep.subr.mxu0 0.0
    %2870 = vmatpush1.msra.mxu0 0.0
    %2871 = vmatprep.subr.mxu0 0.0
    %2872 = vmatpush1.msra.mxu0 0.0
    %2873 = vmatprep.subr.mxu0 0.0
    %2874 = vmatpush1.msra.mxu0 0.0
    %2875 = vmatprep.subr.mxu0 0.0
    %2876 = vmatpush1.msra.mxu0 0.0
    %2877 = vmatprep.subr.mxu0 0.0
    %2878 = vmatpush1.msra.mxu0 0.0
    %2879 = vmatprep.subr.mxu0 0.0
    %2880 = vmatpush1.msra.mxu0 0.0
    %2881 = vmatprep.subr.mxu0 0.0
    %2882 = vmatpush1.msra.mxu0 0.0
    %2883 = vmatprep.subr.mxu0 0.0
    %2884 = vmatpush1.msra.mxu0 0.0
    %2885 = vmatprep.subr.mxu0 0.0
    %2886 = vmatpush1.msra.mxu0 0.0
    %2887 = vmatprep.subr.mxu0 0.0
    %2888 = vmatpush1.msra.mxu0 0.0
    %2889 = vmatprep.mubr.f32.mxu0 0.0
    %2890 = vmatmul.mubr.f32.gmra.mrb[0].mxu0 %v2820
    %v2891 = vpop.f32.mrb[0].mxu0
    %v2892 = vadd.f32 0.0, %v2891
    %v2893 = vpop.f32.mrb[0].mxu0
    %2894 = vmatprep.mubr.f32.mxu0 0.0
    %2895 = vmatmul.mubr.f32.gmra.mrb[0].mxu0 %v2823
    %v2896 = vpop.f32.mrb[0].mxu0
    %v2897 = vadd.f32 0.0, %v2896
    %v2898 = vpop.f32.mrb[0].mxu0
    %2899 = vdwg.mxu0
    %2902 = vrot.lane.b32.xlu0 %v2181, 112
    %v2903 = vpop.permute.xlu0 %2902
    %2904 = vrot.lane.b32.xlu0 %v2186, 112
    %v2905 = vpop.permute.xlu0 %2904
    %v2909 = vsel %vm531, %v2809, 0
    %v2912 = vsel %vm531, %v2810, 0
    %2914 = vmatprep.subr.mxu0 0.0
    %2915 = vmatpush1.msra.mxu0 %v2903
    %2916 = vmatprep.subr.mxu0 0.0
    %2917 = vmatpush1.msra.mxu0 %v2905
    %2918 = vmatprep.subr.mxu0 0.0
    %2919 = vmatpush1.msra.mxu0 0.0
    %2920 = vmatprep.subr.mxu0 0.0
    %2921 = vmatpush1.msra.mxu0 0.0
    %2922 = vmatprep.subr.mxu0 0.0
    %2923 = vmatpush1.msra.mxu0 0.0
    %2924 = vmatprep.subr.mxu0 0.0
    %2925 = vmatpush1.msra.mxu0 0.0
    %2926 = vmatprep.subr.mxu0 0.0
    %2927 = vmatpush1.msra.mxu0 0.0
    %2928 = vmatprep.subr.mxu0 0.0
    %2929 = vmatpush1.msra.mxu0 0.0
    %2930 = vmatprep.subr.mxu0 0.0
    %2931 = vmatpush1.msra.mxu0 0.0
    %2932 = vmatprep.subr.mxu0 0.0
    %2933 = vmatpush1.msra.mxu0 0.0
    %2934 = vmatprep.subr.mxu0 0.0
    %2935 = vmatpush1.msra.mxu0 0.0
    %2936 = vmatprep.subr.mxu0 0.0
    %2937 = vmatpush1.msra.mxu0 0.0
    %2938 = vmatprep.subr.mxu0 0.0
    %2939 = vmatpush1.msra.mxu0 0.0
    %2940 = vmatprep.subr.mxu0 0.0
    %2941 = vmatpush1.msra.mxu0 0.0
    %2942 = vmatprep.subr.mxu0 0.0
    %2943 = vmatpush1.msra.mxu0 0.0
    %2944 = vmatprep.subr.mxu0 0.0
    %2945 = vmatpush1.msra.mxu0 0.0
    %2946 = vmatprep.subr.mxu0 0.0
    %2947 = vmatpush1.msra.mxu0 0.0
    %2948 = vmatprep.subr.mxu0 0.0
    %2949 = vmatpush1.msra.mxu0 0.0
    %2950 = vmatprep.subr.mxu0 0.0
    %2951 = vmatpush1.msra.mxu0 0.0
    %2952 = vmatprep.subr.mxu0 0.0
    %2953 = vmatpush1.msra.mxu0 0.0
    %2954 = vmatprep.subr.mxu0 0.0
    %2955 = vmatpush1.msra.mxu0 0.0
    %2956 = vmatprep.subr.mxu0 0.0
    %2957 = vmatpush1.msra.mxu0 0.0
    %2958 = vmatprep.subr.mxu0 0.0
    %2959 = vmatpush1.msra.mxu0 0.0
    %2960 = vmatprep.subr.mxu0 0.0
    %2961 = vmatpush1.msra.mxu0 0.0
    %2962 = vmatprep.subr.mxu0 0.0
    %2963 = vmatpush1.msra.mxu0 0.0
    %2964 = vmatprep.subr.mxu0 0.0
    %2965 = vmatpush1.msra.mxu0 0.0
    %2966 = vmatprep.subr.mxu0 0.0
    %2967 = vmatpush1.msra.mxu0 0.0
    %2968 = vmatprep.subr.mxu0 0.0
    %2969 = vmatpush1.msra.mxu0 0.0
    %2970 = vmatprep.subr.mxu0 0.0
    %2971 = vmatpush1.msra.mxu0 0.0
    %2972 = vmatprep.subr.mxu0 0.0
    %2973 = vmatpush1.msra.mxu0 0.0
    %2974 = vmatprep.subr.mxu0 0.0
    %2975 = vmatpush1.msra.mxu0 0.0
    %2976 = vmatprep.subr.mxu0 0.0
    %2977 = vmatpush1.msra.mxu0 0.0
    %2978 = vmatprep.mubr.f32.mxu0 0.0
    %2979 = vmatmul.mubr.f32.gmra.mrb[0].mxu0 %v2909
    %v2980 = vpop.f32.mrb[0].mxu0
    %v2981 = vadd.f32 0.0, %v2980
    %v2982 = vpop.f32.mrb[0].mxu0
    %2983 = vmatprep.mubr.f32.mxu0 0.0
    %2984 = vmatmul.mubr.f32.gmra.mrb[0].mxu0 %v2912
    %v2985 = vpop.f32.mrb[0].mxu0
    %v2986 = vadd.f32 0.0, %v2985
    %v2987 = vpop.f32.mrb[0].mxu0
    %2988 = vdwg.mxu0
    %2993 = vrot.lane.b32.xlu0 %v2892, 16
    %v2994 = vpop.permute.xlu0 %2993
    %2995 = vrot.lane.b32.xlu0 %v2897, 16
    %v2996 = vpop.permute.xlu0 %2995
    %2997 = vrot.lane.b32.xlu0 %v2981, 16
    %v2998 = vpop.permute.xlu0 %2997
    %2999 = vrot.lane.b32.xlu0 %v2986, 16
    %v3000 = vpop.permute.xlu0 %2999
    %v3005 = vsel %vm531, %v2488, %v2994
    %v3006 = vsel %vm531, %v2493, %v2996
    %v3007 = vsel %vm531, %v2569, %v2998
    %v3008 = vsel %vm531, %v2574, %v3000
    %s3009 = scalar_lea.vmem %s27, 32
    %v3010 = vld [vmem:[%s3009] sm:$0xff]
    %v3011 = vld [vmem:[%s3009 + $0x8] sm:$0xff]
    %v3012 = vld [vmem:[%s3009 + $0x10] sm:$0xff]
    %v3013 = vld [vmem:[%s3009 + $0x18] sm:$0xff]
    %s3014 = scalar_lea.vmem %s29, 1
    %v3015 = vld [vmem:[%s3014] sm:$0x1]
    %v3017 = vlaneseq
    %v3018 = vshrl.u32 %v3017, 7
    %v3019 = vsub.s32 0, %v3018
    %v3020 = vrot.slane %v3015, %v3019
    %v3023 = vsel %vm133, %v3005, 0
    %v3026 = vsel %vm133, %v3006, 0
    %v3029 = vsel %vm133, %v3007, 0
    %v3032 = vsel %vm133, %v3008, 0
    %3034 = vmatprep.subr.mxu0 0.0
    %3035 = vmatpush1.msra.mxu0 %v3010
    %3036 = vmatprep.subr.mxu0 0.0
    %3037 = vmatpush1.msra.mxu0 %v3011
    %3038 = vmatprep.subr.mxu0 0.0
    %3039 = vmatpush1.msra.mxu0 %v3012
    %3040 = vmatprep.subr.mxu0 0.0
    %3041 = vmatpush1.msra.mxu0 %v3013
    %3042 = vmatprep.subr.mxu0 0.0
    %3043 = vmatpush1.msra.mxu0 0.0
    %3044 = vmatprep.subr.mxu0 0.0
    %3045 = vmatpush1.msra.mxu0 0.0
    %3046 = vmatprep.subr.mxu0 0.0
    %3047 = vmatpush1.msra.mxu0 0.0
    %3048 = vmatprep.subr.mxu0 0.0
    %3049 = vmatpush1.msra.mxu0 0.0
    %3050 = vmatprep.subr.mxu0 0.0
    %3051 = vmatpush1.msra.mxu0 0.0
    %3052 = vmatprep.subr.mxu0 0.0
    %3053 = vmatpush1.msra.mxu0 0.0
    %3054 = vmatprep.subr.mxu0 0.0
    %3055 = vmatpush1.msra.mxu0 0.0
    %3056 = vmatprep.subr.mxu0 0.0
    %3057 = vmatpush1.msra.mxu0 0.0
    %3058 = vmatprep.subr.mxu0 0.0
    %3059 = vmatpush1.msra.mxu0 0.0
    %3060 = vmatprep.subr.mxu0 0.0
    %3061 = vmatpush1.msra.mxu0 0.0
    %3062 = vmatprep.subr.mxu0 0.0
    %3063 = vmatpush1.msra.mxu0 0.0
    %3064 = vmatprep.subr.mxu0 0.0
    %3065 = vmatpush1.msra.mxu0 0.0
    %3066 = vmatprep.subr.mxu0 0.0
    %3067 = vmatpush1.msra.mxu0 0.0
    %3068 = vmatprep.subr.mxu0 0.0
    %3069 = vmatpush1.msra.mxu0 0.0
    %3070 = vmatprep.subr.mxu0 0.0
    %3071 = vmatpush1.msra.mxu0 0.0
    %3072 = vmatprep.subr.mxu0 0.0
    %3073 = vmatpush1.msra.mxu0 0.0
    %3074 = vmatprep.subr.mxu0 0.0
    %3075 = vmatpush1.msra.mxu0 0.0
    %3076 = vmatprep.subr.mxu0 0.0
    %3077 = vmatpush1.msra.mxu0 0.0
    %3078 = vmatprep.subr.mxu0 0.0
    %3079 = vmatpush1.msra.mxu0 0.0
    %3080 = vmatprep.subr.mxu0 0.0
    %3081 = vmatpush1.msra.mxu0 0.0
    %3082 = vmatprep.subr.mxu0 0.0
    %3083 = vmatpush1.msra.mxu0 0.0
    %3084 = vmatprep.subr.mxu0 0.0
    %3085 = vmatpush1.msra.mxu0 0.0
    %3086 = vmatprep.subr.mxu0 0.0
    %3087 = vmatpush1.msra.mxu0 0.0
    %3088 = vmatprep.subr.mxu0 0.0
    %3089 = vmatpush1.msra.mxu0 0.0
    %3090 = vmatprep.subr.mxu0 0.0
    %3091 = vmatpush1.msra.mxu0 0.0
    %3092 = vmatprep.subr.mxu0 0.0
    %3093 = vmatpush1.msra.mxu0 0.0
    %3094 = vmatprep.subr.mxu0 0.0
    %3095 = vmatpush1.msra.mxu0 0.0
    %3096 = vmatprep.subr.mxu0 0.0
    %3097 = vmatpush1.msra.mxu0 0.0
    %3098 = vmatprep.mubr.f32.mxu0 0.0
    %3099 = vmatmul.mubr.f32.gmra.mrb[0].mxu0 %v3023
    %v3100 = vpop.f32.mrb[0].mxu0
    %v3101 = vadd.f32 %v3020, %v3100
    %v3102 = vpop.f32.mrb[0].mxu0
    %3103 = vmatprep.mubr.f32.mxu0 0.0
    %3104 = vmatmul.mubr.f32.gmra.mrb[0].mxu0 %v3026
    %v3105 = vpop.f32.mrb[0].mxu0
    %v3106 = vadd.f32 %v3020, %v3105
    %v3107 = vpop.f32.mrb[0].mxu0
    %3108 = vmatprep.mubr.f32.mxu0 0.0
    %3109 = vmatmul.mubr.f32.gmra.mrb[0].mxu0 %v3029
    %v3110 = vpop.f32.mrb[0].mxu0
    %v3111 = vadd.f32 %v3020, %v3110
    %v3112 = vpop.f32.mrb[0].mxu0
    %3113 = vmatprep.mubr.f32.mxu0 0.0
    %3114 = vmatmul.mubr.f32.gmra.mrb[0].mxu0 %v3032
    %v3115 = vpop.f32.mrb[0].mxu0
    %v3116 = vadd.f32 %v3020, %v3115
    %v3117 = vpop.f32.mrb[0].mxu0
    %3118 = vdwg.mxu0
    %v3119 = vadd.f32 %v1879, %v3101
    %v3120 = vadd.f32 %v1880, %v3106
    %v3121 = vadd.f32 %v1881, %v3111
    %v3122 = vadd.f32 %v1882, %v3116
    %s3123 = scalar_lea.vmem %s31, 1
    %v3124 = vld [vmem:[%s3123] sm:$0x1]
    %s3125 = scalar_lea.vmem %s33, 1
    %v3126 = vld [vmem:[%s3125] sm:$0x1]
    %v3127 = vsel %vm133, %v3119, 0.0
    %3128 = vadd.xlane.f32.xlu0 %v3127
    %v3129 = vpop.xlane.xlu0 %3128
    %v3130 = vsel %vm133, %v3120, 0.0
    %3131 = vadd.xlane.f32.xlu0 %v3130
    %v3132 = vpop.xlane.xlu0 %3131
    %v3133 = vsel %vm133, %v3121, 0.0
    %3134 = vadd.xlane.f32.xlu0 %v3133
    %v3135 = vpop.xlane.xlu0 %3134
    %v3136 = vsel %vm133, %v3122, 0.0
    %3137 = vadd.xlane.f32.xlu0 %v3136
    %v3138 = vpop.xlane.xlu0 %3137
    %v3139 = vmul.f32 %v3129, %v146
    %v3140 = vmul.f32 %v3132, %v146
    %v3141 = vmul.f32 %v3135, %v146
    %v3142 = vmul.f32 %v3138, %v146
    %v3143 = vsub.f32 %v3119, %v3139
    %v3144 = vsub.f32 %v3120, %v3140
    %v3145 = vsub.f32 %v3121, %v3141
    %v3146 = vsub.f32 %v3122, %v3142
    %v3147 = vmul.f32 %v3143, %v3143
    %v3148 = vmul.f32 %v3144, %v3144
    %v3149 = vmul.f32 %v3145, %v3145
    %v3150 = vmul.f32 %v3146, %v3146
    %v3151 = vsel %vm133, %v3147, 0.0
    %3152 = vadd.xlane.f32.xlu0 %v3151
    %v3153 = vpop.xlane.xlu0 %3152
    %v3154 = vsel %vm133, %v3148, 0.0
    %3155 = vadd.xlane.f32.xlu0 %v3154
    %v3156 = vpop.xlane.xlu0 %3155
    %v3157 = vsel %vm133, %v3149, 0.0
    %3158 = vadd.xlane.f32.xlu0 %v3157
    %v3159 = vpop.xlane.xlu0 %3158
    %v3160 = vsel %vm133, %v3150, 0.0
    %3161 = vadd.xlane.f32.xlu0 %v3160
    %v3162 = vpop.xlane.xlu0 %3161
    %v3163 = vmul.f32 %v3153, %v146
    %v3164 = vmul.f32 %v3156, %v146
    %v3165 = vmul.f32 %v3159, %v146
    %v3166 = vmul.f32 %v3162, %v146
    %v3167 = vadd.f32 %v3163, 1e-12
    %v3168 = vadd.f32 %v3164, 1e-12
    %v3169 = vadd.f32 %v3165, 1e-12
    %v3170 = vadd.f32 %v3166, 1e-12
    %v3171 = vrsqrt.pop %v3167
    %v3172 = vrsqrt.pop %v3168
    %v3173 = vrsqrt.pop %v3169
    %v3174 = vrsqrt.pop %v3170
    %v3175 = vmul.f32 %v3143, %v3171
    %v3176 = vmul.f32 %v3144, %v3172
    %v3177 = vmul.f32 %v3145, %v3173
    %v3178 = vmul.f32 %v3146, %v3174
    %v3180 = vlaneseq
    %v3181 = vshrl.u32 %v3180, 7
    %v3182 = vsub.s32 0, %v3181
    %v3183 = vrot.slane %v3124, %v3182
    %v3185 = vmul.f32 %v3175, %v3183
    %v3186 = vmul.f32 %v3176, %v3183
    %v3187 = vmul.f32 %v3177, %v3183
    %v3188 = vmul.f32 %v3178, %v3183
    %v3190 = vlaneseq
    %v3191 = vshrl.u32 %v3190, 7
    %v3192 = vsub.s32 0, %v3191
    %v3193 = vrot.slane %v3126, %v3192
    %v3195 = vadd.f32 %v3185, %v3193
    %v3196 = vadd.f32 %v3186, %v3193
    %v3197 = vadd.f32 %v3187, %v3193
    %v3198 = vadd.f32 %v3188, %v3193
    %s3199 = scalar_lea.vmem %s35, 32
    %v3200 = vld [vmem:[%s3199] sm:$0xff]
    %v3201 = vld [vmem:[%s3199 + $0x8] sm:$0xff]
    %v3202 = vld [vmem:[%s3199 + $0x10] sm:$0xff]
    %v3203 = vld [vmem:[%s3199 + $0x18] sm:$0xff]
    %s3204 = scalar_lea.vmem %s37, 1
    %v3205 = vld [vmem:[%s3204] sm:$0x1]
    %v3207 = vlaneseq
    %v3208 = vshrl.u32 %v3207, 7
    %v3209 = vsub.s32 0, %v3208
    %v3210 = vrot.slane %v3205, %v3209
    %v3213 = vsel %vm133, %v3195, 0
    %v3216 = vsel %vm133, %v3196, 0
    %v3219 = vsel %vm133, %v3197, 0
    %v3222 = vsel %vm133, %v3198, 0
    %3224 = vmatprep.subr.mxu0 0.0
    %3225 = vmatpush1.msra.mxu0 %v3200
    %3226 = vmatprep.subr.mxu0 0.0
    %3227 = vmatpush1.msra.mxu0 %v3201
    %3228 = vmatprep.subr.mxu0 0.0
    %3229 = vmatpush1.msra.mxu0 %v3202
    %3230 = vmatprep.subr.mxu0 0.0
    %3231 = vmatpush1.msra.mxu0 %v3203
    %3232 = vmatprep.subr.mxu0 0.0
    %3233 = vmatpush1.msra.mxu0 0.0
    %3234 = vmatprep.subr.mxu0 0.0
    %3235 = vmatpush1.msra.mxu0 0.0
    %3236 = vmatprep.subr.mxu0 0.0
    %3237 = vmatpush1.msra.mxu0 0.0
    %3238 = vmatprep.subr.mxu0 0.0
    %3239 = vmatpush1.msra.mxu0 0.0
    %3240 = vmatprep.subr.mxu0 0.0
    %3241 = vmatpush1.msra.mxu0 0.0
    %3242 = vmatprep.subr.mxu0 0.0
    %3243 = vmatpush1.msra.mxu0 0.0
    %3244 = vmatprep.subr.mxu0 0.0
    %3245 = vmatpush1.msra.mxu0 0.0
    %3246 = vmatprep.subr.mxu0 0.0
    %3247 = vmatpush1.msra.mxu0 0.0
    %3248 = vmatprep.subr.mxu0 0.0
    %3249 = vmatpush1.msra.mxu0 0.0
    %3250 = vmatprep.subr.mxu0 0.0
    %3251 = vmatpush1.msra.mxu0 0.0
    %3252 = vmatprep.subr.mxu0 0.0
    %3253 = vmatpush1.msra.mxu0 0.0
    %3254 = vmatprep.subr.mxu0 0.0
    %3255 = vmatpush1.msra.mxu0 0.0
    %3256 = vmatprep.subr.mxu0 0.0
    %3257 = vmatpush1.msra.mxu0 0.0
    %3258 = vmatprep.subr.mxu0 0.0
    %3259 = vmatpush1.msra.mxu0 0.0
    %3260 = vmatprep.subr.mxu0 0.0
    %3261 = vmatpush1.msra.mxu0 0.0
    %3262 = vmatprep.subr.mxu0 0.0
    %3263 = vmatpush1.msra.mxu0 0.0
    %3264 = vmatprep.subr.mxu0 0.0
    %3265 = vmatpush1.msra.mxu0 0.0
    %3266 = vmatprep.subr.mxu0 0.0
    %3267 = vmatpush1.msra.mxu0 0.0
    %3268 = vmatprep.subr.mxu0 0.0
    %3269 = vmatpush1.msra.mxu0 0.0
    %3270 = vmatprep.subr.mxu0 0.0
    %3271 = vmatpush1.msra.mxu0 0.0
    %3272 = vmatprep.subr.mxu0 0.0
    %3273 = vmatpush1.msra.mxu0 0.0
    %3274 = vmatprep.subr.mxu0 0.0
    %3275 = vmatpush1.msra.mxu0 0.0
    %3276 = vmatprep.subr.mxu0 0.0
    %3277 = vmatpush1.msra.mxu0 0.0
    %3278 = vmatprep.subr.mxu0 0.0
    %3279 = vmatpush1.msra.mxu0 0.0
    %3280 = vmatprep.subr.mxu0 0.0
    %3281 = vmatpush1.msra.mxu0 0.0
    %3282 = vmatprep.subr.mxu0 0.0
    %3283 = vmatpush1.msra.mxu0 0.0
    %3284 = vmatprep.subr.mxu0 0.0
    %3285 = vmatpush1.msra.mxu0 0.0
    %3286 = vmatprep.subr.mxu0 0.0
    %3287 = vmatpush1.msra.mxu0 0.0
    %3288 = vmatprep.mubr.f32.mxu0 0.0
    %3289 = vmatmul.mubr.f32.gmra.mrb[0].mxu0 %v3213
    %v3290 = vpop.f32.mrb[0].mxu0
    %v3291 = vadd.f32 %v3210, %v3290
    %v3292 = vpop.f32.mrb[0].mxu0
    %3293 = vmatprep.mubr.f32.mxu0 0.0
    %3294 = vmatmul.mubr.f32.gmra.mrb[0].mxu0 %v3216
    %v3295 = vpop.f32.mrb[0].mxu0
    %v3296 = vadd.f32 %v3210, %v3295
    %v3297 = vpop.f32.mrb[0].mxu0
    %3298 = vmatprep.mubr.f32.mxu0 0.0
    %3299 = vmatmul.mubr.f32.gmra.mrb[0].mxu0 %v3219
    %v3300 = vpop.f32.mrb[0].mxu0
    %v3301 = vadd.f32 %v3210, %v3300
    %v3302 = vpop.f32.mrb[0].mxu0
    %3303 = vmatprep.mubr.f32.mxu0 0.0
    %3304 = vmatmul.mubr.f32.gmra.mrb[0].mxu0 %v3222
    %v3305 = vpop.f32.mrb[0].mxu0
    %v3306 = vadd.f32 %v3210, %v3305
    %v3307 = vpop.f32.mrb[0].mxu0
    %3308 = vdwg.mxu0
    %v3309 = vmul.f32 %v3291, 0.5
    %v3310 = vmul.f32 %v3296, 0.5
    %v3311 = vmul.f32 %v3301, 0.5
    %v3312 = vmul.f32 %v3306, 0.5
    %v3313 = vmul.f32 %v3291, 0.044715
    %v3314 = vmul.f32 %v3296, 0.044715
    %v3315 = vmul.f32 %v3301, 0.044715
    %v3316 = vmul.f32 %v3306, 0.044715
    %v3317 = vmul.f32 %v3313, %v3291
    %v3318 = vmul.f32 %v3314, %v3296
    %v3319 = vmul.f32 %v3315, %v3301
    %v3320 = vmul.f32 %v3316, %v3306
    %v3321 = vmul.f32 %v3317, %v3291
    %v3322 = vmul.f32 %v3318, %v3296
    %v3323 = vmul.f32 %v3319, %v3301
    %v3324 = vmul.f32 %v3320, %v3306
    %v3325 = vadd.f32 %v3291, %v3321
    %v3326 = vadd.f32 %v3296, %v3322
    %v3327 = vadd.f32 %v3301, %v3323
    %v3328 = vadd.f32 %v3306, %v3324
    %v3329 = vmul.f32 %v3325, 0.7978846
    %v3330 = vmul.f32 %v3326, 0.7978846
    %v3331 = vmul.f32 %v3327, 0.7978846
    %v3332 = vmul.f32 %v3328, 0.7978846
    %v3333 = vtanh.pop %v3329
    %v3334 = vtanh.pop %v3330
    %v3335 = vtanh.pop %v3331
    %v3336 = vtanh.pop %v3332
    %v3337 = vadd.f32 %v3333, 1.0
    %v3338 = vadd.f32 %v3334, 1.0
    %v3339 = vadd.f32 %v3335, 1.0
    %v3340 = vadd.f32 %v3336, 1.0
    %v3341 = vmul.f32 %v3309, %v3337
    %v3342 = vmul.f32 %v3310, %v3338
    %v3343 = vmul.f32 %v3311, %v3339
    %v3344 = vmul.f32 %v3312, %v3340
    %s3345 = scalar_lea.vmem %s39, 64
    %v3346 = vld [vmem:[%s3345] sm:$0xff]
    %v3347 = vld [vmem:[%s3345 + $0x8] sm:$0xff]
    %v3348 = vld [vmem:[%s3345 + $0x10] sm:$0xff]
    %v3349 = vld [vmem:[%s3345 + $0x18] sm:$0xff]
    %v3350 = vld [vmem:[%s3345 + $0x20] sm:$0xff]
    %v3351 = vld [vmem:[%s3345 + $0x28] sm:$0xff]
    %v3352 = vld [vmem:[%s3345 + $0x30] sm:$0xff]
    %v3353 = vld [vmem:[%s3345 + $0x38] sm:$0xff]
    %s3354 = scalar_lea.vmem %s41, 1
    %v3355 = vld [vmem:[%s3354] sm:$0x1]
    %v3357 = vlaneseq
    %v3358 = vshrl.u32 %v3357, 7
    %v3359 = vsub.s32 0, %v3358
    %v3360 = vrot.slane %v3355, %v3359
    %v3363 = vsel %vm1707, %v3341, 0
    %v3366 = vsel %vm1707, %v3342, 0
    %v3369 = vsel %vm1707, %v3343, 0
    %v3372 = vsel %vm1707, %v3344, 0
    %3374 = vmatprep.subr.mxu0 0.0
    %3375 = vmatpush1.msra.mxu0 %v3346
    %3376 = vmatprep.subr.mxu0 0.0
    %3377 = vmatpush1.msra.mxu0 %v3347
    %3378 = vmatprep.subr.mxu0 0.0
    %3379 = vmatpush1.msra.mxu0 %v3348
    %3380 = vmatprep.subr.mxu0 0.0
    %3381 = vmatpush1.msra.mxu0 %v3349
    %3382 = vmatprep.subr.mxu0 0.0
    %3383 = vmatpush1.msra.mxu0 %v3350
    %3384 = vmatprep.subr.mxu0 0.0
    %3385 = vmatpush1.msra.mxu0 %v3351
    %3386 = vmatprep.subr.mxu0 0.0
    %3387 = vmatpush1.msra.mxu0 %v3352
    %3388 = vmatprep.subr.mxu0 0.0
    %3389 = vmatpush1.msra.mxu0 %v3353
    %3390 = vmatprep.subr.mxu0 0.0
    %3391 = vmatpush1.msra.mxu0 0.0
    %3392 = vmatprep.subr.mxu0 0.0
    %3393 = vmatpush1.msra.mxu0 0.0
    %3394 = vmatprep.subr.mxu0 0.0
    %3395 = vmatpush1.msra.mxu0 0.0
    %3396 = vmatprep.subr.mxu0 0.0
    %3397 = vmatpush1.msra.mxu0 0.0
    %3398 = vmatprep.subr.mxu0 0.0
    %3399 = vmatpush1.msra.mxu0 0.0
    %3400 = vmatprep.subr.mxu0 0.0
    %3401 = vmatpush1.msra.mxu0 0.0
    %3402 = vmatprep.subr.mxu0 0.0
    %3403 = vmatpush1.msra.mxu0 0.0
    %3404 = vmatprep.subr.mxu0 0.0
    %3405 = vmatpush1.msra.mxu0 0.0
    %3406 = vmatprep.subr.mxu0 0.0
    %3407 = vmatpush1.msra.mxu0 0.0
    %3408 = vmatprep.subr.mxu0 0.0
    %3409 = vmatpush1.msra.mxu0 0.0
    %3410 = vmatprep.subr.mxu0 0.0
    %3411 = vmatpush1.msra.mxu0 0.0
    %3412 = vmatprep.subr.mxu0 0.0
    %3413 = vmatpush1.msra.mxu0 0.0
    %3414 = vmatprep.subr.mxu0 0.0
    %3415 = vmatpush1.msra.mxu0 0.0
    %3416 = vmatprep.subr.mxu0 0.0
    %3417 = vmatpush1.msra.mxu0 0.0
    %3418 = vmatprep.subr.mxu0 0.0
    %3419 = vmatpush1.msra.mxu0 0.0
    %3420 = vmatprep.subr.mxu0 0.0
    %3421 = vmatpush1.msra.mxu0 0.0
    %3422 = vmatprep.subr.mxu0 0.0
    %3423 = vmatpush1.msra.mxu0 0.0
    %3424 = vmatprep.subr.mxu0 0.0
    %3425 = vmatpush1.msra.mxu0 0.0
    %3426 = vmatprep.subr.mxu0 0.0
    %3427 = vmatpush1.msra.mxu0 0.0
    %3428 = vmatprep.subr.mxu0 0.0
    %3429 = vmatpush1.msra.mxu0 0.0
    %3430 = vmatprep.subr.mxu0 0.0
    %3431 = vmatpush1.msra.mxu0 0.0
    %3432 = vmatprep.subr.mxu0 0.0
    %3433 = vmatpush1.msra.mxu0 0.0
    %3434 = vmatprep.subr.mxu0 0.0
    %3435 = vmatpush1.msra.mxu0 0.0
    %3436 = vmatprep.subr.mxu0 0.0
    %3437 = vmatpush1.msra.mxu0 0.0
    %3438 = vmatprep.mubr.f32.mxu0 0.0
    %3439 = vmatmul.mubr.f32.gmra.mrb[0].mxu0 %v3363
    %v3440 = vpop.f32.mrb[0].mxu0
    %v3441 = vadd.f32 %v3360, %v3440
    %v3442 = vpop.f32.mrb[0].mxu0
    %3443 = vmatprep.mubr.f32.mxu0 0.0
    %3444 = vmatmul.mubr.f32.gmra.mrb[0].mxu0 %v3366
    %v3445 = vpop.f32.mrb[0].mxu0
    %v3446 = vadd.f32 %v3360, %v3445
    %v3447 = vpop.f32.mrb[0].mxu0
    %3448 = vmatprep.mubr.f32.mxu0 0.0
    %3449 = vmatmul.mubr.f32.gmra.mrb[0].mxu0 %v3369
    %v3450 = vpop.f32.mrb[0].mxu0
    %v3451 = vadd.f32 %v3360, %v3450
    %v3452 = vpop.f32.mrb[0].mxu0
    %3453 = vmatprep.mubr.f32.mxu0 0.0
    %3454 = vmatmul.mubr.f32.gmra.mrb[0].mxu0 %v3372
    %v3455 = vpop.f32.mrb[0].mxu0
    %v3456 = vadd.f32 %v3360, %v3455
    %v3457 = vpop.f32.mrb[0].mxu0
    %3458 = vdwg.mxu0
    %v3459 = vadd.f32 %v3195, %v3441
    %v3460 = vadd.f32 %v3196, %v3446
    %v3461 = vadd.f32 %v3197, %v3451
    %v3462 = vadd.f32 %v3198, %v3456
    %s3463 = scalar_lea.vmem %s43, 1
    %v3464 = vld [vmem:[%s3463] sm:$0x1]
    %s3465 = scalar_lea.vmem %s45, 1
    %v3466 = vld [vmem:[%s3465] sm:$0x1]
    %v3467 = vsel %vm133, %v3459, 0.0
    %3468 = vadd.xlane.f32.xlu0 %v3467
    %v3469 = vpop.xlane.xlu0 %3468
    %v3470 = vsel %vm133, %v3460, 0.0
    %3471 = vadd.xlane.f32.xlu0 %v3470
    %v3472 = vpop.xlane.xlu0 %3471
    %v3473 = vsel %vm133, %v3461, 0.0
    %3474 = vadd.xlane.f32.xlu0 %v3473
    %v3475 = vpop.xlane.xlu0 %3474
    %v3476 = vsel %vm133, %v3462, 0.0
    %3477 = vadd.xlane.f32.xlu0 %v3476
    %v3478 = vpop.xlane.xlu0 %3477
    %v3479 = vmul.f32 %v3469, %v146
    %v3480 = vmul.f32 %v3472, %v146
    %v3481 = vmul.f32 %v3475, %v146
    %v3482 = vmul.f32 %v3478, %v146
    %v3483 = vsub.f32 %v3459, %v3479
    %v3484 = vsub.f32 %v3460, %v3480
    %v3485 = vsub.f32 %v3461, %v3481
    %v3486 = vsub.f32 %v3462, %v3482
    %v3487 = vmul.f32 %v3483, %v3483
    %v3488 = vmul.f32 %v3484, %v3484
    %v3489 = vmul.f32 %v3485, %v3485
    %v3490 = vmul.f32 %v3486, %v3486
    %v3491 = vsel %vm133, %v3487, 0.0
    %3492 = vadd.xlane.f32.xlu0 %v3491
    %v3493 = vpop.xlane.xlu0 %3492
    %v3494 = vsel %vm133, %v3488, 0.0
    %3495 = vadd.xlane.f32.xlu0 %v3494
    %v3496 = vpop.xlane.xlu0 %3495
    %v3497 = vsel %vm133, %v3489, 0.0
    %3498 = vadd.xlane.f32.xlu0 %v3497
    %v3499 = vpop.xlane.xlu0 %3498
    %v3500 = vsel %vm133, %v3490, 0.0
    %3501 = vadd.xlane.f32.xlu0 %v3500
    %v3502 = vpop.xlane.xlu0 %3501
    %v3503 = vmul.f32 %v3493, %v146
    %v3504 = vmul.f32 %v3496, %v146
    %v3505 = vmul.f32 %v3499, %v146
    %v3506 = vmul.f32 %v3502, %v146
    %v3507 = vadd.f32 %v3503, 1e-12
    %v3508 = vadd.f32 %v3504, 1e-12
    %v3509 = vadd.f32 %v3505, 1e-12
    %v3510 = vadd.f32 %v3506, 1e-12
    %v3511 = vrsqrt.pop %v3507
    %v3512 = vrsqrt.pop %v3508
    %v3513 = vrsqrt.pop %v3509
    %v3514 = vrsqrt.pop %v3510
    %v3515 = vmul.f32 %v3483, %v3511
    %v3516 = vmul.f32 %v3484, %v3512
    %v3517 = vmul.f32 %v3485, %v3513
    %v3518 = vmul.f32 %v3486, %v3514
    %v3520 = vlaneseq
    %v3521 = vshrl.u32 %v3520, 7
    %v3522 = vsub.s32 0, %v3521
    %v3523 = vrot.slane %v3464, %v3522
    %v3525 = vmul.f32 %v3515, %v3523
    %v3526 = vmul.f32 %v3516, %v3523
    %v3527 = vmul.f32 %v3517, %v3523
    %v3528 = vmul.f32 %v3518, %v3523
    %v3530 = vlaneseq
    %v3531 = vshrl.u32 %v3530, 7
    %v3532 = vsub.s32 0, %v3531
    %v3533 = vrot.slane %v3466, %v3532
    %v3535 = vadd.f32 %v3525, %v3533
    %v3536 = vadd.f32 %v3526, %v3533
    %v3537 = vadd.f32 %v3527, %v3533
    %v3538 = vadd.f32 %v3528, %v3533
    %v3539 = vld [vmem:[%s5] sm:$0x3]
    %v3541 = vsel %vm133, %v3539, 0
    %3543 = vmatprep.subr.mxu0 0.0
    %3544 = vmatpush1.msra.mxu0 %v3535
    %3545 = vmatprep.subr.mxu0 0.0
    %3546 = vmatpush1.msra.mxu0 %v3536
    %3547 = vmatprep.subr.mxu0 0.0
    %3548 = vmatpush1.msra.mxu0 %v3537
    %3549 = vmatprep.subr.mxu0 0.0
    %3550 = vmatpush1.msra.mxu0 %v3538
    %3551 = vmatprep.subr.mxu0 0.0
    %3552 = vmatpush1.msra.mxu0 0.0
    %3553 = vmatprep.subr.mxu0 0.0
    %3554 = vmatpush1.msra.mxu0 0.0
    %3555 = vmatprep.subr.mxu0 0.0
    %3556 = vmatpush1.msra.mxu0 0.0
    %3557 = vmatprep.subr.mxu0 0.0
    %3558 = vmatpush1.msra.mxu0 0.0
    %3559 = vmatprep.subr.mxu0 0.0
    %3560 = vmatpush1.msra.mxu0 0.0
    %3561 = vmatprep.subr.mxu0 0.0
    %3562 = vmatpush1.msra.mxu0 0.0
    %3563 = vmatprep.subr.mxu0 0.0
    %3564 = vmatpush1.msra.mxu0 0.0
    %3565 = vmatprep.subr.mxu0 0.0
    %3566 = vmatpush1.msra.mxu0 0.0
    %3567 = vmatprep.subr.mxu0 0.0
    %3568 = vmatpush1.msra.mxu0 0.0
    %3569 = vmatprep.subr.mxu0 0.0
    %3570 = vmatpush1.msra.mxu0 0.0
    %3571 = vmatprep.subr.mxu0 0.0
    %3572 = vmatpush1.msra.mxu0 0.0
    %3573 = vmatprep.subr.mxu0 0.0
    %3574 = vmatpush1.msra.mxu0 0.0
    %3575 = vmatprep.subr.mxu0 0.0
    %3576 = vmatpush1.msra.mxu0 0.0
    %3577 = vmatprep.subr.mxu0 0.0
    %3578 = vmatpush1.msra.mxu0 0.0
    %3579 = vmatprep.subr.mxu0 0.0
    %3580 = vmatpush1.msra.mxu0 0.0
    %3581 = vmatprep.subr.mxu0 0.0
    %3582 = vmatpush1.msra.mxu0 0.0
    %3583 = vmatprep.subr.mxu0 0.0
    %3584 = vmatpush1.msra.mxu0 0.0
    %3585 = vmatprep.subr.mxu0 0.0
    %3586 = vmatpush1.msra.mxu0 0.0
    %3587 = vmatprep.subr.mxu0 0.0
    %3588 = vmatpush1.msra.mxu0 0.0
    %3589 = vmatprep.subr.mxu0 0.0
    %3590 = vmatpush1.msra.mxu0 0.0
    %3591 = vmatprep.subr.mxu0 0.0
    %3592 = vmatpush1.msra.mxu0 0.0
    %3593 = vmatprep.subr.mxu0 0.0
    %3594 = vmatpush1.msra.mxu0 0.0
    %3595 = vmatprep.subr.mxu0 0.0
    %3596 = vmatpush1.msra.mxu0 0.0
    %3597 = vmatprep.subr.mxu0 0.0
    %3598 = vmatpush1.msra.mxu0 0.0
    %3599 = vmatprep.subr.mxu0 0.0
    %3600 = vmatpush1.msra.mxu0 0.0
    %3601 = vmatprep.subr.mxu0 0.0
    %3602 = vmatpush1.msra.mxu0 0.0
    %3603 = vmatprep.subr.mxu0 0.0
    %3604 = vmatpush1.msra.mxu0 0.0
    %3605 = vmatprep.subr.mxu0 0.0
    %3606 = vmatpush1.msra.mxu0 0.0
    %3607 = vmatprep.mubr.f32.mxu0 0.0
    %3608 = vmatmul.mubr.f32.gmra.mrb[0].mxu0 %v3541
    %v3609 = vpop.f32.mrb[0].mxu0
    %v3610 = vadd.f32 0.0, %v3609
    %v3611 = vpop.f32.mrb[0].mxu0
    %3612 = vdwg.mxu0
    %v3613 = vld [vmem:[%s47] sm:$0xff]
    %v3614 = vld [vmem:[%s47 + $0x8] sm:$0xff]
    %v3615 = vld [vmem:[%s47 + $0x10] sm:$0xff]
    %v3616 = vld [vmem:[%s47 + $0x18] sm:$0xff]
    %v3617 = vld [vmem:[%s49] sm:$0x1]
    %v3619 = vlaneseq
    %v3620 = vshrl.u32 %v3619, 7
    %v3621 = vsub.s32 0, %v3620
    %v3622 = vrot.slane %v3617, %v3621
    %v3625 = vsel %vm133, %v3610, 0
    %3627 = vmatprep.subr.mxu0 0.0
    %3628 = vmatpush1.msra.mxu0 %v3613
    %3629 = vmatprep.subr.mxu0 0.0
    %3630 = vmatpush1.msra.mxu0 %v3614
    %3631 = vmatprep.subr.mxu0 0.0
    %3632 = vmatpush1.msra.mxu0 %v3615
    %3633 = vmatprep.subr.mxu0 0.0
    %3634 = vmatpush1.msra.mxu0 %v3616
    %3635 = vmatprep.subr.mxu0 0.0
    %3636 = vmatpush1.msra.mxu0 0.0
    %3637 = vmatprep.subr.mxu0 0.0
    %3638 = vmatpush1.msra.mxu0 0.0
    %3639 = vmatprep.subr.mxu0 0.0
    %3640 = vmatpush1.msra.mxu0 0.0
    %3641 = vmatprep.subr.mxu0 0.0
    %3642 = vmatpush1.msra.mxu0 0.0
    %3643 = vmatprep.subr.mxu0 0.0
    %3644 = vmatpush1.msra.mxu0 0.0
    %3645 = vmatprep.subr.mxu0 0.0
    %3646 = vmatpush1.msra.mxu0 0.0
    %3647 = vmatprep.subr.mxu0 0.0
    %3648 = vmatpush1.msra.mxu0 0.0
    %3649 = vmatprep.subr.mxu0 0.0
    %3650 = vmatpush1.msra.mxu0 0.0
    %3651 = vmatprep.subr.mxu0 0.0
    %3652 = vmatpush1.msra.mxu0 0.0
    %3653 = vmatprep.subr.mxu0 0.0
    %3654 = vmatpush1.msra.mxu0 0.0
    %3655 = vmatprep.subr.mxu0 0.0
    %3656 = vmatpush1.msra.mxu0 0.0
    %3657 = vmatprep.subr.mxu0 0.0
    %3658 = vmatpush1.msra.mxu0 0.0
    %3659 = vmatprep.subr.mxu0 0.0
    %3660 = vmatpush1.msra.mxu0 0.0
    %3661 = vmatprep.subr.mxu0 0.0
    %3662 = vmatpush1.msra.mxu0 0.0
    %3663 = vmatprep.subr.mxu0 0.0
    %3664 = vmatpush1.msra.mxu0 0.0
    %3665 = vmatprep.subr.mxu0 0.0
    %3666 = vmatpush1.msra.mxu0 0.0
    %3667 = vmatprep.subr.mxu0 0.0
    %3668 = vmatpush1.msra.mxu0 0.0
    %3669 = vmatprep.subr.mxu0 0.0
    %3670 = vmatpush1.msra.mxu0 0.0
    %3671 = vmatprep.subr.mxu0 0.0
    %3672 = vmatpush1.msra.mxu0 0.0
    %3673 = vmatprep.subr.mxu0 0.0
    %3674 = vmatpush1.msra.mxu0 0.0
    %3675 = vmatprep.subr.mxu0 0.0
    %3676 = vmatpush1.msra.mxu0 0.0
    %3677 = vmatprep.subr.mxu0 0.0
    %3678 = vmatpush1.msra.mxu0 0.0
    %3679 = vmatprep.subr.mxu0 0.0
    %3680 = vmatpush1.msra.mxu0 0.0
    %3681 = vmatprep.subr.mxu0 0.0
    %3682 = vmatpush1.msra.mxu0 0.0
    %3683 = vmatprep.subr.mxu0 0.0
    %3684 = vmatpush1.msra.mxu0 0.0
    %3685 = vmatprep.subr.mxu0 0.0
    %3686 = vmatpush1.msra.mxu0 0.0
    %3687 = vmatprep.subr.mxu0 0.0
    %3688 = vmatpush1.msra.mxu0 0.0
    %3689 = vmatprep.subr.mxu0 0.0
    %3690 = vmatpush1.msra.mxu0 0.0
    %3691 = vmatprep.mubr.f32.mxu0 0.0
    %3692 = vmatmul.mubr.f32.gmra.mrb[0].mxu0 %v3625
    %v3693 = vpop.f32.mrb[0].mxu0
    %v3694 = vadd.f32 %v3622, %v3693
    %v3695 = vpop.f32.mrb[0].mxu0
    %3696 = vdwg.mxu0
    %v3697 = vmul.f32 %v3694, 0.5
    %v3698 = vmul.f32 %v3694, 0.044715
    %v3699 = vmul.f32 %v3698, %v3694
    %v3700 = vmul.f32 %v3699, %v3694
    %v3701 = vadd.f32 %v3694, %v3700
    %v3702 = vmul.f32 %v3701, 0.7978846
    %v3703 = vtanh.pop %v3702
    %v3704 = vadd.f32 %v3703, 1.0
    %v3705 = vmul.f32 %v3697, %v3704
    %v3706 = vld [vmem:[%s51] sm:$0x1]
    %v3707 = vld [vmem:[%s53] sm:$0x1]
    %vm3708 = vcmask 254976
    %v3709 = vsel %vm3708, %v3705, 0.0
    %3710 = vadd.xlane.f32.xlu0 %v3709
    %v3711 = vpop.xlane.xlu0 %3710
    %v3712 = vmul.f32 %v3711, %v146
    %v3713 = vsub.f32 %v3705, %v3712
    %v3714 = vmul.f32 %v3713, %v3713
    %v3715 = vsel %vm3708, %v3714, 0.0
    %3716 = vadd.xlane.f32.xlu0 %v3715
    %v3717 = vpop.xlane.xlu0 %3716
    %v3718 = vmul.f32 %v3717, %v146
    %v3719 = vadd.f32 %v3718, 1e-12
    %v3720 = vrsqrt.pop %v3719
    %v3721 = vmul.f32 %v3713, %v3720
    %v3723 = vlaneseq
    %v3724 = vshrl.u32 %v3723, 7
    %v3725 = vsub.s32 0, %v3724
    %v3726 = vrot.slane %v3706, %v3725
    %v3728 = vmul.f32 %v3721, %v3726
    %v3730 = vlaneseq
    %v3731 = vshrl.u32 %v3730, 7
    %v3732 = vsub.s32 0, %v3731
    %v3733 = vrot.slane %v3707, %v3732
    %v3735 = vadd.f32 %v3728, %v3733
    %v3736 = vld [vmem:[%s55] sm:$0xff]
    %v3737 = vld [vmem:[%s55 + $0x8] sm:$0xff]
    %v3738 = vld [vmem:[%s55 + $0x10] sm:$0xff]
    %v3739 = vld [vmem:[%s55 + $0x18] sm:$0xff]
    %v3740 = vld [vmem:[%s57] sm:$0x1]
    %v3742 = vlaneseq
    %v3743 = vshrl.u32 %v3742, 7
    %v3744 = vsub.s32 0, %v3743
    %v3745 = vrot.slane %v3740, %v3744
    %v3748 = vsel %vm133, %v3735, 0
    %3750 = vmatprep.subr.mxu0 0.0
    %3751 = vmatpush1.msra.mxu0 %v3736
    %3752 = vmatprep.subr.mxu0 0.0
    %3753 = vmatpush1.msra.mxu0 %v3737
    %3754 = vmatprep.subr.mxu0 0.0
    %3755 = vmatpush1.msra.mxu0 %v3738
    %3756 = vmatprep.subr.mxu0 0.0
    %3757 = vmatpush1.msra.mxu0 %v3739
    %3758 = vmatprep.subr.mxu0 0.0
    %3759 = vmatpush1.msra.mxu0 0.0
    %3760 = vmatprep.subr.mxu0 0.0
    %3761 = vmatpush1.msra.mxu0 0.0
    %3762 = vmatprep.subr.mxu0 0.0
    %3763 = vmatpush1.msra.mxu0 0.0
    %3764 = vmatprep.subr.mxu0 0.0
    %3765 = vmatpush1.msra.mxu0 0.0
    %3766 = vmatprep.subr.mxu0 0.0
    %3767 = vmatpush1.msra.mxu0 0.0
    %3768 = vmatprep.subr.mxu0 0.0
    %3769 = vmatpush1.msra.mxu0 0.0
    %3770 = vmatprep.subr.mxu0 0.0
    %3771 = vmatpush1.msra.mxu0 0.0
    %3772 = vmatprep.subr.mxu0 0.0
    %3773 = vmatpush1.msra.mxu0 0.0
    %3774 = vmatprep.subr.mxu0 0.0
    %3775 = vmatpush1.msra.mxu0 0.0
    %3776 = vmatprep.subr.mxu0 0.0
    %3777 = vmatpush1.msra.mxu0 0.0
    %3778 = vmatprep.subr.mxu0 0.0
    %3779 = vmatpush1.msra.mxu0 0.0
    %3780 = vmatprep.subr.mxu0 0.0
    %3781 = vmatpush1.msra.mxu0 0.0
    %3782 = vmatprep.subr.mxu0 0.0
    %3783 = vmatpush1.msra.mxu0 0.0
    %3784 = vmatprep.subr.mxu0 0.0
    %3785 = vmatpush1.msra.mxu0 0.0
    %3786 = vmatprep.subr.mxu0 0.0
    %3787 = vmatpush1.msra.mxu0 0.0
    %3788 = vmatprep.subr.mxu0 0.0
    %3789 = vmatpush1.msra.mxu0 0.0
    %3790 = vmatprep.subr.mxu0 0.0
    %3791 = vmatpush1.msra.mxu0 0.0
    %3792 = vmatprep.subr.mxu0 0.0
    %3793 = vmatpush1.msra.mxu0 0.0
    %3794 = vmatprep.subr.mxu0 0.0
    %3795 = vmatpush1.msra.mxu0 0.0
    %3796 = vmatprep.subr.mxu0 0.0
    %3797 = vmatpush1.msra.mxu0 0.0
    %3798 = vmatprep.subr.mxu0 0.0
    %3799 = vmatpush1.msra.mxu0 0.0
    %3800 = vmatprep.subr.mxu0 0.0
    %3801 = vmatpush1.msra.mxu0 0.0
    %3802 = vmatprep.subr.mxu0 0.0
    %3803 = vmatpush1.msra.mxu0 0.0
    %3804 = vmatprep.subr.mxu0 0.0
    %3805 = vmatpush1.msra.mxu0 0.0
    %3806 = vmatprep.subr.mxu0 0.0
    %3807 = vmatpush1.msra.mxu0 0.0
    %3808 = vmatprep.subr.mxu0 0.0
    %3809 = vmatpush1.msra.mxu0 0.0
    %3810 = vmatprep.subr.mxu0 0.0
    %3811 = vmatpush1.msra.mxu0 0.0
    %3812 = vmatprep.subr.mxu0 0.0
    %3813 = vmatpush1.msra.mxu0 0.0
    %3814 = vmatprep.mubr.f32.mxu0 0.0
    %3815 = vmatmul.mubr.f32.gmra.mrb[0].mxu0 %v3748
    %v3816 = vpop.f32.mrb[0].mxu0
    %v3817 = vadd.f32 %v3745, %v3816
    %v3818 = vpop.f32.mrb[0].mxu0
    %3819 = vdwg.mxu0
    %v3820 = vld [vmem:[%s7] sm:$0xff]
    %v3821 = vld [vmem:[%s7 + $0x8] sm:$0xff]
    %v3822 = vld [vmem:[%s7 + $0x10] sm:$0xff]
    %v3823 = vld [vmem:[%s7 + $0x18] sm:$0xff]
    %v3824 = vld [vmem:[%s7 + $0x20] sm:$0xff]
    %v3825 = vld [vmem:[%s7 + $0x28] sm:$0xff]
    %v3826 = vld [vmem:[%s7 + $0x30] sm:$0xff]
    %v3827 = vld [vmem:[%s7 + $0x38] sm:$0xff]
    %v3828 = vld [vmem:[%s7 + $0x40] sm:$0xff]
    %v3829 = vld [vmem:[%s7 + $0x48] sm:$0xff]
    %v3830 = vld [vmem:[%s7 + $0x50] sm:$0xff]
    %v3831 = vld [vmem:[%s7 + $0x58] sm:$0xff]
    %v3832 = vld [vmem:[%s7 + $0x60] sm:$0xff]
    %v3833 = vld [vmem:[%s7 + $0x68] sm:$0xff]
    %v3834 = vld [vmem:[%s7 + $0x70] sm:$0xff]
    %v3835 = vld [vmem:[%s7 + $0x78] sm:$0xff]
    %3836 = vmatprep.subr.mxu0 0.0
    %3837 = vmatpush1.msra.mxu0 %v3820
    %3838 = vmatprep.subr.mxu0 0.0
    %3839 = vmatpush1.msra.mxu0 %v3821
    %3840 = vmatprep.subr.mxu0 0.0
    %3841 = vmatpush1.msra.mxu0 %v3822
    %3842 = vmatprep.subr.mxu0 0.0
    %3843 = vmatpush1.msra.mxu0 %v3823
    %3844 = vmatprep.subr.mxu0 0.0
    %3845 = vmatpush1.msra.mxu0 %v3824
    %3846 = vmatprep.subr.mxu0 0.0
    %3847 = vmatpush1.msra.mxu0 %v3825
    %3848 = vmatprep.subr.mxu0 0.0
    %3849 = vmatpush1.msra.mxu0 %v3826
    %3850 = vmatprep.subr.mxu0 0.0
    %3851 = vmatpush1.msra.mxu0 %v3827
    %3852 = vmatprep.subr.mxu0 0.0
    %3853 = vmatpush1.msra.mxu0 %v3828
    %3854 = vmatprep.subr.mxu0 0.0
    %3855 = vmatpush1.msra.mxu0 %v3829
    %3856 = vmatprep.subr.mxu0 0.0
    %3857 = vmatpush1.msra.mxu0 %v3830
    %3858 = vmatprep.subr.mxu0 0.0
    %3859 = vmatpush1.msra.mxu0 %v3831
    %3860 = vmatprep.subr.mxu0 0.0
    %3861 = vmatpush1.msra.mxu0 %v3832
    %3862 = vmatprep.subr.mxu0 0.0
    %3863 = vmatpush1.msra.mxu0 %v3833
    %3864 = vmatprep.subr.mxu0 0.0
    %3865 = vmatpush1.msra.mxu0 %v3834
    %3866 = vmatprep.subr.mxu0 0.0
    %3867 = vmatpush1.msra.mxu0 %v3835
    %3868 = vmatprep.subr.mxu0 0.0
    %3869 = vmatpush1.msra.mxu0 0.0
    %3870 = vmatprep.subr.mxu0 0.0
    %3871 = vmatpush1.msra.mxu0 0.0
    %3872 = vmatprep.subr.mxu0 0.0
    %3873 = vmatpush1.msra.mxu0 0.0
    %3874 = vmatprep.subr.mxu0 0.0
    %3875 = vmatpush1.msra.mxu0 0.0
    %3876 = vmatprep.subr.mxu0 0.0
    %3877 = vmatpush1.msra.mxu0 0.0
    %3878 = vmatprep.subr.mxu0 0.0
    %3879 = vmatpush1.msra.mxu0 0.0
    %3880 = vmatprep.subr.mxu0 0.0
    %3881 = vmatpush1.msra.mxu0 0.0
    %3882 = vmatprep.subr.mxu0 0.0
    %3883 = vmatpush1.msra.mxu0 0.0
    %3884 = vmatprep.subr.mxu0 0.0
    %3885 = vmatpush1.msra.mxu0 0.0
    %3886 = vmatprep.subr.mxu0 0.0
    %3887 = vmatpush1.msra.mxu0 0.0
    %3888 = vmatprep.subr.mxu0 0.0
    %3889 = vmatpush1.msra.mxu0 0.0
    %3890 = vmatprep.subr.mxu0 0.0
    %3891 = vmatpush1.msra.mxu0 0.0
    %3892 = vmatprep.subr.mxu0 0.0
    %3893 = vmatpush1.msra.mxu0 0.0
    %3894 = vmatprep.subr.mxu0 0.0
    %3895 = vmatpush1.msra.mxu0 0.0
    %3896 = vmatprep.subr.mxu0 0.0
    %3897 = vmatpush1.msra.mxu0 0.0
    %3898 = vmatprep.subr.mxu0 0.0
    %3899 = vmatpush1.msra.mxu0 0.0
    %3900 = vmatprep.mubr.f32.mxu0 0.0
    %3901 = vmatmul.mubr.f32.gmra.mrb[0].mxu0 %v3817
    %v3902 = vpop.f32.mrb[0].mxu0
    %v3903 = vadd.f32 0.0, %v3902
    %v3904 = vpop.f32.mrb[0].mxu0
    %3905 = vdwg.mxu0
    %vm3906 = vcmask 9216
    %v3907 = vsel %vm3906, %v3903, -inf
    %3908 = vmax.xlane.f32.xlu0 %v3907
    %v3909 = vpop.xlane.xlu0 %3908
    %v3910 = vsub.f32 %v3903, %v3909
    %v3911 = vmul.f32 %v3910, 1.442695
    %v3912 = vpow.pop %v3911
    %v3913 = vsel %vm3906, %v3912, 0.0
    %3914 = vadd.xlane.f32.xlu0 %v3913
    %v3915 = vpop.xlane.xlu0 %3914
    %v3916 = vrcp.pop %v3915
    %v3917 = vmul.f32 %v3912, %v3916
    %3918 = vst.msk [vmem:[#allocation4] sm:$0x3] %vm3906, %v3917
    %v3919 = vlog2.pop %v3915
    %v3920 = vmul.f32 %v3919, 0.6931472
    %v3921 = vadd.f32 %v3920, %v3909
    %v3922 = vld [vmem:[%s9] sm:$0x3]
    %v3923 = vmul.f32 %v3903, %v3922
    %v3924 = vsel %vm3906, %v3923, 0.0
    %3925 = vadd.xlane.f32.xlu0 %v3924
    %v3926 = vpop.xlane.xlu0 %3925
    %v3927 = vsub.f32 %v3921, %v3926
    %vm3928 = vcmask 1041408
    %v3929 = vsel %vm3928, %v3927, 0.0
    %v3930 = vrot.slane %v3929, 4
    %v3931 = vadd.f32 %v3929, %v3930
    %v3932 = vrot.slane %v3931, 2
    %v3933 = vadd.f32 %v3931, %v3932
    %v3934 = vrot.slane %v3933, 1
    %v3935 = vadd.f32 %v3933, %v3934
    %v3936 = vrcp.pop 2.0
    %v3937 = vmul.f32 %v3935, %v3936
    %vm3938 = vcmask 0
    %3939 = vst.msk [vmem:[#allocation2] sm:$0x1] %vm3938, %v3937
    // Predicated region
    $region118: #{bert_prompt4nr_forward.1} parent=1 // pred_check
      _
    $region119: #{bert_prompt4nr_forward.1} parent=1 // pred_check_branch
      %3941 = sbr.rel (0) target = $region121
    $region120: #{bert_prompt4nr_forward.1} parent=1 // pred_region
      %s3943 = ssub.s32 16, 16
      %3944 = vsyncadd [#allocation3], %s3943
      %s3946 = sshll.u32 [#allocation2], 4
      %s3947 = int_to_ptr.vmem [resolvable:$true] %s3946
      %3949 = dma.vmem_to_hbm [thread:$0]  %s3947, 16, %s59, [#allocation3]
    $region121: #{bert_prompt4nr_forward.1} parent=1 // pred_fallthru
      _
    // Predicated region
    $region122: #{bert_prompt4nr_forward.1} parent=1 // pred_check
      _
    $region123: #{bert_prompt4nr_forward.1} parent=1 // pred_check_branch
      %3951 = sbr.rel (0) target = $region125
    $region124: #{bert_prompt4nr_forward.1} parent=1 // pred_region
      %s3953 = ssub.s32 32, 32
      %3954 = vsyncadd [#allocation5], %s3953
      %s3956 = sshll.u32 [#allocation4], 4
      %s3957 = int_to_ptr.vmem [resolvable:$true] %s3956
      %3959 = dma.vmem_to_hbm [thread:$0]  %s3957, 32, %s61, [#allocation5]
    $region125: #{bert_prompt4nr_forward.1} parent=1 // pred_fallthru
      _
    // Predicated region
    $region126: #{bert_prompt4nr_forward.1} parent=1 // pred_check
      _
    $region127: #{bert_prompt4nr_forward.1} parent=1 // pred_check_branch
      %3961 = sbr.rel (0) target = $region129
    $region128: #{bert_prompt4nr_forward.1} parent=1 // pred_region
      %3962 = dma.done [#allocation3], 16
    $region129: #{bert_prompt4nr_forward.1} parent=1 // pred_fallthru
      _
    // Predicated region
    $region130: #{bert_prompt4nr_forward.1} parent=1 // pred_check
      _
    $region131: #{bert_prompt4nr_forward.1} parent=1 // pred_check_branch
      %3964 = sbr.rel (0) target = $region133
    $region132: #{bert_prompt4nr_forward.1} parent=1 // pred_region
      %3965 = dma.done [#allocation5], 32
    $region133: #{bert_prompt4nr_forward.1} parent=1 // pred_fallthru
      _
    %3966 = vsyncpa [#allocation3], 1
    %3967 = vsyncpa [#allocation5], 1

</llo_original>
